<compile_context>
chip_gen: v7x
topology: tpu7x:2x2x1
jax: 0.10.0
libtpu: 0.0.40
codegen_flags: <defaults>
</compile_context>

<pallas_src>
import jax
import jax.numpy as jnp
from jax.experimental import pallas as pl
from jax.experimental.pallas import tpu as pltpu


def _global_branch_kernel(x_ref, wos_ref, bos_ref, w12_ref,
                          s1_ref, b1_ref, s2_ref, b2_ref, o_ref):
    bt, c, hw = x_ref.shape
    f = s1_ref.shape[-1]

    # In-kernel NCHW -> channels-last relayout fused with the bf16 downcast.
    # Per-image 2-D transposes (XLU) keep the big matmul lane-dense in C=512.
    x_cf = x_ref[...].astype(jnp.bfloat16)                         # (bt, C, HW)
    x = jnp.concatenate([x_cf[b].T for b in range(bt)], axis=0)     # (bt*HW, C)

    # OSBlock stand-in: 1x1 conv + ReLU, one big MXU matmul (M = bt*HW).
    feat = jnp.dot(x, wos_ref[...], preferred_element_type=jnp.float32)
    feat = jnp.maximum(feat + bos_ref[...], 0.0)                    # (bt*HW, C) f32

    # Global pools (eval-mode BatchDropTop == identity, both branches see `feat`).
    feat3 = feat.reshape(bt, hw, c)
    avg = jnp.sum(feat3, axis=1) * (1.0 / hw)                       # avg pool (bt, C)
    mx = jnp.max(feat3, axis=1)                                     # max pool (bt, C)

    # Fused BNNeck3 reductions: [avg ; max] @ [w1 | w2], then folded-BN affine.
    # NOTE: pooled is downcast to bf16 for the MXU (eval-mode re-ID tolerance);
    # keep f32 here if bit-closeness to the PyTorch path is required.
    pooled = jnp.concatenate([avg, mx], axis=0).astype(w12_ref.dtype)          # (2bt, C)
    neck = jnp.dot(pooled, w12_ref[...], preferred_element_type=jnp.float32)   # (2bt, 2F)
    neck_glo = neck[:bt, :f] * s1_ref[...] + b1_ref[...]            # f_glo after-neck
    neck_drop = neck[bt:, f:] * s2_ref[...] + b2_ref[...]           # f_glo_drop after-neck

    # Single lane-dense unmasked store: (bt, 2F) with [:, :F]=glo, [:, F:]=drop.
    o_ref[0] = jnp.concatenate([neck_glo, neck_drop], axis=-1)


def _grid_steps_for_chip(batch):
    """1 fat step on single-TC v5e/v6e; 2 'parallel' steps on dual-TC v7x."""
    try:
        kind = jax.devices()[0].device_kind.lower()
    except Exception:
        kind = ""
    dual_tc = "7" in kind          # v7x: 2 TensorCores per chip (megacore axis)
    return min(2 if dual_tc else 1, max(batch, 1))


def global_branch_forward(x_nchw, params, block_b=None):
    """x_nchw: (B, 512, H, W) float32 — output of backbone2 (stand-in).

    Returns the eval-mode bnneck_return result (B, feats, 2):
      [..., 0] = reduction_1(avg-pool), [..., 1] = reduction_2(max-pool).
    """
    B, C, H, W = x_nchw.shape
    HW = H * W
    F = params["s1"].shape[-1]

    if block_b is None:
        steps = _grid_steps_for_chip(B)
        bt = min(pl.cdiv(B, steps), 16)        # cap per-step unroll / VMEM at large B
    else:
        bt = min(block_b, B)
    n_steps = pl.cdiv(B, bt)
    B_pad = n_steps * bt

    # Free metadata reshape (contiguous) — the actual relayout happens in-kernel.
    x = x_nchw.reshape(B, C, HW)
    if B_pad != B:
        # TODO(synk): handle the ragged last step in-kernel (mask pooled rows)
        # instead of materializing a padded copy of the activations.
        x = jnp.pad(x, ((0, B_pad - B), (0, 0), (0, 0)))

    def const(ndim):
        return lambda i: (0,) * ndim

    # TODO(synk): once the real OSBlock/backbone2 weights land, mark the grid-
    # invariant weight specs pipeline_mode=pl.Buffered(1) to save v7x VMEM.
    out = pl.pallas_call(
        _global_branch_kernel,
        out_shape=jax.ShapeDtypeStruct((n_steps, bt, 2 * F), jnp.float32),
        grid_spec=pltpu.PrefetchScalarGridSpec(
            num_scalar_prefetch=0,
            grid=(n_steps,),
            in_specs=[
                pl.BlockSpec((bt, C, HW), lambda i: (i, 0, 0)),  # raw NCHW tile (f32)
                pl.BlockSpec((C, C), const(2)),                  # OSBlock stand-in weight (bf16)
                pl.BlockSpec((1, C), const(2)),                  # OSBlock stand-in bias (f32)
                pl.BlockSpec((C, 2 * F), const(2)),              # packed [w1 | w2] (bf16)
                pl.BlockSpec((1, F), const(2)),                  # reduction_1 BN scale
                pl.BlockSpec((1, F), const(2)),                  # reduction_1 BN bias
                pl.BlockSpec((1, F), const(2)),                  # reduction_2 BN scale
                pl.BlockSpec((1, F), const(2)),                  # reduction_2 BN bias
            ],
            out_specs=pl.BlockSpec((1, bt, 2 * F), lambda i: (i, 0, 0)),
        ),
        compiler_params=pltpu.CompilerParams(
            dimension_semantics=("parallel",)),
    )(x, params["w_os"], params["b_os"], params["w12"],
      params["s1"], params["b1"], params["s2"], params["b2"])

    out = out.reshape(B_pad, 2 * F)[:B]                  # drop batch padding
    # bnneck_return (eval): torch.stack([f_glo[0], f_glo_drop[0]], dim=2) -> (B, feats, 2)
    return jnp.transpose(out.reshape(B, 2, F), (0, 2, 1))


def init_params(key, in_channels=512, feats=128):
    k = jax.random.split(key, 3)
    w_os = jax.random.normal(k[0], (in_channels, in_channels), jnp.float32) * 0.02
    b_os = jnp.zeros((1, in_channels), jnp.float32)
    # BNNeck3 1x1-conv weights (stored as (in, out) == torch weight[:, :, 0, 0].T)
    w1 = jax.random.normal(k[1], (in_channels, feats), jnp.float32) * 0.02
    w2 = jax.random.normal(k[2], (in_channels, feats), jnp.float32) * 0.02
    # BatchNorm1d eval fold (general form — use this when loading real checkpoints):
    #   scale = gamma / sqrt(running_var + eps)
    #   bias  = beta - running_mean * scale      (beta is frozen to 0 in BNNeck3)
    eps = 1e-5
    gamma = jnp.ones((1, feats), jnp.float32)
    beta = jnp.zeros((1, feats), jnp.float32)
    running_mean = jnp.zeros((1, feats), jnp.float32)
    running_var = jnp.ones((1, feats), jnp.float32)
    scale = gamma / jnp.sqrt(running_var + eps)
    bias = beta - running_mean * scale
    return dict(
        w_os=w_os.astype(jnp.bfloat16),
        b_os=b_os,
        w12=jnp.concatenate([w1, w2], axis=1).astype(jnp.bfloat16),  # (C, 2F)
        s1=scale, b1=bias, s2=scale, b2=bias)


if __name__ == "__main__":
    key = jax.random.PRNGKey(0)
    k_x, k_p = jax.random.split(key)

    B, C, H, W = 8, 512, 8, 8      # C fixed at 512 by the module; HW=64
    FEATS = 128                    # args.feats (multiple of 128 for lane-dense stores)
    # NOTE: num_classes / classifier scores only matter on the training path,
    # which bnneck_return skips in eval mode, so they are not materialized here.

    x = jax.random.normal(k_x, (B, C, H, W), jnp.float32)
    params = init_params(k_p, in_channels=C, feats=FEATS)

    out = global_branch_forward(x, params)     # (B, FEATS, 2)
    out = jax.block_until_ready(out)
    assert out.shape == (B, FEATS, 2)
    assert bool(jnp.all(jnp.isfinite(out)))
    print("KERNEL_OK")
</pallas_src>

<mosaic_0001>
module attributes {stable_mosaic.version = 11 : i64} {
  func.func @_global_branch_kernel(%arg0: i32, %arg1: memref<8x512x64xf32, #tpu.memory_space<vmem>>, %arg2: memref<512x512xbf16, #tpu.memory_space<vmem>>, %arg3: memref<1x512xf32, #tpu.memory_space<vmem>>, %arg4: memref<512x256xbf16, #tpu.memory_space<vmem>>, %arg5: memref<1x128xf32, #tpu.memory_space<vmem>>, %arg6: memref<1x128xf32, #tpu.memory_space<vmem>>, %arg7: memref<1x128xf32, #tpu.memory_space<vmem>>, %arg8: memref<1x128xf32, #tpu.memory_space<vmem>>, %arg9: memref<1x8x256xf32, #tpu.memory_space<vmem>>) attributes {dimension_semantics = [#tpu.dimension_semantics<parallel>], iteration_bounds = array<i64: 1>, scalar_prefetch = 0 : i64, scratch_operands = 0 : i64, tpu.core_type = #tpu.core_type<tc>, window_params = [{transform_indices = @transform_0, window_bounds = array<i64: 8, 512, 64>}, {pipeline_mode = #tpu.pipeline_mode<synchronous>, transform_indices = @transform_1, window_bounds = array<i64: 512, 512>}, {pipeline_mode = #tpu.pipeline_mode<synchronous>, transform_indices = @transform_2, window_bounds = array<i64: 1, 512>}, {pipeline_mode = #tpu.pipeline_mode<synchronous>, transform_indices = @transform_3, window_bounds = array<i64: 512, 256>}, {pipeline_mode = #tpu.pipeline_mode<synchronous>, transform_indices = @transform_4, window_bounds = array<i64: 1, 128>}, {pipeline_mode = #tpu.pipeline_mode<synchronous>, transform_indices = @transform_5, window_bounds = array<i64: 1, 128>}, {pipeline_mode = #tpu.pipeline_mode<synchronous>, transform_indices = @transform_6, window_bounds = array<i64: 1, 128>}, {pipeline_mode = #tpu.pipeline_mode<synchronous>, transform_indices = @transform_7, window_bounds = array<i64: 1, 128>}, {transform_indices = @transform_8, window_bounds = array<i64: 1, 8, 256>}]} {
    %c0 = arith.constant 0 : index
    %c0_0 = arith.constant 0 : index
    %c0_1 = arith.constant 0 : index
    %0 = vector.load %arg1[%c0, %c0_0, %c0_1] : memref<8x512x64xf32, #tpu.memory_space<vmem>>, vector<8x512x64xf32>
    %1 = arith.truncf %0 : vector<8x512x64xf32> to vector<8x512x64xbf16>
    %2 = vector.extract_strided_slice %1 {offsets = [0, 0, 0], sizes = [1, 512, 64], strides = [1, 1, 1]} : vector<8x512x64xbf16> to vector<1x512x64xbf16>
    %3 = vector.shape_cast %2 : vector<1x512x64xbf16> to vector<512x64xbf16>
    %4 = tpu.transpose %3, [1, 0] : vector<512x64xbf16> -> vector<64x512xbf16>
    %5 = vector.extract_strided_slice %1 {offsets = [1, 0, 0], sizes = [1, 512, 64], strides = [1, 1, 1]} : vector<8x512x64xbf16> to vector<1x512x64xbf16>
    %6 = vector.shape_cast %5 : vector<1x512x64xbf16> to vector<512x64xbf16>
    %7 = tpu.transpose %6, [1, 0] : vector<512x64xbf16> -> vector<64x512xbf16>
    %8 = vector.extract_strided_slice %1 {offsets = [2, 0, 0], sizes = [1, 512, 64], strides = [1, 1, 1]} : vector<8x512x64xbf16> to vector<1x512x64xbf16>
    %9 = vector.shape_cast %8 : vector<1x512x64xbf16> to vector<512x64xbf16>
    %10 = tpu.transpose %9, [1, 0] : vector<512x64xbf16> -> vector<64x512xbf16>
    %11 = vector.extract_strided_slice %1 {offsets = [3, 0, 0], sizes = [1, 512, 64], strides = [1, 1, 1]} : vector<8x512x64xbf16> to vector<1x512x64xbf16>
    %12 = vector.shape_cast %11 : vector<1x512x64xbf16> to vector<512x64xbf16>
    %13 = tpu.transpose %12, [1, 0] : vector<512x64xbf16> -> vector<64x512xbf16>
    %14 = vector.extract_strided_slice %1 {offsets = [4, 0, 0], sizes = [1, 512, 64], strides = [1, 1, 1]} : vector<8x512x64xbf16> to vector<1x512x64xbf16>
    %15 = vector.shape_cast %14 : vector<1x512x64xbf16> to vector<512x64xbf16>
    %16 = tpu.transpose %15, [1, 0] : vector<512x64xbf16> -> vector<64x512xbf16>
    %17 = vector.extract_strided_slice %1 {offsets = [5, 0, 0], sizes = [1, 512, 64], strides = [1, 1, 1]} : vector<8x512x64xbf16> to vector<1x512x64xbf16>
    %18 = vector.shape_cast %17 : vector<1x512x64xbf16> to vector<512x64xbf16>
    %19 = tpu.transpose %18, [1, 0] : vector<512x64xbf16> -> vector<64x512xbf16>
    %20 = vector.extract_strided_slice %1 {offsets = [6, 0, 0], sizes = [1, 512, 64], strides = [1, 1, 1]} : vector<8x512x64xbf16> to vector<1x512x64xbf16>
    %21 = vector.shape_cast %20 : vector<1x512x64xbf16> to vector<512x64xbf16>
    %22 = tpu.transpose %21, [1, 0] : vector<512x64xbf16> -> vector<64x512xbf16>
    %23 = vector.extract_strided_slice %1 {offsets = [7, 0, 0], sizes = [1, 512, 64], strides = [1, 1, 1]} : vector<8x512x64xbf16> to vector<1x512x64xbf16>
    %24 = vector.shape_cast %23 : vector<1x512x64xbf16> to vector<512x64xbf16>
    %25 = tpu.transpose %24, [1, 0] : vector<512x64xbf16> -> vector<64x512xbf16>
    %26 = tpu.concatenate %4, %7, %10, %13, %16, %19, %22, %25 in 0 : vector<64x512xbf16>, vector<64x512xbf16>, vector<64x512xbf16>, vector<64x512xbf16>, vector<64x512xbf16>, vector<64x512xbf16>, vector<64x512xbf16>, vector<64x512xbf16> -> vector<512x512xbf16>
    %c0_2 = arith.constant 0 : index
    %c0_3 = arith.constant 0 : index
    %27 = vector.load %arg2[%c0_2, %c0_3] : memref<512x512xbf16, #tpu.memory_space<vmem>>, vector<512x512xbf16>
    %cst = arith.constant dense<0.000000e+00> : vector<512x512xf32>
    %28 = tpu.matmul %26, %27, %cst {dimension_numbers = #tpu.dot_dimension_numbers<[1], [0], [0], [1], [0, 0, 1, 1], [], []>} : vector<512x512xbf16>, vector<512x512xbf16>, vector<512x512xf32> -> vector<512x512xf32>
    %c0_4 = arith.constant 0 : index
    %c0_5 = arith.constant 0 : index
    %29 = vector.load %arg3[%c0_4, %c0_5] : memref<1x512xf32, #tpu.memory_space<vmem>>, vector<1x512xf32>
    %30 = vector.broadcast %29 : vector<1x512xf32> to vector<512x512xf32>
    %31 = arith.addf %28, %30 : vector<512x512xf32>
    %cst_6 = arith.constant 0.000000e+00 : f32
    %32 = vector.broadcast %cst_6 : f32 to vector<512x512xf32>
    %33 = arith.maximumf %31, %32 : vector<512x512xf32>
    %34 = vector.shape_cast %33 : vector<512x512xf32> to vector<8x64x512xf32>
    %cst_7 = arith.constant dense<0.000000e+00> : vector<8x512xf32>
    %35 = vector.multi_reduction <add>, %34, %cst_7 [1] : vector<8x64x512xf32> to vector<8x512xf32>
    %cst_8 = arith.constant 1.562500e-02 : f32
    %36 = vector.broadcast %cst_8 : f32 to vector<8x512xf32>
    %37 = arith.mulf %35, %36 : vector<8x512xf32>
    %cst_9 = arith.constant dense<0xFF800000> : vector<8x512xf32>
    %38 = vector.multi_reduction <maximumf>, %34, %cst_9 [1] : vector<8x64x512xf32> to vector<8x512xf32>
    %39 = tpu.concatenate %37, %38 in 0 : vector<8x512xf32>, vector<8x512xf32> -> vector<16x512xf32>
    %40 = arith.truncf %39 : vector<16x512xf32> to vector<16x512xbf16>
    %c0_10 = arith.constant 0 : index
    %c0_11 = arith.constant 0 : index
    %41 = vector.load %arg4[%c0_10, %c0_11] : memref<512x256xbf16, #tpu.memory_space<vmem>>, vector<512x256xbf16>
    %cst_12 = arith.constant dense<0.000000e+00> : vector<16x256xf32>
    %42 = tpu.matmul %40, %41, %cst_12 {dimension_numbers = #tpu.dot_dimension_numbers<[1], [0], [0], [1], [0, 0, 1, 1], [], []>} : vector<16x512xbf16>, vector<512x256xbf16>, vector<16x256xf32> -> vector<16x256xf32>
    %43 = vector.extract_strided_slice %42 {offsets = [0, 0], sizes = [8, 128], strides = [1, 1]} : vector<16x256xf32> to vector<8x128xf32>
    %c0_13 = arith.constant 0 : index
    %c0_14 = arith.constant 0 : index
    %44 = vector.load %arg5[%c0_13, %c0_14] : memref<1x128xf32, #tpu.memory_space<vmem>>, vector<1x128xf32>
    %45 = vector.broadcast %44 : vector<1x128xf32> to vector<8x128xf32>
    %46 = arith.mulf %43, %45 : vector<8x128xf32>
    %c0_15 = arith.constant 0 : index
    %c0_16 = arith.constant 0 : index
    %47 = vector.load %arg6[%c0_15, %c0_16] : memref<1x128xf32, #tpu.memory_space<vmem>>, vector<1x128xf32>
    %48 = vector.broadcast %47 : vector<1x128xf32> to vector<8x128xf32>
    %49 = arith.addf %46, %48 : vector<8x128xf32>
    %50 = vector.extract_strided_slice %42 {offsets = [8, 128], sizes = [8, 128], strides = [1, 1]} : vector<16x256xf32> to vector<8x128xf32>
    %c0_17 = arith.constant 0 : index
    %c0_18 = arith.constant 0 : index
    %51 = vector.load %arg7[%c0_17, %c0_18] : memref<1x128xf32, #tpu.memory_space<vmem>>, vector<1x128xf32>
    %52 = vector.broadcast %51 : vector<1x128xf32> to vector<8x128xf32>
    %53 = arith.mulf %50, %52 : vector<8x128xf32>
    %c0_19 = arith.constant 0 : index
    %c0_20 = arith.constant 0 : index
    %54 = vector.load %arg8[%c0_19, %c0_20] : memref<1x128xf32, #tpu.memory_space<vmem>>, vector<1x128xf32>
    %55 = vector.broadcast %54 : vector<1x128xf32> to vector<8x128xf32>
    %56 = arith.addf %53, %55 : vector<8x128xf32>
    %57 = tpu.concatenate %49, %56 in 1 : vector<8x128xf32>, vector<8x128xf32> -> vector<8x256xf32>
    %c0_21 = arith.constant 0 : index
    %c0_22 = arith.constant 0 : index
    %c0_23 = arith.constant 0 : index
    %58 = vector.load %arg9[%c0_21, %c0_22, %c0_23] : memref<1x8x256xf32, #tpu.memory_space<vmem>>, vector<1x8x256xf32>
    %59 = vector.shape_cast %58 : vector<1x8x256xf32> to vector<8x256xf32>
    %60 = vector.shape_cast %57 : vector<8x256xf32> to vector<1x8x256xf32>
    tpu.vector_store %arg9[%c0_21, %c0_22, %c0_23], %60 {strides = array<i32>} : memref<1x8x256xf32, #tpu.memory_space<vmem>>, vector<1x8x256xf32>,
    return
  }
  func.func @transform_0(%arg0: i32) -> (i32, i32, i32) {
    %c0_i32 = arith.constant 0 : i32
    %c0_i32_0 = arith.constant 0 : i32
    %c0_i32_1 = arith.constant 0 : i32
    return %arg0, %c0_i32, %c0_i32_0 : i32, i32, i32
  }
  func.func @transform_1(%arg0: i32) -> (i32, i32) {
    %c0_i32 = arith.constant 0 : i32
    %c0_i32_0 = arith.constant 0 : i32
    %c0_i32_1 = arith.constant 0 : i32
    return %c0_i32, %c0_i32_0 : i32, i32
  }
  func.func @transform_2(%arg0: i32) -> (i32, i32) {
    %c0_i32 = arith.constant 0 : i32
    %c0_i32_0 = arith.constant 0 : i32
    %c0_i32_1 = arith.constant 0 : i32
    return %c0_i32, %c0_i32_0 : i32, i32
  }
  func.func @transform_3(%arg0: i32) -> (i32, i32) {
    %c0_i32 = arith.constant 0 : i32
    %c0_i32_0 = arith.constant 0 : i32
    %c0_i32_1 = arith.constant 0 : i32
    return %c0_i32, %c0_i32_0 : i32, i32
  }
  func.func @transform_4(%arg0: i32) -> (i32, i32) {
    %c0_i32 = arith.constant 0 : i32
    %c0_i32_0 = arith.constant 0 : i32
    %c0_i32_1 = arith.constant 0 : i32
    return %c0_i32, %c0_i32_0 : i32, i32
  }
  func.func @transform_5(%arg0: i32) -> (i32, i32) {
    %c0_i32 = arith.constant 0 : i32
    %c0_i32_0 = arith.constant 0 : i32
    %c0_i32_1 = arith.constant 0 : i32
    return %c0_i32, %c0_i32_0 : i32, i32
  }
  func.func @transform_6(%arg0: i32) -> (i32, i32) {
    %c0_i32 = arith.constant 0 : i32
    %c0_i32_0 = arith.constant 0 : i32
    %c0_i32_1 = arith.constant 0 : i32
    return %c0_i32, %c0_i32_0 : i32, i32
  }
  func.func @transform_7(%arg0: i32) -> (i32, i32) {
    %c0_i32 = arith.constant 0 : i32
    %c0_i32_0 = arith.constant 0 : i32
    %c0_i32_1 = arith.constant 0 : i32
    return %c0_i32, %c0_i32_0 : i32, i32
  }
  func.func @transform_8(%arg0: i32) -> (i32, i32, i32) {
    %c0_i32 = arith.constant 0 : i32
    %c0_i32_0 = arith.constant 0 : i32
    %c0_i32_1 = arith.constant 0 : i32
    return %arg0, %c0_i32, %c0_i32_0 : i32, i32, i32
  }
}

</mosaic_0001>

<llo_original>
// kernel: tpu_custom_call.1
$region0: #{tpu_custom_call.1}
  #allocation0 [shape = 'u32[]', space=smem, size = 0x4, offset = 0x4, fixed_abs, tag = 'smem constant byte address 0x4 - core index']
  #allocation1 [shape = 'u32[144,128]{1,0:T(1,128)}', space=vmem, size = 0x12000, scoped, tag = 'internal scratch']
  %s0 = inlined_call_operand.vmem [shape: f32[8,512,64], index: 0, kind: input, shape index: {}]
  %s1 = inlined_call_operand.vmem [shape: bf16[512,512], index: 1, kind: input, shape index: {}]
  %s2 = inlined_call_operand.vmem [shape: f32[1,512], index: 2, kind: input, shape index: {}]
  %s3 = inlined_call_operand.vmem [shape: bf16[512,256], index: 3, kind: input, shape index: {}]
  %s4 = inlined_call_operand.vmem [shape: f32[1,128], index: 4, kind: input, shape index: {}]
  %s5 = inlined_call_operand.vmem [shape: f32[1,128], index: 5, kind: input, shape index: {}]
  %s6 = inlined_call_operand.vmem [shape: f32[1,128], index: 6, kind: input, shape index: {}]
  %s7 = inlined_call_operand.vmem [shape: f32[1,128], index: 7, kind: input, shape index: {}]
  %s8 = inlined_call_operand.hbm [shape: f32[1,8,256], index: 8, kind: output, shape index: {}]
  %s9 = sld [smem:[#allocation0]]
  $region42: #{tpu_custom_call.1} parent=0
    _
  %s11 = ssub.s32 1, %s9
  %s12 = scalar_select 0, %s11, %s9
  $region1: #{tpu_custom_call.1} parent=0
    #allocation2 [shape = 'u8[8192]{0}', space=vmem, size = 0x2000, scoped, tag = 'output window, operand 0, single buffered']
    #allocation3 [shape = 's32[1]{0}', space=sflag, size = 0x4, scoped, tag = 'scoped memory for tpu_custom_call.1']
    %13 = vsyncpa [#allocation3], 0
    // Predicated region
    $region2: #{tpu_custom_call.1} parent=1 // pred_check
      _
    $region3: #{tpu_custom_call.1} parent=1 // pred_check_branch
      %15 = sbr.rel (0) target = $region5
    $region4: #{tpu_custom_call.1} parent=1 // pred_region
      _
    $region5: #{tpu_custom_call.1} parent=1 // pred_fallthru
      _
    // Predicated region
    $region6: #{tpu_custom_call.1} parent=1 // pred_check
      _
    $region7: #{tpu_custom_call.1} parent=1 // pred_check_branch
      %17 = sbr.rel (0) target = $region9
    $region8: #{tpu_custom_call.1} parent=1 // pred_region
      _
    $region9: #{tpu_custom_call.1} parent=1 // pred_fallthru
      _
    // Predicated region
    $region10: #{tpu_custom_call.1} parent=1 // pred_check
      _
    $region11: #{tpu_custom_call.1} parent=1 // pred_check_branch
      %19 = sbr.rel (0) target = $region13
    $region12: #{tpu_custom_call.1} parent=1 // pred_region
      _
    $region13: #{tpu_custom_call.1} parent=1 // pred_fallthru
      _
    // Predicated region
    $region14: #{tpu_custom_call.1} parent=1 // pred_check
      _
    $region15: #{tpu_custom_call.1} parent=1 // pred_check_branch
      %21 = sbr.rel (0) target = $region17
    $region16: #{tpu_custom_call.1} parent=1 // pred_region
      _
    $region17: #{tpu_custom_call.1} parent=1 // pred_fallthru
      _
    // Predicated region
    $region18: #{tpu_custom_call.1} parent=1 // pred_check
      _
    $region19: #{tpu_custom_call.1} parent=1 // pred_check_branch
      %23 = sbr.rel (0) target = $region21
    $region20: #{tpu_custom_call.1} parent=1 // pred_region
      _
    $region21: #{tpu_custom_call.1} parent=1 // pred_fallthru
      _
    // Predicated region
    $region22: #{tpu_custom_call.1} parent=1 // pred_check
      _
    $region23: #{tpu_custom_call.1} parent=1 // pred_check_branch
      %25 = sbr.rel (0) target = $region25
    $region24: #{tpu_custom_call.1} parent=1 // pred_region
      _
    $region25: #{tpu_custom_call.1} parent=1 // pred_fallthru
      _
    // Predicated region
    $region26: #{tpu_custom_call.1} parent=1 // pred_check
      _
    $region27: #{tpu_custom_call.1} parent=1 // pred_check_branch
      %27 = sbr.rel (0) target = $region29
    $region28: #{tpu_custom_call.1} parent=1 // pred_region
      _
    $region29: #{tpu_custom_call.1} parent=1 // pred_fallthru
      _
    // Predicated region
    $region30: #{tpu_custom_call.1} parent=1 // pred_check
      _
    $region31: #{tpu_custom_call.1} parent=1 // pred_check_branch
      %29 = sbr.rel (0) target = $region33
    $region32: #{tpu_custom_call.1} parent=1 // pred_region
      _
    $region33: #{tpu_custom_call.1} parent=1 // pred_fallthru
      _
    %v30 = vld [vmem:[%s0] sm:$0xff]
    %v31 = vld [vmem:[%s0 + $0x8] sm:$0xff]
    %v32 = vld [vmem:[%s0 + $0x10] sm:$0xff]
    %v33 = vld [vmem:[%s0 + $0x18] sm:$0xff]
    %v34 = vld [vmem:[%s0 + $0x20] sm:$0xff]
    %v35 = vld [vmem:[%s0 + $0x28] sm:$0xff]
    %v36 = vld [vmem:[%s0 + $0x30] sm:$0xff]
    %v37 = vld [vmem:[%s0 + $0x38] sm:$0xff]
    %v38 = vld [vmem:[%s0 + $0x40] sm:$0xff]
    %v39 = vld [vmem:[%s0 + $0x48] sm:$0xff]
    %v40 = vld [vmem:[%s0 + $0x50] sm:$0xff]
    %v41 = vld [vmem:[%s0 + $0x58] sm:$0xff]
    %v42 = vld [vmem:[%s0 + $0x60] sm:$0xff]
    %v43 = vld [vmem:[%s0 + $0x68] sm:$0xff]
    %v44 = vld [vmem:[%s0 + $0x70] sm:$0xff]
    %v45 = vld [vmem:[%s0 + $0x78] sm:$0xff]
    %v46 = vld [vmem:[%s0 + $0x80] sm:$0xff]
    %v47 = vld [vmem:[%s0 + $0x88] sm:$0xff]
    %v48 = vld [vmem:[%s0 + $0x90] sm:$0xff]
    %v49 = vld [vmem:[%s0 + $0x98] sm:$0xff]
    %v50 = vld [vmem:[%s0 + $0xa0] sm:$0xff]
    %v51 = vld [vmem:[%s0 + $0xa8] sm:$0xff]
    %v52 = vld [vmem:[%s0 + $0xb0] sm:$0xff]
    %v53 = vld [vmem:[%s0 + $0xb8] sm:$0xff]
    %v54 = vld [vmem:[%s0 + $0xc0] sm:$0xff]
    %v55 = vld [vmem:[%s0 + $0xc8] sm:$0xff]
    %v56 = vld [vmem:[%s0 + $0xd0] sm:$0xff]
    %v57 = vld [vmem:[%s0 + $0xd8] sm:$0xff]
    %v58 = vld [vmem:[%s0 + $0xe0] sm:$0xff]
    %v59 = vld [vmem:[%s0 + $0xe8] sm:$0xff]
    %v60 = vld [vmem:[%s0 + $0xf0] sm:$0xff]
    %v61 = vld [vmem:[%s0 + $0xf8] sm:$0xff]
    %v62 = vld [vmem:[%s0 + $0x100] sm:$0xff]
    %v63 = vld [vmem:[%s0 + $0x108] sm:$0xff]
    %v64 = vld [vmem:[%s0 + $0x110] sm:$0xff]
    %v65 = vld [vmem:[%s0 + $0x118] sm:$0xff]
    %v66 = vld [vmem:[%s0 + $0x120] sm:$0xff]
    %v67 = vld [vmem:[%s0 + $0x128] sm:$0xff]
    %v68 = vld [vmem:[%s0 + $0x130] sm:$0xff]
    %v69 = vld [vmem:[%s0 + $0x138] sm:$0xff]
    %v70 = vld [vmem:[%s0 + $0x140] sm:$0xff]
    %v71 = vld [vmem:[%s0 + $0x148] sm:$0xff]
    %v72 = vld [vmem:[%s0 + $0x150] sm:$0xff]
    %v73 = vld [vmem:[%s0 + $0x158] sm:$0xff]
    %v74 = vld [vmem:[%s0 + $0x160] sm:$0xff]
    %v75 = vld [vmem:[%s0 + $0x168] sm:$0xff]
    %v76 = vld [vmem:[%s0 + $0x170] sm:$0xff]
    %v77 = vld [vmem:[%s0 + $0x178] sm:$0xff]
    %v78 = vld [vmem:[%s0 + $0x180] sm:$0xff]
    %v79 = vld [vmem:[%s0 + $0x188] sm:$0xff]
    %v80 = vld [vmem:[%s0 + $0x190] sm:$0xff]
    %v81 = vld [vmem:[%s0 + $0x198] sm:$0xff]
    %v82 = vld [vmem:[%s0 + $0x1a0] sm:$0xff]
    %v83 = vld [vmem:[%s0 + $0x1a8] sm:$0xff]
    %v84 = vld [vmem:[%s0 + $0x1b0] sm:$0xff]
    %v85 = vld [vmem:[%s0 + $0x1b8] sm:$0xff]
    %v86 = vld [vmem:[%s0 + $0x1c0] sm:$0xff]
    %v87 = vld [vmem:[%s0 + $0x1c8] sm:$0xff]
    %v88 = vld [vmem:[%s0 + $0x1d0] sm:$0xff]
    %v89 = vld [vmem:[%s0 + $0x1d8] sm:$0xff]
    %v90 = vld [vmem:[%s0 + $0x1e0] sm:$0xff]
    %v91 = vld [vmem:[%s0 + $0x1e8] sm:$0xff]
    %v92 = vld [vmem:[%s0 + $0x1f0] sm:$0xff]
    %v93 = vld [vmem:[%s0 + $0x1f8] sm:$0xff]
    %v94 = vld [vmem:[%s0 + $0x200] sm:$0xff]
    %v95 = vld [vmem:[%s0 + $0x208] sm:$0xff]
    %v96 = vld [vmem:[%s0 + $0x210] sm:$0xff]
    %v97 = vld [vmem:[%s0 + $0x218] sm:$0xff]
    %v98 = vld [vmem:[%s0 + $0x220] sm:$0xff]
    %v99 = vld [vmem:[%s0 + $0x228] sm:$0xff]
    %v100 = vld [vmem:[%s0 + $0x230] sm:$0xff]
    %v101 = vld [vmem:[%s0 + $0x238] sm:$0xff]
    %v102 = vld [vmem:[%s0 + $0x240] sm:$0xff]
    %v103 = vld [vmem:[%s0 + $0x248] sm:$0xff]
    %v104 = vld [vmem:[%s0 + $0x250] sm:$0xff]
    %v105 = vld [vmem:[%s0 + $0x258] sm:$0xff]
    %v106 = vld [vmem:[%s0 + $0x260] sm:$0xff]
    %v107 = vld [vmem:[%s0 + $0x268] sm:$0xff]
    %v108 = vld [vmem:[%s0 + $0x270] sm:$0xff]
    %v109 = vld [vmem:[%s0 + $0x278] sm:$0xff]
    %v110 = vld [vmem:[%s0 + $0x280] sm:$0xff]
    %v111 = vld [vmem:[%s0 + $0x288] sm:$0xff]
    %v112 = vld [vmem:[%s0 + $0x290] sm:$0xff]
    %v113 = vld [vmem:[%s0 + $0x298] sm:$0xff]
    %v114 = vld [vmem:[%s0 + $0x2a0] sm:$0xff]
    %v115 = vld [vmem:[%s0 + $0x2a8] sm:$0xff]
    %v116 = vld [vmem:[%s0 + $0x2b0] sm:$0xff]
    %v117 = vld [vmem:[%s0 + $0x2b8] sm:$0xff]
    %v118 = vld [vmem:[%s0 + $0x2c0] sm:$0xff]
    %v119 = vld [vmem:[%s0 + $0x2c8] sm:$0xff]
    %v120 = vld [vmem:[%s0 + $0x2d0] sm:$0xff]
    %v121 = vld [vmem:[%s0 + $0x2d8] sm:$0xff]
    %v122 = vld [vmem:[%s0 + $0x2e0] sm:$0xff]
    %v123 = vld [vmem:[%s0 + $0x2e8] sm:$0xff]
    %v124 = vld [vmem:[%s0 + $0x2f0] sm:$0xff]
    %v125 = vld [vmem:[%s0 + $0x2f8] sm:$0xff]
    %v126 = vld [vmem:[%s0 + $0x300] sm:$0xff]
    %v127 = vld [vmem:[%s0 + $0x308] sm:$0xff]
    %v128 = vld [vmem:[%s0 + $0x310] sm:$0xff]
    %v129 = vld [vmem:[%s0 + $0x318] sm:$0xff]
    %v130 = vld [vmem:[%s0 + $0x320] sm:$0xff]
    %v131 = vld [vmem:[%s0 + $0x328] sm:$0xff]
    %v132 = vld [vmem:[%s0 + $0x330] sm:$0xff]
    %v133 = vld [vmem:[%s0 + $0x338] sm:$0xff]
    %v134 = vld [vmem:[%s0 + $0x340] sm:$0xff]
    %v135 = vld [vmem:[%s0 + $0x348] sm:$0xff]
    %v136 = vld [vmem:[%s0 + $0x350] sm:$0xff]
    %v137 = vld [vmem:[%s0 + $0x358] sm:$0xff]
    %v138 = vld [vmem:[%s0 + $0x360] sm:$0xff]
    %v139 = vld [vmem:[%s0 + $0x368] sm:$0xff]
    %v140 = vld [vmem:[%s0 + $0x370] sm:$0xff]
    %v141 = vld [vmem:[%s0 + $0x378] sm:$0xff]
    %v142 = vld [vmem:[%s0 + $0x380] sm:$0xff]
    %v143 = vld [vmem:[%s0 + $0x388] sm:$0xff]
    %v144 = vld [vmem:[%s0 + $0x390] sm:$0xff]
    %v145 = vld [vmem:[%s0 + $0x398] sm:$0xff]
    %v146 = vld [vmem:[%s0 + $0x3a0] sm:$0xff]
    %v147 = vld [vmem:[%s0 + $0x3a8] sm:$0xff]
    %v148 = vld [vmem:[%s0 + $0x3b0] sm:$0xff]
    %v149 = vld [vmem:[%s0 + $0x3b8] sm:$0xff]
    %v150 = vld [vmem:[%s0 + $0x3c0] sm:$0xff]
    %v151 = vld [vmem:[%s0 + $0x3c8] sm:$0xff]
    %v152 = vld [vmem:[%s0 + $0x3d0] sm:$0xff]
    %v153 = vld [vmem:[%s0 + $0x3d8] sm:$0xff]
    %v154 = vld [vmem:[%s0 + $0x3e0] sm:$0xff]
    %v155 = vld [vmem:[%s0 + $0x3e8] sm:$0xff]
    %v156 = vld [vmem:[%s0 + $0x3f0] sm:$0xff]
    %v157 = vld [vmem:[%s0 + $0x3f8] sm:$0xff]
    %v158 = vld [vmem:[%s0 + $0x400] sm:$0xff]
    %v159 = vld [vmem:[%s0 + $0x408] sm:$0xff]
    %v160 = vld [vmem:[%s0 + $0x410] sm:$0xff]
    %v161 = vld [vmem:[%s0 + $0x418] sm:$0xff]
    %v162 = vld [vmem:[%s0 + $0x420] sm:$0xff]
    %v163 = vld [vmem:[%s0 + $0x428] sm:$0xff]
    %v164 = vld [vmem:[%s0 + $0x430] sm:$0xff]
    %v165 = vld [vmem:[%s0 + $0x438] sm:$0xff]
    %v166 = vld [vmem:[%s0 + $0x440] sm:$0xff]
    %v167 = vld [vmem:[%s0 + $0x448] sm:$0xff]
    %v168 = vld [vmem:[%s0 + $0x450] sm:$0xff]
    %v169 = vld [vmem:[%s0 + $0x458] sm:$0xff]
    %v170 = vld [vmem:[%s0 + $0x460] sm:$0xff]
    %v171 = vld [vmem:[%s0 + $0x468] sm:$0xff]
    %v172 = vld [vmem:[%s0 + $0x470] sm:$0xff]
    %v173 = vld [vmem:[%s0 + $0x478] sm:$0xff]
    %v174 = vld [vmem:[%s0 + $0x480] sm:$0xff]
    %v175 = vld [vmem:[%s0 + $0x488] sm:$0xff]
    %v176 = vld [vmem:[%s0 + $0x490] sm:$0xff]
    %v177 = vld [vmem:[%s0 + $0x498] sm:$0xff]
    %v178 = vld [vmem:[%s0 + $0x4a0] sm:$0xff]
    %v179 = vld [vmem:[%s0 + $0x4a8] sm:$0xff]
    %v180 = vld [vmem:[%s0 + $0x4b0] sm:$0xff]
    %v181 = vld [vmem:[%s0 + $0x4b8] sm:$0xff]
    %v182 = vld [vmem:[%s0 + $0x4c0] sm:$0xff]
    %v183 = vld [vmem:[%s0 + $0x4c8] sm:$0xff]
    %v184 = vld [vmem:[%s0 + $0x4d0] sm:$0xff]
    %v185 = vld [vmem:[%s0 + $0x4d8] sm:$0xff]
    %v186 = vld [vmem:[%s0 + $0x4e0] sm:$0xff]
    %v187 = vld [vmem:[%s0 + $0x4e8] sm:$0xff]
    %v188 = vld [vmem:[%s0 + $0x4f0] sm:$0xff]
    %v189 = vld [vmem:[%s0 + $0x4f8] sm:$0xff]
    %v190 = vld [vmem:[%s0 + $0x500] sm:$0xff]
    %v191 = vld [vmem:[%s0 + $0x508] sm:$0xff]
    %v192 = vld [vmem:[%s0 + $0x510] sm:$0xff]
    %v193 = vld [vmem:[%s0 + $0x518] sm:$0xff]
    %v194 = vld [vmem:[%s0 + $0x520] sm:$0xff]
    %v195 = vld [vmem:[%s0 + $0x528] sm:$0xff]
    %v196 = vld [vmem:[%s0 + $0x530] sm:$0xff]
    %v197 = vld [vmem:[%s0 + $0x538] sm:$0xff]
    %v198 = vld [vmem:[%s0 + $0x540] sm:$0xff]
    %v199 = vld [vmem:[%s0 + $0x548] sm:$0xff]
    %v200 = vld [vmem:[%s0 + $0x550] sm:$0xff]
    %v201 = vld [vmem:[%s0 + $0x558] sm:$0xff]
    %v202 = vld [vmem:[%s0 + $0x560] sm:$0xff]
    %v203 = vld [vmem:[%s0 + $0x568] sm:$0xff]
    %v204 = vld [vmem:[%s0 + $0x570] sm:$0xff]
    %v205 = vld [vmem:[%s0 + $0x578] sm:$0xff]
    %v206 = vld [vmem:[%s0 + $0x580] sm:$0xff]
    %v207 = vld [vmem:[%s0 + $0x588] sm:$0xff]
    %v208 = vld [vmem:[%s0 + $0x590] sm:$0xff]
    %v209 = vld [vmem:[%s0 + $0x598] sm:$0xff]
    %v210 = vld [vmem:[%s0 + $0x5a0] sm:$0xff]
    %v211 = vld [vmem:[%s0 + $0x5a8] sm:$0xff]
    %v212 = vld [vmem:[%s0 + $0x5b0] sm:$0xff]
    %v213 = vld [vmem:[%s0 + $0x5b8] sm:$0xff]
    %v214 = vld [vmem:[%s0 + $0x5c0] sm:$0xff]
    %v215 = vld [vmem:[%s0 + $0x5c8] sm:$0xff]
    %v216 = vld [vmem:[%s0 + $0x5d0] sm:$0xff]
    %v217 = vld [vmem:[%s0 + $0x5d8] sm:$0xff]
    %v218 = vld [vmem:[%s0 + $0x5e0] sm:$0xff]
    %v219 = vld [vmem:[%s0 + $0x5e8] sm:$0xff]
    %v220 = vld [vmem:[%s0 + $0x5f0] sm:$0xff]
    %v221 = vld [vmem:[%s0 + $0x5f8] sm:$0xff]
    %v222 = vld [vmem:[%s0 + $0x600] sm:$0xff]
    %v223 = vld [vmem:[%s0 + $0x608] sm:$0xff]
    %v224 = vld [vmem:[%s0 + $0x610] sm:$0xff]
    %v225 = vld [vmem:[%s0 + $0x618] sm:$0xff]
    %v226 = vld [vmem:[%s0 + $0x620] sm:$0xff]
    %v227 = vld [vmem:[%s0 + $0x628] sm:$0xff]
    %v228 = vld [vmem:[%s0 + $0x630] sm:$0xff]
    %v229 = vld [vmem:[%s0 + $0x638] sm:$0xff]
    %v230 = vld [vmem:[%s0 + $0x640] sm:$0xff]
    %v231 = vld [vmem:[%s0 + $0x648] sm:$0xff]
    %v232 = vld [vmem:[%s0 + $0x650] sm:$0xff]
    %v233 = vld [vmem:[%s0 + $0x658] sm:$0xff]
    %v234 = vld [vmem:[%s0 + $0x660] sm:$0xff]
    %v235 = vld [vmem:[%s0 + $0x668] sm:$0xff]
    %v236 = vld [vmem:[%s0 + $0x670] sm:$0xff]
    %v237 = vld [vmem:[%s0 + $0x678] sm:$0xff]
    %v238 = vld [vmem:[%s0 + $0x680] sm:$0xff]
    %v239 = vld [vmem:[%s0 + $0x688] sm:$0xff]
    %v240 = vld [vmem:[%s0 + $0x690] sm:$0xff]
    %v241 = vld [vmem:[%s0 + $0x698] sm:$0xff]
    %v242 = vld [vmem:[%s0 + $0x6a0] sm:$0xff]
    %v243 = vld [vmem:[%s0 + $0x6a8] sm:$0xff]
    %v244 = vld [vmem:[%s0 + $0x6b0] sm:$0xff]
    %v245 = vld [vmem:[%s0 + $0x6b8] sm:$0xff]
    %v246 = vld [vmem:[%s0 + $0x6c0] sm:$0xff]
    %v247 = vld [vmem:[%s0 + $0x6c8] sm:$0xff]
    %v248 = vld [vmem:[%s0 + $0x6d0] sm:$0xff]
    %v249 = vld [vmem:[%s0 + $0x6d8] sm:$0xff]
    %v250 = vld [vmem:[%s0 + $0x6e0] sm:$0xff]
    %v251 = vld [vmem:[%s0 + $0x6e8] sm:$0xff]
    %v252 = vld [vmem:[%s0 + $0x6f0] sm:$0xff]
    %v253 = vld [vmem:[%s0 + $0x6f8] sm:$0xff]
    %v254 = vld [vmem:[%s0 + $0x700] sm:$0xff]
    %v255 = vld [vmem:[%s0 + $0x708] sm:$0xff]
    %v256 = vld [vmem:[%s0 + $0x710] sm:$0xff]
    %v257 = vld [vmem:[%s0 + $0x718] sm:$0xff]
    %v258 = vld [vmem:[%s0 + $0x720] sm:$0xff]
    %v259 = vld [vmem:[%s0 + $0x728] sm:$0xff]
    %v260 = vld [vmem:[%s0 + $0x730] sm:$0xff]
    %v261 = vld [vmem:[%s0 + $0x738] sm:$0xff]
    %v262 = vld [vmem:[%s0 + $0x740] sm:$0xff]
    %v263 = vld [vmem:[%s0 + $0x748] sm:$0xff]
    %v264 = vld [vmem:[%s0 + $0x750] sm:$0xff]
    %v265 = vld [vmem:[%s0 + $0x758] sm:$0xff]
    %v266 = vld [vmem:[%s0 + $0x760] sm:$0xff]
    %v267 = vld [vmem:[%s0 + $0x768] sm:$0xff]
    %v268 = vld [vmem:[%s0 + $0x770] sm:$0xff]
    %v269 = vld [vmem:[%s0 + $0x778] sm:$0xff]
    %v270 = vld [vmem:[%s0 + $0x780] sm:$0xff]
    %v271 = vld [vmem:[%s0 + $0x788] sm:$0xff]
    %v272 = vld [vmem:[%s0 + $0x790] sm:$0xff]
    %v273 = vld [vmem:[%s0 + $0x798] sm:$0xff]
    %v274 = vld [vmem:[%s0 + $0x7a0] sm:$0xff]
    %v275 = vld [vmem:[%s0 + $0x7a8] sm:$0xff]
    %v276 = vld [vmem:[%s0 + $0x7b0] sm:$0xff]
    %v277 = vld [vmem:[%s0 + $0x7b8] sm:$0xff]
    %v278 = vld [vmem:[%s0 + $0x7c0] sm:$0xff]
    %v279 = vld [vmem:[%s0 + $0x7c8] sm:$0xff]
    %v280 = vld [vmem:[%s0 + $0x7d0] sm:$0xff]
    %v281 = vld [vmem:[%s0 + $0x7d8] sm:$0xff]
    %v282 = vld [vmem:[%s0 + $0x7e0] sm:$0xff]
    %v283 = vld [vmem:[%s0 + $0x7e8] sm:$0xff]
    %v284 = vld [vmem:[%s0 + $0x7f0] sm:$0xff]
    %v285 = vld [vmem:[%s0 + $0x7f8] sm:$0xff]
    %v286 = vld [vmem:[%s0 + $0x800] sm:$0xff]
    %v287 = vld [vmem:[%s0 + $0x808] sm:$0xff]
    %v288 = vld [vmem:[%s0 + $0x810] sm:$0xff]
    %v289 = vld [vmem:[%s0 + $0x818] sm:$0xff]
    %v290 = vld [vmem:[%s0 + $0x820] sm:$0xff]
    %v291 = vld [vmem:[%s0 + $0x828] sm:$0xff]
    %v292 = vld [vmem:[%s0 + $0x830] sm:$0xff]
    %v293 = vld [vmem:[%s0 + $0x838] sm:$0xff]
    %v294 = vld [vmem:[%s0 + $0x840] sm:$0xff]
    %v295 = vld [vmem:[%s0 + $0x848] sm:$0xff]
    %v296 = vld [vmem:[%s0 + $0x850] sm:$0xff]
    %v297 = vld [vmem:[%s0 + $0x858] sm:$0xff]
    %v298 = vld [vmem:[%s0 + $0x860] sm:$0xff]
    %v299 = vld [vmem:[%s0 + $0x868] sm:$0xff]
    %v300 = vld [vmem:[%s0 + $0x870] sm:$0xff]
    %v301 = vld [vmem:[%s0 + $0x878] sm:$0xff]
    %v302 = vld [vmem:[%s0 + $0x880] sm:$0xff]
    %v303 = vld [vmem:[%s0 + $0x888] sm:$0xff]
    %v304 = vld [vmem:[%s0 + $0x890] sm:$0xff]
    %v305 = vld [vmem:[%s0 + $0x898] sm:$0xff]
    %v306 = vld [vmem:[%s0 + $0x8a0] sm:$0xff]
    %v307 = vld [vmem:[%s0 + $0x8a8] sm:$0xff]
    %v308 = vld [vmem:[%s0 + $0x8b0] sm:$0xff]
    %v309 = vld [vmem:[%s0 + $0x8b8] sm:$0xff]
    %v310 = vld [vmem:[%s0 + $0x8c0] sm:$0xff]
    %v311 = vld [vmem:[%s0 + $0x8c8] sm:$0xff]
    %v312 = vld [vmem:[%s0 + $0x8d0] sm:$0xff]
    %v313 = vld [vmem:[%s0 + $0x8d8] sm:$0xff]
    %v314 = vld [vmem:[%s0 + $0x8e0] sm:$0xff]
    %v315 = vld [vmem:[%s0 + $0x8e8] sm:$0xff]
    %v316 = vld [vmem:[%s0 + $0x8f0] sm:$0xff]
    %v317 = vld [vmem:[%s0 + $0x8f8] sm:$0xff]
    %v318 = vld [vmem:[%s0 + $0x900] sm:$0xff]
    %v319 = vld [vmem:[%s0 + $0x908] sm:$0xff]
    %v320 = vld [vmem:[%s0 + $0x910] sm:$0xff]
    %v321 = vld [vmem:[%s0 + $0x918] sm:$0xff]
    %v322 = vld [vmem:[%s0 + $0x920] sm:$0xff]
    %v323 = vld [vmem:[%s0 + $0x928] sm:$0xff]
    %v324 = vld [vmem:[%s0 + $0x930] sm:$0xff]
    %v325 = vld [vmem:[%s0 + $0x938] sm:$0xff]
    %v326 = vld [vmem:[%s0 + $0x940] sm:$0xff]
    %v327 = vld [vmem:[%s0 + $0x948] sm:$0xff]
    %v328 = vld [vmem:[%s0 + $0x950] sm:$0xff]
    %v329 = vld [vmem:[%s0 + $0x958] sm:$0xff]
    %v330 = vld [vmem:[%s0 + $0x960] sm:$0xff]
    %v331 = vld [vmem:[%s0 + $0x968] sm:$0xff]
    %v332 = vld [vmem:[%s0 + $0x970] sm:$0xff]
    %v333 = vld [vmem:[%s0 + $0x978] sm:$0xff]
    %v334 = vld [vmem:[%s0 + $0x980] sm:$0xff]
    %v335 = vld [vmem:[%s0 + $0x988] sm:$0xff]
    %v336 = vld [vmem:[%s0 + $0x990] sm:$0xff]
    %v337 = vld [vmem:[%s0 + $0x998] sm:$0xff]
    %v338 = vld [vmem:[%s0 + $0x9a0] sm:$0xff]
    %v339 = vld [vmem:[%s0 + $0x9a8] sm:$0xff]
    %v340 = vld [vmem:[%s0 + $0x9b0] sm:$0xff]
    %v341 = vld [vmem:[%s0 + $0x9b8] sm:$0xff]
    %v342 = vld [vmem:[%s0 + $0x9c0] sm:$0xff]
    %v343 = vld [vmem:[%s0 + $0x9c8] sm:$0xff]
    %v344 = vld [vmem:[%s0 + $0x9d0] sm:$0xff]
    %v345 = vld [vmem:[%s0 + $0x9d8] sm:$0xff]
    %v346 = vld [vmem:[%s0 + $0x9e0] sm:$0xff]
    %v347 = vld [vmem:[%s0 + $0x9e8] sm:$0xff]
    %v348 = vld [vmem:[%s0 + $0x9f0] sm:$0xff]
    %v349 = vld [vmem:[%s0 + $0x9f8] sm:$0xff]
    %v350 = vld [vmem:[%s0 + $0xa00] sm:$0xff]
    %v351 = vld [vmem:[%s0 + $0xa08] sm:$0xff]
    %v352 = vld [vmem:[%s0 + $0xa10] sm:$0xff]
    %v353 = vld [vmem:[%s0 + $0xa18] sm:$0xff]
    %v354 = vld [vmem:[%s0 + $0xa20] sm:$0xff]
    %v355 = vld [vmem:[%s0 + $0xa28] sm:$0xff]
    %v356 = vld [vmem:[%s0 + $0xa30] sm:$0xff]
    %v357 = vld [vmem:[%s0 + $0xa38] sm:$0xff]
    %v358 = vld [vmem:[%s0 + $0xa40] sm:$0xff]
    %v359 = vld [vmem:[%s0 + $0xa48] sm:$0xff]
    %v360 = vld [vmem:[%s0 + $0xa50] sm:$0xff]
    %v361 = vld [vmem:[%s0 + $0xa58] sm:$0xff]
    %v362 = vld [vmem:[%s0 + $0xa60] sm:$0xff]
    %v363 = vld [vmem:[%s0 + $0xa68] sm:$0xff]
    %v364 = vld [vmem:[%s0 + $0xa70] sm:$0xff]
    %v365 = vld [vmem:[%s0 + $0xa78] sm:$0xff]
    %v366 = vld [vmem:[%s0 + $0xa80] sm:$0xff]
    %v367 = vld [vmem:[%s0 + $0xa88] sm:$0xff]
    %v368 = vld [vmem:[%s0 + $0xa90] sm:$0xff]
    %v369 = vld [vmem:[%s0 + $0xa98] sm:$0xff]
    %v370 = vld [vmem:[%s0 + $0xaa0] sm:$0xff]
    %v371 = vld [vmem:[%s0 + $0xaa8] sm:$0xff]
    %v372 = vld [vmem:[%s0 + $0xab0] sm:$0xff]
    %v373 = vld [vmem:[%s0 + $0xab8] sm:$0xff]
    %v374 = vld [vmem:[%s0 + $0xac0] sm:$0xff]
    %v375 = vld [vmem:[%s0 + $0xac8] sm:$0xff]
    %v376 = vld [vmem:[%s0 + $0xad0] sm:$0xff]
    %v377 = vld [vmem:[%s0 + $0xad8] sm:$0xff]
    %v378 = vld [vmem:[%s0 + $0xae0] sm:$0xff]
    %v379 = vld [vmem:[%s0 + $0xae8] sm:$0xff]
    %v380 = vld [vmem:[%s0 + $0xaf0] sm:$0xff]
    %v381 = vld [vmem:[%s0 + $0xaf8] sm:$0xff]
    %v382 = vld [vmem:[%s0 + $0xb00] sm:$0xff]
    %v383 = vld [vmem:[%s0 + $0xb08] sm:$0xff]
    %v384 = vld [vmem:[%s0 + $0xb10] sm:$0xff]
    %v385 = vld [vmem:[%s0 + $0xb18] sm:$0xff]
    %v386 = vld [vmem:[%s0 + $0xb20] sm:$0xff]
    %v387 = vld [vmem:[%s0 + $0xb28] sm:$0xff]
    %v388 = vld [vmem:[%s0 + $0xb30] sm:$0xff]
    %v389 = vld [vmem:[%s0 + $0xb38] sm:$0xff]
    %v390 = vld [vmem:[%s0 + $0xb40] sm:$0xff]
    %v391 = vld [vmem:[%s0 + $0xb48] sm:$0xff]
    %v392 = vld [vmem:[%s0 + $0xb50] sm:$0xff]
    %v393 = vld [vmem:[%s0 + $0xb58] sm:$0xff]
    %v394 = vld [vmem:[%s0 + $0xb60] sm:$0xff]
    %v395 = vld [vmem:[%s0 + $0xb68] sm:$0xff]
    %v396 = vld [vmem:[%s0 + $0xb70] sm:$0xff]
    %v397 = vld [vmem:[%s0 + $0xb78] sm:$0xff]
    %v398 = vld [vmem:[%s0 + $0xb80] sm:$0xff]
    %v399 = vld [vmem:[%s0 + $0xb88] sm:$0xff]
    %v400 = vld [vmem:[%s0 + $0xb90] sm:$0xff]
    %v401 = vld [vmem:[%s0 + $0xb98] sm:$0xff]
    %v402 = vld [vmem:[%s0 + $0xba0] sm:$0xff]
    %v403 = vld [vmem:[%s0 + $0xba8] sm:$0xff]
    %v404 = vld [vmem:[%s0 + $0xbb0] sm:$0xff]
    %v405 = vld [vmem:[%s0 + $0xbb8] sm:$0xff]
    %v406 = vld [vmem:[%s0 + $0xbc0] sm:$0xff]
    %v407 = vld [vmem:[%s0 + $0xbc8] sm:$0xff]
    %v408 = vld [vmem:[%s0 + $0xbd0] sm:$0xff]
    %v409 = vld [vmem:[%s0 + $0xbd8] sm:$0xff]
    %v410 = vld [vmem:[%s0 + $0xbe0] sm:$0xff]
    %v411 = vld [vmem:[%s0 + $0xbe8] sm:$0xff]
    %v412 = vld [vmem:[%s0 + $0xbf0] sm:$0xff]
    %v413 = vld [vmem:[%s0 + $0xbf8] sm:$0xff]
    %v414 = vld [vmem:[%s0 + $0xc00] sm:$0xff]
    %v415 = vld [vmem:[%s0 + $0xc08] sm:$0xff]
    %v416 = vld [vmem:[%s0 + $0xc10] sm:$0xff]
    %v417 = vld [vmem:[%s0 + $0xc18] sm:$0xff]
    %v418 = vld [vmem:[%s0 + $0xc20] sm:$0xff]
    %v419 = vld [vmem:[%s0 + $0xc28] sm:$0xff]
    %v420 = vld [vmem:[%s0 + $0xc30] sm:$0xff]
    %v421 = vld [vmem:[%s0 + $0xc38] sm:$0xff]
    %v422 = vld [vmem:[%s0 + $0xc40] sm:$0xff]
    %v423 = vld [vmem:[%s0 + $0xc48] sm:$0xff]
    %v424 = vld [vmem:[%s0 + $0xc50] sm:$0xff]
    %v425 = vld [vmem:[%s0 + $0xc58] sm:$0xff]
    %v426 = vld [vmem:[%s0 + $0xc60] sm:$0xff]
    %v427 = vld [vmem:[%s0 + $0xc68] sm:$0xff]
    %v428 = vld [vmem:[%s0 + $0xc70] sm:$0xff]
    %v429 = vld [vmem:[%s0 + $0xc78] sm:$0xff]
    %v430 = vld [vmem:[%s0 + $0xc80] sm:$0xff]
    %v431 = vld [vmem:[%s0 + $0xc88] sm:$0xff]
    %v432 = vld [vmem:[%s0 + $0xc90] sm:$0xff]
    %v433 = vld [vmem:[%s0 + $0xc98] sm:$0xff]
    %v434 = vld [vmem:[%s0 + $0xca0] sm:$0xff]
    %v435 = vld [vmem:[%s0 + $0xca8] sm:$0xff]
    %v436 = vld [vmem:[%s0 + $0xcb0] sm:$0xff]
    %v437 = vld [vmem:[%s0 + $0xcb8] sm:$0xff]
    %v438 = vld [vmem:[%s0 + $0xcc0] sm:$0xff]
    %v439 = vld [vmem:[%s0 + $0xcc8] sm:$0xff]
    %v440 = vld [vmem:[%s0 + $0xcd0] sm:$0xff]
    %v441 = vld [vmem:[%s0 + $0xcd8] sm:$0xff]
    %v442 = vld [vmem:[%s0 + $0xce0] sm:$0xff]
    %v443 = vld [vmem:[%s0 + $0xce8] sm:$0xff]
    %v444 = vld [vmem:[%s0 + $0xcf0] sm:$0xff]
    %v445 = vld [vmem:[%s0 + $0xcf8] sm:$0xff]
    %v446 = vld [vmem:[%s0 + $0xd00] sm:$0xff]
    %v447 = vld [vmem:[%s0 + $0xd08] sm:$0xff]
    %v448 = vld [vmem:[%s0 + $0xd10] sm:$0xff]
    %v449 = vld [vmem:[%s0 + $0xd18] sm:$0xff]
    %v450 = vld [vmem:[%s0 + $0xd20] sm:$0xff]
    %v451 = vld [vmem:[%s0 + $0xd28] sm:$0xff]
    %v452 = vld [vmem:[%s0 + $0xd30] sm:$0xff]
    %v453 = vld [vmem:[%s0 + $0xd38] sm:$0xff]
    %v454 = vld [vmem:[%s0 + $0xd40] sm:$0xff]
    %v455 = vld [vmem:[%s0 + $0xd48] sm:$0xff]
    %v456 = vld [vmem:[%s0 + $0xd50] sm:$0xff]
    %v457 = vld [vmem:[%s0 + $0xd58] sm:$0xff]
    %v458 = vld [vmem:[%s0 + $0xd60] sm:$0xff]
    %v459 = vld [vmem:[%s0 + $0xd68] sm:$0xff]
    %v460 = vld [vmem:[%s0 + $0xd70] sm:$0xff]
    %v461 = vld [vmem:[%s0 + $0xd78] sm:$0xff]
    %v462 = vld [vmem:[%s0 + $0xd80] sm:$0xff]
    %v463 = vld [vmem:[%s0 + $0xd88] sm:$0xff]
    %v464 = vld [vmem:[%s0 + $0xd90] sm:$0xff]
    %v465 = vld [vmem:[%s0 + $0xd98] sm:$0xff]
    %v466 = vld [vmem:[%s0 + $0xda0] sm:$0xff]
    %v467 = vld [vmem:[%s0 + $0xda8] sm:$0xff]
    %v468 = vld [vmem:[%s0 + $0xdb0] sm:$0xff]
    %v469 = vld [vmem:[%s0 + $0xdb8] sm:$0xff]
    %v470 = vld [vmem:[%s0 + $0xdc0] sm:$0xff]
    %v471 = vld [vmem:[%s0 + $0xdc8] sm:$0xff]
    %v472 = vld [vmem:[%s0 + $0xdd0] sm:$0xff]
    %v473 = vld [vmem:[%s0 + $0xdd8] sm:$0xff]
    %v474 = vld [vmem:[%s0 + $0xde0] sm:$0xff]
    %v475 = vld [vmem:[%s0 + $0xde8] sm:$0xff]
    %v476 = vld [vmem:[%s0 + $0xdf0] sm:$0xff]
    %v477 = vld [vmem:[%s0 + $0xdf8] sm:$0xff]
    %v478 = vld [vmem:[%s0 + $0xe00] sm:$0xff]
    %v479 = vld [vmem:[%s0 + $0xe08] sm:$0xff]
    %v480 = vld [vmem:[%s0 + $0xe10] sm:$0xff]
    %v481 = vld [vmem:[%s0 + $0xe18] sm:$0xff]
    %v482 = vld [vmem:[%s0 + $0xe20] sm:$0xff]
    %v483 = vld [vmem:[%s0 + $0xe28] sm:$0xff]
    %v484 = vld [vmem:[%s0 + $0xe30] sm:$0xff]
    %v485 = vld [vmem:[%s0 + $0xe38] sm:$0xff]
    %v486 = vld [vmem:[%s0 + $0xe40] sm:$0xff]
    %v487 = vld [vmem:[%s0 + $0xe48] sm:$0xff]
    %v488 = vld [vmem:[%s0 + $0xe50] sm:$0xff]
    %v489 = vld [vmem:[%s0 + $0xe58] sm:$0xff]
    %v490 = vld [vmem:[%s0 + $0xe60] sm:$0xff]
    %v491 = vld [vmem:[%s0 + $0xe68] sm:$0xff]
    %v492 = vld [vmem:[%s0 + $0xe70] sm:$0xff]
    %v493 = vld [vmem:[%s0 + $0xe78] sm:$0xff]
    %v494 = vld [vmem:[%s0 + $0xe80] sm:$0xff]
    %v495 = vld [vmem:[%s0 + $0xe88] sm:$0xff]
    %v496 = vld [vmem:[%s0 + $0xe90] sm:$0xff]
    %v497 = vld [vmem:[%s0 + $0xe98] sm:$0xff]
    %v498 = vld [vmem:[%s0 + $0xea0] sm:$0xff]
    %v499 = vld [vmem:[%s0 + $0xea8] sm:$0xff]
    %v500 = vld [vmem:[%s0 + $0xeb0] sm:$0xff]
    %v501 = vld [vmem:[%s0 + $0xeb8] sm:$0xff]
    %v502 = vld [vmem:[%s0 + $0xec0] sm:$0xff]
    %v503 = vld [vmem:[%s0 + $0xec8] sm:$0xff]
    %v504 = vld [vmem:[%s0 + $0xed0] sm:$0xff]
    %v505 = vld [vmem:[%s0 + $0xed8] sm:$0xff]
    %v506 = vld [vmem:[%s0 + $0xee0] sm:$0xff]
    %v507 = vld [vmem:[%s0 + $0xee8] sm:$0xff]
    %v508 = vld [vmem:[%s0 + $0xef0] sm:$0xff]
    %v509 = vld [vmem:[%s0 + $0xef8] sm:$0xff]
    %v510 = vld [vmem:[%s0 + $0xf00] sm:$0xff]
    %v511 = vld [vmem:[%s0 + $0xf08] sm:$0xff]
    %v512 = vld [vmem:[%s0 + $0xf10] sm:$0xff]
    %v513 = vld [vmem:[%s0 + $0xf18] sm:$0xff]
    %v514 = vld [vmem:[%s0 + $0xf20] sm:$0xff]
    %v515 = vld [vmem:[%s0 + $0xf28] sm:$0xff]
    %v516 = vld [vmem:[%s0 + $0xf30] sm:$0xff]
    %v517 = vld [vmem:[%s0 + $0xf38] sm:$0xff]
    %v518 = vld [vmem:[%s0 + $0xf40] sm:$0xff]
    %v519 = vld [vmem:[%s0 + $0xf48] sm:$0xff]
    %v520 = vld [vmem:[%s0 + $0xf50] sm:$0xff]
    %v521 = vld [vmem:[%s0 + $0xf58] sm:$0xff]
    %v522 = vld [vmem:[%s0 + $0xf60] sm:$0xff]
    %v523 = vld [vmem:[%s0 + $0xf68] sm:$0xff]
    %v524 = vld [vmem:[%s0 + $0xf70] sm:$0xff]
    %v525 = vld [vmem:[%s0 + $0xf78] sm:$0xff]
    %v526 = vld [vmem:[%s0 + $0xf80] sm:$0xff]
    %v527 = vld [vmem:[%s0 + $0xf88] sm:$0xff]
    %v528 = vld [vmem:[%s0 + $0xf90] sm:$0xff]
    %v529 = vld [vmem:[%s0 + $0xf98] sm:$0xff]
    %v530 = vld [vmem:[%s0 + $0xfa0] sm:$0xff]
    %v531 = vld [vmem:[%s0 + $0xfa8] sm:$0xff]
    %v532 = vld [vmem:[%s0 + $0xfb0] sm:$0xff]
    %v533 = vld [vmem:[%s0 + $0xfb8] sm:$0xff]
    %v534 = vld [vmem:[%s0 + $0xfc0] sm:$0xff]
    %v535 = vld [vmem:[%s0 + $0xfc8] sm:$0xff]
    %v536 = vld [vmem:[%s0 + $0xfd0] sm:$0xff]
    %v537 = vld [vmem:[%s0 + $0xfd8] sm:$0xff]
    %v538 = vld [vmem:[%s0 + $0xfe0] sm:$0xff]
    %v539 = vld [vmem:[%s0 + $0xfe8] sm:$0xff]
    %v540 = vld [vmem:[%s0 + $0xff0] sm:$0xff]
    %v541 = vld [vmem:[%s0 + $0xff8] sm:$0xff]
    %v542 = vpack.c.bf16 %v31, %v30
    %v543 = vpack.c.bf16 %v33, %v32
    %v544 = vpack.c.bf16 %v35, %v34
    %v545 = vpack.c.bf16 %v37, %v36
    %v546 = vpack.c.bf16 %v39, %v38
    %v547 = vpack.c.bf16 %v41, %v40
    %v548 = vpack.c.bf16 %v43, %v42
    %v549 = vpack.c.bf16 %v45, %v44
    %v550 = vpack.c.bf16 %v47, %v46
    %v551 = vpack.c.bf16 %v49, %v48
    %v552 = vpack.c.bf16 %v51, %v50
    %v553 = vpack.c.bf16 %v53, %v52
    %v554 = vpack.c.bf16 %v55, %v54
    %v555 = vpack.c.bf16 %v57, %v56
    %v556 = vpack.c.bf16 %v59, %v58
    %v557 = vpack.c.bf16 %v61, %v60
    %v558 = vpack.c.bf16 %v63, %v62
    %v559 = vpack.c.bf16 %v65, %v64
    %v560 = vpack.c.bf16 %v67, %v66
    %v561 = vpack.c.bf16 %v69, %v68
    %v562 = vpack.c.bf16 %v71, %v70
    %v563 = vpack.c.bf16 %v73, %v72
    %v564 = vpack.c.bf16 %v75, %v74
    %v565 = vpack.c.bf16 %v77, %v76
    %v566 = vpack.c.bf16 %v79, %v78
    %v567 = vpack.c.bf16 %v81, %v80
    %v568 = vpack.c.bf16 %v83, %v82
    %v569 = vpack.c.bf16 %v85, %v84
    %v570 = vpack.c.bf16 %v87, %v86
    %v571 = vpack.c.bf16 %v89, %v88
    %v572 = vpack.c.bf16 %v91, %v90
    %v573 = vpack.c.bf16 %v93, %v92
    %v574 = vpack.c.bf16 %v95, %v94
    %v575 = vpack.c.bf16 %v97, %v96
    %v576 = vpack.c.bf16 %v99, %v98
    %v577 = vpack.c.bf16 %v101, %v100
    %v578 = vpack.c.bf16 %v103, %v102
    %v579 = vpack.c.bf16 %v105, %v104
    %v580 = vpack.c.bf16 %v107, %v106
    %v581 = vpack.c.bf16 %v109, %v108
    %v582 = vpack.c.bf16 %v111, %v110
    %v583 = vpack.c.bf16 %v113, %v112
    %v584 = vpack.c.bf16 %v115, %v114
    %v585 = vpack.c.bf16 %v117, %v116
    %v586 = vpack.c.bf16 %v119, %v118
    %v587 = vpack.c.bf16 %v121, %v120
    %v588 = vpack.c.bf16 %v123, %v122
    %v589 = vpack.c.bf16 %v125, %v124
    %v590 = vpack.c.bf16 %v127, %v126
    %v591 = vpack.c.bf16 %v129, %v128
    %v592 = vpack.c.bf16 %v131, %v130
    %v593 = vpack.c.bf16 %v133, %v132
    %v594 = vpack.c.bf16 %v135, %v134
    %v595 = vpack.c.bf16 %v137, %v136
    %v596 = vpack.c.bf16 %v139, %v138
    %v597 = vpack.c.bf16 %v141, %v140
    %v598 = vpack.c.bf16 %v143, %v142
    %v599 = vpack.c.bf16 %v145, %v144
    %v600 = vpack.c.bf16 %v147, %v146
    %v601 = vpack.c.bf16 %v149, %v148
    %v602 = vpack.c.bf16 %v151, %v150
    %v603 = vpack.c.bf16 %v153, %v152
    %v604 = vpack.c.bf16 %v155, %v154
    %v605 = vpack.c.bf16 %v157, %v156
    %v606 = vpack.c.bf16 %v159, %v158
    %v607 = vpack.c.bf16 %v161, %v160
    %v608 = vpack.c.bf16 %v163, %v162
    %v609 = vpack.c.bf16 %v165, %v164
    %v610 = vpack.c.bf16 %v167, %v166
    %v611 = vpack.c.bf16 %v169, %v168
    %v612 = vpack.c.bf16 %v171, %v170
    %v613 = vpack.c.bf16 %v173, %v172
    %v614 = vpack.c.bf16 %v175, %v174
    %v615 = vpack.c.bf16 %v177, %v176
    %v616 = vpack.c.bf16 %v179, %v178
    %v617 = vpack.c.bf16 %v181, %v180
    %v618 = vpack.c.bf16 %v183, %v182
    %v619 = vpack.c.bf16 %v185, %v184
    %v620 = vpack.c.bf16 %v187, %v186
    %v621 = vpack.c.bf16 %v189, %v188
    %v622 = vpack.c.bf16 %v191, %v190
    %v623 = vpack.c.bf16 %v193, %v192
    %v624 = vpack.c.bf16 %v195, %v194
    %v625 = vpack.c.bf16 %v197, %v196
    %v626 = vpack.c.bf16 %v199, %v198
    %v627 = vpack.c.bf16 %v201, %v200
    %v628 = vpack.c.bf16 %v203, %v202
    %v629 = vpack.c.bf16 %v205, %v204
    %v630 = vpack.c.bf16 %v207, %v206
    %v631 = vpack.c.bf16 %v209, %v208
    %v632 = vpack.c.bf16 %v211, %v210
    %v633 = vpack.c.bf16 %v213, %v212
    %v634 = vpack.c.bf16 %v215, %v214
    %v635 = vpack.c.bf16 %v217, %v216
    %v636 = vpack.c.bf16 %v219, %v218
    %v637 = vpack.c.bf16 %v221, %v220
    %v638 = vpack.c.bf16 %v223, %v222
    %v639 = vpack.c.bf16 %v225, %v224
    %v640 = vpack.c.bf16 %v227, %v226
    %v641 = vpack.c.bf16 %v229, %v228
    %v642 = vpack.c.bf16 %v231, %v230
    %v643 = vpack.c.bf16 %v233, %v232
    %v644 = vpack.c.bf16 %v235, %v234
    %v645 = vpack.c.bf16 %v237, %v236
    %v646 = vpack.c.bf16 %v239, %v238
    %v647 = vpack.c.bf16 %v241, %v240
    %v648 = vpack.c.bf16 %v243, %v242
    %v649 = vpack.c.bf16 %v245, %v244
    %v650 = vpack.c.bf16 %v247, %v246
    %v651 = vpack.c.bf16 %v249, %v248
    %v652 = vpack.c.bf16 %v251, %v250
    %v653 = vpack.c.bf16 %v253, %v252
    %v654 = vpack.c.bf16 %v255, %v254
    %v655 = vpack.c.bf16 %v257, %v256
    %v656 = vpack.c.bf16 %v259, %v258
    %v657 = vpack.c.bf16 %v261, %v260
    %v658 = vpack.c.bf16 %v263, %v262
    %v659 = vpack.c.bf16 %v265, %v264
    %v660 = vpack.c.bf16 %v267, %v266
    %v661 = vpack.c.bf16 %v269, %v268
    %v662 = vpack.c.bf16 %v271, %v270
    %v663 = vpack.c.bf16 %v273, %v272
    %v664 = vpack.c.bf16 %v275, %v274
    %v665 = vpack.c.bf16 %v277, %v276
    %v666 = vpack.c.bf16 %v279, %v278
    %v667 = vpack.c.bf16 %v281, %v280
    %v668 = vpack.c.bf16 %v283, %v282
    %v669 = vpack.c.bf16 %v285, %v284
    %v670 = vpack.c.bf16 %v287, %v286
    %v671 = vpack.c.bf16 %v289, %v288
    %v672 = vpack.c.bf16 %v291, %v290
    %v673 = vpack.c.bf16 %v293, %v292
    %v674 = vpack.c.bf16 %v295, %v294
    %v675 = vpack.c.bf16 %v297, %v296
    %v676 = vpack.c.bf16 %v299, %v298
    %v677 = vpack.c.bf16 %v301, %v300
    %v678 = vpack.c.bf16 %v303, %v302
    %v679 = vpack.c.bf16 %v305, %v304
    %v680 = vpack.c.bf16 %v307, %v306
    %v681 = vpack.c.bf16 %v309, %v308
    %v682 = vpack.c.bf16 %v311, %v310
    %v683 = vpack.c.bf16 %v313, %v312
    %v684 = vpack.c.bf16 %v315, %v314
    %v685 = vpack.c.bf16 %v317, %v316
    %v686 = vpack.c.bf16 %v319, %v318
    %v687 = vpack.c.bf16 %v321, %v320
    %v688 = vpack.c.bf16 %v323, %v322
    %v689 = vpack.c.bf16 %v325, %v324
    %v690 = vpack.c.bf16 %v327, %v326
    %v691 = vpack.c.bf16 %v329, %v328
    %v692 = vpack.c.bf16 %v331, %v330
    %v693 = vpack.c.bf16 %v333, %v332
    %v694 = vpack.c.bf16 %v335, %v334
    %v695 = vpack.c.bf16 %v337, %v336
    %v696 = vpack.c.bf16 %v339, %v338
    %v697 = vpack.c.bf16 %v341, %v340
    %v698 = vpack.c.bf16 %v343, %v342
    %v699 = vpack.c.bf16 %v345, %v344
    %v700 = vpack.c.bf16 %v347, %v346
    %v701 = vpack.c.bf16 %v349, %v348
    %v702 = vpack.c.bf16 %v351, %v350
    %v703 = vpack.c.bf16 %v353, %v352
    %v704 = vpack.c.bf16 %v355, %v354
    %v705 = vpack.c.bf16 %v357, %v356
    %v706 = vpack.c.bf16 %v359, %v358
    %v707 = vpack.c.bf16 %v361, %v360
    %v708 = vpack.c.bf16 %v363, %v362
    %v709 = vpack.c.bf16 %v365, %v364
    %v710 = vpack.c.bf16 %v367, %v366
    %v711 = vpack.c.bf16 %v369, %v368
    %v712 = vpack.c.bf16 %v371, %v370
    %v713 = vpack.c.bf16 %v373, %v372
    %v714 = vpack.c.bf16 %v375, %v374
    %v715 = vpack.c.bf16 %v377, %v376
    %v716 = vpack.c.bf16 %v379, %v378
    %v717 = vpack.c.bf16 %v381, %v380
    %v718 = vpack.c.bf16 %v383, %v382
    %v719 = vpack.c.bf16 %v385, %v384
    %v720 = vpack.c.bf16 %v387, %v386
    %v721 = vpack.c.bf16 %v389, %v388
    %v722 = vpack.c.bf16 %v391, %v390
    %v723 = vpack.c.bf16 %v393, %v392
    %v724 = vpack.c.bf16 %v395, %v394
    %v725 = vpack.c.bf16 %v397, %v396
    %v726 = vpack.c.bf16 %v399, %v398
    %v727 = vpack.c.bf16 %v401, %v400
    %v728 = vpack.c.bf16 %v403, %v402
    %v729 = vpack.c.bf16 %v405, %v404
    %v730 = vpack.c.bf16 %v407, %v406
    %v731 = vpack.c.bf16 %v409, %v408
    %v732 = vpack.c.bf16 %v411, %v410
    %v733 = vpack.c.bf16 %v413, %v412
    %v734 = vpack.c.bf16 %v415, %v414
    %v735 = vpack.c.bf16 %v417, %v416
    %v736 = vpack.c.bf16 %v419, %v418
    %v737 = vpack.c.bf16 %v421, %v420
    %v738 = vpack.c.bf16 %v423, %v422
    %v739 = vpack.c.bf16 %v425, %v424
    %v740 = vpack.c.bf16 %v427, %v426
    %v741 = vpack.c.bf16 %v429, %v428
    %v742 = vpack.c.bf16 %v431, %v430
    %v743 = vpack.c.bf16 %v433, %v432
    %v744 = vpack.c.bf16 %v435, %v434
    %v745 = vpack.c.bf16 %v437, %v436
    %v746 = vpack.c.bf16 %v439, %v438
    %v747 = vpack.c.bf16 %v441, %v440
    %v748 = vpack.c.bf16 %v443, %v442
    %v749 = vpack.c.bf16 %v445, %v444
    %v750 = vpack.c.bf16 %v447, %v446
    %v751 = vpack.c.bf16 %v449, %v448
    %v752 = vpack.c.bf16 %v451, %v450
    %v753 = vpack.c.bf16 %v453, %v452
    %v754 = vpack.c.bf16 %v455, %v454
    %v755 = vpack.c.bf16 %v457, %v456
    %v756 = vpack.c.bf16 %v459, %v458
    %v757 = vpack.c.bf16 %v461, %v460
    %v758 = vpack.c.bf16 %v463, %v462
    %v759 = vpack.c.bf16 %v465, %v464
    %v760 = vpack.c.bf16 %v467, %v466
    %v761 = vpack.c.bf16 %v469, %v468
    %v762 = vpack.c.bf16 %v471, %v470
    %v763 = vpack.c.bf16 %v473, %v472
    %v764 = vpack.c.bf16 %v475, %v474
    %v765 = vpack.c.bf16 %v477, %v476
    %v766 = vpack.c.bf16 %v479, %v478
    %v767 = vpack.c.bf16 %v481, %v480
    %v768 = vpack.c.bf16 %v483, %v482
    %v769 = vpack.c.bf16 %v485, %v484
    %v770 = vpack.c.bf16 %v487, %v486
    %v771 = vpack.c.bf16 %v489, %v488
    %v772 = vpack.c.bf16 %v491, %v490
    %v773 = vpack.c.bf16 %v493, %v492
    %v774 = vpack.c.bf16 %v495, %v494
    %v775 = vpack.c.bf16 %v497, %v496
    %v776 = vpack.c.bf16 %v499, %v498
    %v777 = vpack.c.bf16 %v501, %v500
    %v778 = vpack.c.bf16 %v503, %v502
    %v779 = vpack.c.bf16 %v505, %v504
    %v780 = vpack.c.bf16 %v507, %v506
    %v781 = vpack.c.bf16 %v509, %v508
    %v782 = vpack.c.bf16 %v511, %v510
    %v783 = vpack.c.bf16 %v513, %v512
    %v784 = vpack.c.bf16 %v515, %v514
    %v785 = vpack.c.bf16 %v517, %v516
    %v786 = vpack.c.bf16 %v519, %v518
    %v787 = vpack.c.bf16 %v521, %v520
    %v788 = vpack.c.bf16 %v523, %v522
    %v789 = vpack.c.bf16 %v525, %v524
    %v790 = vpack.c.bf16 %v527, %v526
    %v791 = vpack.c.bf16 %v529, %v528
    %v792 = vpack.c.bf16 %v531, %v530
    %v793 = vpack.c.bf16 %v533, %v532
    %v794 = vpack.c.bf16 %v535, %v534
    %v795 = vpack.c.bf16 %v537, %v536
    %v796 = vpack.c.bf16 %v539, %v538
    %v797 = vpack.c.bf16 %v541, %v540
    %798 = vxpose.xlu0.c.b16.start [1/8] %v542, 128
    %799 = vxpose.xlu0.c.b16.cont [2/8] %v543, 128
    %800 = vxpose.xlu0.c.b16.cont [3/8] %v544, 128
    %801 = vxpose.xlu0.c.b16.cont [4/8] %v545, 128
    %802 = vxpose.xlu0.c.b16.cont [5/8] %v546, 128
    %803 = vxpose.xlu0.c.b16.cont [6/8] %v547, 128
    %804 = vxpose.xlu0.c.b16.cont [7/8] %v548, 128
    %805 = vxpose.xlu0.c.b16.end [8/8] %v549, 128
    %v806 = vpop.trf.xlu0
    %v807 = vpop.trf.xlu0
    %v808 = vpop.trf.xlu0
    %v809 = vpop.trf.xlu0
    %v810 = vpop.trf.xlu0
    %v811 = vpop.trf.xlu0
    %v812 = vpop.trf.xlu0
    %v813 = vpop.trf.xlu0
    %814 = vxpose.xlu0.c.b16.start [1/8] %v550, 128
    %815 = vxpose.xlu0.c.b16.cont [2/8] %v551, 128
    %816 = vxpose.xlu0.c.b16.cont [3/8] %v552, 128
    %817 = vxpose.xlu0.c.b16.cont [4/8] %v553, 128
    %818 = vxpose.xlu0.c.b16.cont [5/8] %v554, 128
    %819 = vxpose.xlu0.c.b16.cont [6/8] %v555, 128
    %820 = vxpose.xlu0.c.b16.cont [7/8] %v556, 128
    %821 = vxpose.xlu0.c.b16.end [8/8] %v557, 128
    %v822 = vpop.trf.xlu0
    %v823 = vpop.trf.xlu0
    %v824 = vpop.trf.xlu0
    %v825 = vpop.trf.xlu0
    %v826 = vpop.trf.xlu0
    %v827 = vpop.trf.xlu0
    %v828 = vpop.trf.xlu0
    %v829 = vpop.trf.xlu0
    %830 = vxpose.xlu0.c.b16.start [1/8] %v558, 128
    %831 = vxpose.xlu0.c.b16.cont [2/8] %v559, 128
    %832 = vxpose.xlu0.c.b16.cont [3/8] %v560, 128
    %833 = vxpose.xlu0.c.b16.cont [4/8] %v561, 128
    %834 = vxpose.xlu0.c.b16.cont [5/8] %v562, 128
    %835 = vxpose.xlu0.c.b16.cont [6/8] %v563, 128
    %836 = vxpose.xlu0.c.b16.cont [7/8] %v564, 128
    %837 = vxpose.xlu0.c.b16.end [8/8] %v565, 128
    %v838 = vpop.trf.xlu0
    %v839 = vpop.trf.xlu0
    %v840 = vpop.trf.xlu0
    %v841 = vpop.trf.xlu0
    %v842 = vpop.trf.xlu0
    %v843 = vpop.trf.xlu0
    %v844 = vpop.trf.xlu0
    %v845 = vpop.trf.xlu0
    %846 = vxpose.xlu0.c.b16.start [1/8] %v566, 128
    %847 = vxpose.xlu0.c.b16.cont [2/8] %v567, 128
    %848 = vxpose.xlu0.c.b16.cont [3/8] %v568, 128
    %849 = vxpose.xlu0.c.b16.cont [4/8] %v569, 128
    %850 = vxpose.xlu0.c.b16.cont [5/8] %v570, 128
    %851 = vxpose.xlu0.c.b16.cont [6/8] %v571, 128
    %852 = vxpose.xlu0.c.b16.cont [7/8] %v572, 128
    %853 = vxpose.xlu0.c.b16.end [8/8] %v573, 128
    %v854 = vpop.trf.xlu0
    %v855 = vpop.trf.xlu0
    %v856 = vpop.trf.xlu0
    %v857 = vpop.trf.xlu0
    %v858 = vpop.trf.xlu0
    %v859 = vpop.trf.xlu0
    %v860 = vpop.trf.xlu0
    %v861 = vpop.trf.xlu0
    %862 = vxpose.xlu0.c.b16.start [1/8] %v574, 128
    %863 = vxpose.xlu0.c.b16.cont [2/8] %v575, 128
    %864 = vxpose.xlu0.c.b16.cont [3/8] %v576, 128
    %865 = vxpose.xlu0.c.b16.cont [4/8] %v577, 128
    %866 = vxpose.xlu0.c.b16.cont [5/8] %v578, 128
    %867 = vxpose.xlu0.c.b16.cont [6/8] %v579, 128
    %868 = vxpose.xlu0.c.b16.cont [7/8] %v580, 128
    %869 = vxpose.xlu0.c.b16.end [8/8] %v581, 128
    %v870 = vpop.trf.xlu0
    %v871 = vpop.trf.xlu0
    %v872 = vpop.trf.xlu0
    %v873 = vpop.trf.xlu0
    %v874 = vpop.trf.xlu0
    %v875 = vpop.trf.xlu0
    %v876 = vpop.trf.xlu0
    %v877 = vpop.trf.xlu0
    %878 = vxpose.xlu0.c.b16.start [1/8] %v582, 128
    %879 = vxpose.xlu0.c.b16.cont [2/8] %v583, 128
    %880 = vxpose.xlu0.c.b16.cont [3/8] %v584, 128
    %881 = vxpose.xlu0.c.b16.cont [4/8] %v585, 128
    %882 = vxpose.xlu0.c.b16.cont [5/8] %v586, 128
    %883 = vxpose.xlu0.c.b16.cont [6/8] %v587, 128
    %884 = vxpose.xlu0.c.b16.cont [7/8] %v588, 128
    %885 = vxpose.xlu0.c.b16.end [8/8] %v589, 128
    %v886 = vpop.trf.xlu0
    %v887 = vpop.trf.xlu0
    %v888 = vpop.trf.xlu0
    %v889 = vpop.trf.xlu0
    %v890 = vpop.trf.xlu0
    %v891 = vpop.trf.xlu0
    %v892 = vpop.trf.xlu0
    %v893 = vpop.trf.xlu0
    %894 = vxpose.xlu0.c.b16.start [1/8] %v590, 128
    %895 = vxpose.xlu0.c.b16.cont [2/8] %v591, 128
    %896 = vxpose.xlu0.c.b16.cont [3/8] %v592, 128
    %897 = vxpose.xlu0.c.b16.cont [4/8] %v593, 128
    %898 = vxpose.xlu0.c.b16.cont [5/8] %v594, 128
    %899 = vxpose.xlu0.c.b16.cont [6/8] %v595, 128
    %900 = vxpose.xlu0.c.b16.cont [7/8] %v596, 128
    %901 = vxpose.xlu0.c.b16.end [8/8] %v597, 128
    %v902 = vpop.trf.xlu0
    %v903 = vpop.trf.xlu0
    %v904 = vpop.trf.xlu0
    %v905 = vpop.trf.xlu0
    %v906 = vpop.trf.xlu0
    %v907 = vpop.trf.xlu0
    %v908 = vpop.trf.xlu0
    %v909 = vpop.trf.xlu0
    %910 = vxpose.xlu0.c.b16.start [1/8] %v598, 128
    %911 = vxpose.xlu0.c.b16.cont [2/8] %v599, 128
    %912 = vxpose.xlu0.c.b16.cont [3/8] %v600, 128
    %913 = vxpose.xlu0.c.b16.cont [4/8] %v601, 128
    %914 = vxpose.xlu0.c.b16.cont [5/8] %v602, 128
    %915 = vxpose.xlu0.c.b16.cont [6/8] %v603, 128
    %916 = vxpose.xlu0.c.b16.cont [7/8] %v604, 128
    %917 = vxpose.xlu0.c.b16.end [8/8] %v605, 128
    %v918 = vpop.trf.xlu0
    %v919 = vpop.trf.xlu0
    %v920 = vpop.trf.xlu0
    %v921 = vpop.trf.xlu0
    %v922 = vpop.trf.xlu0
    %v923 = vpop.trf.xlu0
    %v924 = vpop.trf.xlu0
    %v925 = vpop.trf.xlu0
    %926 = vxpose.xlu0.c.b16.start [1/8] %v606, 128
    %927 = vxpose.xlu0.c.b16.cont [2/8] %v607, 128
    %928 = vxpose.xlu0.c.b16.cont [3/8] %v608, 128
    %929 = vxpose.xlu0.c.b16.cont [4/8] %v609, 128
    %930 = vxpose.xlu0.c.b16.cont [5/8] %v610, 128
    %931 = vxpose.xlu0.c.b16.cont [6/8] %v611, 128
    %932 = vxpose.xlu0.c.b16.cont [7/8] %v612, 128
    %933 = vxpose.xlu0.c.b16.end [8/8] %v613, 128
    %v934 = vpop.trf.xlu0
    %v935 = vpop.trf.xlu0
    %v936 = vpop.trf.xlu0
    %v937 = vpop.trf.xlu0
    %v938 = vpop.trf.xlu0
    %v939 = vpop.trf.xlu0
    %v940 = vpop.trf.xlu0
    %v941 = vpop.trf.xlu0
    %942 = vxpose.xlu0.c.b16.start [1/8] %v614, 128
    %943 = vxpose.xlu0.c.b16.cont [2/8] %v615, 128
    %944 = vxpose.xlu0.c.b16.cont [3/8] %v616, 128
    %945 = vxpose.xlu0.c.b16.cont [4/8] %v617, 128
    %946 = vxpose.xlu0.c.b16.cont [5/8] %v618, 128
    %947 = vxpose.xlu0.c.b16.cont [6/8] %v619, 128
    %948 = vxpose.xlu0.c.b16.cont [7/8] %v620, 128
    %949 = vxpose.xlu0.c.b16.end [8/8] %v621, 128
    %v950 = vpop.trf.xlu0
    %v951 = vpop.trf.xlu0
    %v952 = vpop.trf.xlu0
    %v953 = vpop.trf.xlu0
    %v954 = vpop.trf.xlu0
    %v955 = vpop.trf.xlu0
    %v956 = vpop.trf.xlu0
    %v957 = vpop.trf.xlu0
    %958 = vxpose.xlu0.c.b16.start [1/8] %v622, 128
    %959 = vxpose.xlu0.c.b16.cont [2/8] %v623, 128
    %960 = vxpose.xlu0.c.b16.cont [3/8] %v624, 128
    %961 = vxpose.xlu0.c.b16.cont [4/8] %v625, 128
    %962 = vxpose.xlu0.c.b16.cont [5/8] %v626, 128
    %963 = vxpose.xlu0.c.b16.cont [6/8] %v627, 128
    %964 = vxpose.xlu0.c.b16.cont [7/8] %v628, 128
    %965 = vxpose.xlu0.c.b16.end [8/8] %v629, 128
    %v966 = vpop.trf.xlu0
    %v967 = vpop.trf.xlu0
    %v968 = vpop.trf.xlu0
    %v969 = vpop.trf.xlu0
    %v970 = vpop.trf.xlu0
    %v971 = vpop.trf.xlu0
    %v972 = vpop.trf.xlu0
    %v973 = vpop.trf.xlu0
    %974 = vxpose.xlu0.c.b16.start [1/8] %v630, 128
    %975 = vxpose.xlu0.c.b16.cont [2/8] %v631, 128
    %976 = vxpose.xlu0.c.b16.cont [3/8] %v632, 128
    %977 = vxpose.xlu0.c.b16.cont [4/8] %v633, 128
    %978 = vxpose.xlu0.c.b16.cont [5/8] %v634, 128
    %979 = vxpose.xlu0.c.b16.cont [6/8] %v635, 128
    %980 = vxpose.xlu0.c.b16.cont [7/8] %v636, 128
    %981 = vxpose.xlu0.c.b16.end [8/8] %v637, 128
    %v982 = vpop.trf.xlu0
    %v983 = vpop.trf.xlu0
    %v984 = vpop.trf.xlu0
    %v985 = vpop.trf.xlu0
    %v986 = vpop.trf.xlu0
    %v987 = vpop.trf.xlu0
    %v988 = vpop.trf.xlu0
    %v989 = vpop.trf.xlu0
    %990 = vxpose.xlu0.c.b16.start [1/8] %v638, 128
    %991 = vxpose.xlu0.c.b16.cont [2/8] %v639, 128
    %992 = vxpose.xlu0.c.b16.cont [3/8] %v640, 128
    %993 = vxpose.xlu0.c.b16.cont [4/8] %v641, 128
    %994 = vxpose.xlu0.c.b16.cont [5/8] %v642, 128
    %995 = vxpose.xlu0.c.b16.cont [6/8] %v643, 128
    %996 = vxpose.xlu0.c.b16.cont [7/8] %v644, 128
    %997 = vxpose.xlu0.c.b16.end [8/8] %v645, 128
    %v998 = vpop.trf.xlu0
    %v999 = vpop.trf.xlu0
    %v1000 = vpop.trf.xlu0
    %v1001 = vpop.trf.xlu0
    %v1002 = vpop.trf.xlu0
    %v1003 = vpop.trf.xlu0
    %v1004 = vpop.trf.xlu0
    %v1005 = vpop.trf.xlu0
    %1006 = vxpose.xlu0.c.b16.start [1/8] %v646, 128
    %1007 = vxpose.xlu0.c.b16.cont [2/8] %v647, 128
    %1008 = vxpose.xlu0.c.b16.cont [3/8] %v648, 128
    %1009 = vxpose.xlu0.c.b16.cont [4/8] %v649, 128
    %1010 = vxpose.xlu0.c.b16.cont [5/8] %v650, 128
    %1011 = vxpose.xlu0.c.b16.cont [6/8] %v651, 128
    %1012 = vxpose.xlu0.c.b16.cont [7/8] %v652, 128
    %1013 = vxpose.xlu0.c.b16.end [8/8] %v653, 128
    %v1014 = vpop.trf.xlu0
    %v1015 = vpop.trf.xlu0
    %v1016 = vpop.trf.xlu0
    %v1017 = vpop.trf.xlu0
    %v1018 = vpop.trf.xlu0
    %v1019 = vpop.trf.xlu0
    %v1020 = vpop.trf.xlu0
    %v1021 = vpop.trf.xlu0
    %1022 = vxpose.xlu0.c.b16.start [1/8] %v654, 128
    %1023 = vxpose.xlu0.c.b16.cont [2/8] %v655, 128
    %1024 = vxpose.xlu0.c.b16.cont [3/8] %v656, 128
    %1025 = vxpose.xlu0.c.b16.cont [4/8] %v657, 128
    %1026 = vxpose.xlu0.c.b16.cont [5/8] %v658, 128
    %1027 = vxpose.xlu0.c.b16.cont [6/8] %v659, 128
    %1028 = vxpose.xlu0.c.b16.cont [7/8] %v660, 128
    %1029 = vxpose.xlu0.c.b16.end [8/8] %v661, 128
    %v1030 = vpop.trf.xlu0
    %v1031 = vpop.trf.xlu0
    %v1032 = vpop.trf.xlu0
    %v1033 = vpop.trf.xlu0
    %v1034 = vpop.trf.xlu0
    %v1035 = vpop.trf.xlu0
    %v1036 = vpop.trf.xlu0
    %v1037 = vpop.trf.xlu0
    %1038 = vxpose.xlu0.c.b16.start [1/8] %v662, 128
    %1039 = vxpose.xlu0.c.b16.cont [2/8] %v663, 128
    %1040 = vxpose.xlu0.c.b16.cont [3/8] %v664, 128
    %1041 = vxpose.xlu0.c.b16.cont [4/8] %v665, 128
    %1042 = vxpose.xlu0.c.b16.cont [5/8] %v666, 128
    %1043 = vxpose.xlu0.c.b16.cont [6/8] %v667, 128
    %1044 = vxpose.xlu0.c.b16.cont [7/8] %v668, 128
    %1045 = vxpose.xlu0.c.b16.end [8/8] %v669, 128
    %v1046 = vpop.trf.xlu0
    %v1047 = vpop.trf.xlu0
    %v1048 = vpop.trf.xlu0
    %v1049 = vpop.trf.xlu0
    %v1050 = vpop.trf.xlu0
    %v1051 = vpop.trf.xlu0
    %v1052 = vpop.trf.xlu0
    %v1053 = vpop.trf.xlu0
    %1054 = vxpose.xlu0.c.b16.start [1/8] %v670, 128
    %1055 = vxpose.xlu0.c.b16.cont [2/8] %v671, 128
    %1056 = vxpose.xlu0.c.b16.cont [3/8] %v672, 128
    %1057 = vxpose.xlu0.c.b16.cont [4/8] %v673, 128
    %1058 = vxpose.xlu0.c.b16.cont [5/8] %v674, 128
    %1059 = vxpose.xlu0.c.b16.cont [6/8] %v675, 128
    %1060 = vxpose.xlu0.c.b16.cont [7/8] %v676, 128
    %1061 = vxpose.xlu0.c.b16.end [8/8] %v677, 128
    %v1062 = vpop.trf.xlu0
    %v1063 = vpop.trf.xlu0
    %v1064 = vpop.trf.xlu0
    %v1065 = vpop.trf.xlu0
    %v1066 = vpop.trf.xlu0
    %v1067 = vpop.trf.xlu0
    %v1068 = vpop.trf.xlu0
    %v1069 = vpop.trf.xlu0
    %1070 = vxpose.xlu0.c.b16.start [1/8] %v678, 128
    %1071 = vxpose.xlu0.c.b16.cont [2/8] %v679, 128
    %1072 = vxpose.xlu0.c.b16.cont [3/8] %v680, 128
    %1073 = vxpose.xlu0.c.b16.cont [4/8] %v681, 128
    %1074 = vxpose.xlu0.c.b16.cont [5/8] %v682, 128
    %1075 = vxpose.xlu0.c.b16.cont [6/8] %v683, 128
    %1076 = vxpose.xlu0.c.b16.cont [7/8] %v684, 128
    %1077 = vxpose.xlu0.c.b16.end [8/8] %v685, 128
    %v1078 = vpop.trf.xlu0
    %v1079 = vpop.trf.xlu0
    %v1080 = vpop.trf.xlu0
    %v1081 = vpop.trf.xlu0
    %v1082 = vpop.trf.xlu0
    %v1083 = vpop.trf.xlu0
    %v1084 = vpop.trf.xlu0
    %v1085 = vpop.trf.xlu0
    %1086 = vxpose.xlu0.c.b16.start [1/8] %v686, 128
    %1087 = vxpose.xlu0.c.b16.cont [2/8] %v687, 128
    %1088 = vxpose.xlu0.c.b16.cont [3/8] %v688, 128
    %1089 = vxpose.xlu0.c.b16.cont [4/8] %v689, 128
    %1090 = vxpose.xlu0.c.b16.cont [5/8] %v690, 128
    %1091 = vxpose.xlu0.c.b16.cont [6/8] %v691, 128
    %1092 = vxpose.xlu0.c.b16.cont [7/8] %v692, 128
    %1093 = vxpose.xlu0.c.b16.end [8/8] %v693, 128
    %v1094 = vpop.trf.xlu0
    %v1095 = vpop.trf.xlu0
    %v1096 = vpop.trf.xlu0
    %v1097 = vpop.trf.xlu0
    %v1098 = vpop.trf.xlu0
    %v1099 = vpop.trf.xlu0
    %v1100 = vpop.trf.xlu0
    %v1101 = vpop.trf.xlu0
    %1102 = vxpose.xlu0.c.b16.start [1/8] %v694, 128
    %1103 = vxpose.xlu0.c.b16.cont [2/8] %v695, 128
    %1104 = vxpose.xlu0.c.b16.cont [3/8] %v696, 128
    %1105 = vxpose.xlu0.c.b16.cont [4/8] %v697, 128
    %1106 = vxpose.xlu0.c.b16.cont [5/8] %v698, 128
    %1107 = vxpose.xlu0.c.b16.cont [6/8] %v699, 128
    %1108 = vxpose.xlu0.c.b16.cont [7/8] %v700, 128
    %1109 = vxpose.xlu0.c.b16.end [8/8] %v701, 128
    %v1110 = vpop.trf.xlu0
    %v1111 = vpop.trf.xlu0
    %v1112 = vpop.trf.xlu0
    %v1113 = vpop.trf.xlu0
    %v1114 = vpop.trf.xlu0
    %v1115 = vpop.trf.xlu0
    %v1116 = vpop.trf.xlu0
    %v1117 = vpop.trf.xlu0
    %1118 = vxpose.xlu0.c.b16.start [1/8] %v702, 128
    %1119 = vxpose.xlu0.c.b16.cont [2/8] %v703, 128
    %1120 = vxpose.xlu0.c.b16.cont [3/8] %v704, 128
    %1121 = vxpose.xlu0.c.b16.cont [4/8] %v705, 128
    %1122 = vxpose.xlu0.c.b16.cont [5/8] %v706, 128
    %1123 = vxpose.xlu0.c.b16.cont [6/8] %v707, 128
    %1124 = vxpose.xlu0.c.b16.cont [7/8] %v708, 128
    %1125 = vxpose.xlu0.c.b16.end [8/8] %v709, 128
    %v1126 = vpop.trf.xlu0
    %v1127 = vpop.trf.xlu0
    %v1128 = vpop.trf.xlu0
    %v1129 = vpop.trf.xlu0
    %v1130 = vpop.trf.xlu0
    %v1131 = vpop.trf.xlu0
    %v1132 = vpop.trf.xlu0
    %v1133 = vpop.trf.xlu0
    %1134 = vxpose.xlu0.c.b16.start [1/8] %v710, 128
    %1135 = vxpose.xlu0.c.b16.cont [2/8] %v711, 128
    %1136 = vxpose.xlu0.c.b16.cont [3/8] %v712, 128
    %1137 = vxpose.xlu0.c.b16.cont [4/8] %v713, 128
    %1138 = vxpose.xlu0.c.b16.cont [5/8] %v714, 128
    %1139 = vxpose.xlu0.c.b16.cont [6/8] %v715, 128
    %1140 = vxpose.xlu0.c.b16.cont [7/8] %v716, 128
    %1141 = vxpose.xlu0.c.b16.end [8/8] %v717, 128
    %v1142 = vpop.trf.xlu0
    %v1143 = vpop.trf.xlu0
    %v1144 = vpop.trf.xlu0
    %v1145 = vpop.trf.xlu0
    %v1146 = vpop.trf.xlu0
    %v1147 = vpop.trf.xlu0
    %v1148 = vpop.trf.xlu0
    %v1149 = vpop.trf.xlu0
    %1150 = vxpose.xlu0.c.b16.start [1/8] %v718, 128
    %1151 = vxpose.xlu0.c.b16.cont [2/8] %v719, 128
    %1152 = vxpose.xlu0.c.b16.cont [3/8] %v720, 128
    %1153 = vxpose.xlu0.c.b16.cont [4/8] %v721, 128
    %1154 = vxpose.xlu0.c.b16.cont [5/8] %v722, 128
    %1155 = vxpose.xlu0.c.b16.cont [6/8] %v723, 128
    %1156 = vxpose.xlu0.c.b16.cont [7/8] %v724, 128
    %1157 = vxpose.xlu0.c.b16.end [8/8] %v725, 128
    %v1158 = vpop.trf.xlu0
    %v1159 = vpop.trf.xlu0
    %v1160 = vpop.trf.xlu0
    %v1161 = vpop.trf.xlu0
    %v1162 = vpop.trf.xlu0
    %v1163 = vpop.trf.xlu0
    %v1164 = vpop.trf.xlu0
    %v1165 = vpop.trf.xlu0
    %1166 = vxpose.xlu0.c.b16.start [1/8] %v726, 128
    %1167 = vxpose.xlu0.c.b16.cont [2/8] %v727, 128
    %1168 = vxpose.xlu0.c.b16.cont [3/8] %v728, 128
    %1169 = vxpose.xlu0.c.b16.cont [4/8] %v729, 128
    %1170 = vxpose.xlu0.c.b16.cont [5/8] %v730, 128
    %1171 = vxpose.xlu0.c.b16.cont [6/8] %v731, 128
    %1172 = vxpose.xlu0.c.b16.cont [7/8] %v732, 128
    %1173 = vxpose.xlu0.c.b16.end [8/8] %v733, 128
    %v1174 = vpop.trf.xlu0
    %v1175 = vpop.trf.xlu0
    %v1176 = vpop.trf.xlu0
    %v1177 = vpop.trf.xlu0
    %v1178 = vpop.trf.xlu0
    %v1179 = vpop.trf.xlu0
    %v1180 = vpop.trf.xlu0
    %v1181 = vpop.trf.xlu0
    %1182 = vxpose.xlu0.c.b16.start [1/8] %v734, 128
    %1183 = vxpose.xlu0.c.b16.cont [2/8] %v735, 128
    %1184 = vxpose.xlu0.c.b16.cont [3/8] %v736, 128
    %1185 = vxpose.xlu0.c.b16.cont [4/8] %v737, 128
    %1186 = vxpose.xlu0.c.b16.cont [5/8] %v738, 128
    %1187 = vxpose.xlu0.c.b16.cont [6/8] %v739, 128
    %1188 = vxpose.xlu0.c.b16.cont [7/8] %v740, 128
    %1189 = vxpose.xlu0.c.b16.end [8/8] %v741, 128
    %v1190 = vpop.trf.xlu0
    %v1191 = vpop.trf.xlu0
    %v1192 = vpop.trf.xlu0
    %v1193 = vpop.trf.xlu0
    %v1194 = vpop.trf.xlu0
    %v1195 = vpop.trf.xlu0
    %v1196 = vpop.trf.xlu0
    %v1197 = vpop.trf.xlu0
    %1198 = vxpose.xlu0.c.b16.start [1/8] %v742, 128
    %1199 = vxpose.xlu0.c.b16.cont [2/8] %v743, 128
    %1200 = vxpose.xlu0.c.b16.cont [3/8] %v744, 128
    %1201 = vxpose.xlu0.c.b16.cont [4/8] %v745, 128
    %1202 = vxpose.xlu0.c.b16.cont [5/8] %v746, 128
    %1203 = vxpose.xlu0.c.b16.cont [6/8] %v747, 128
    %1204 = vxpose.xlu0.c.b16.cont [7/8] %v748, 128
    %1205 = vxpose.xlu0.c.b16.end [8/8] %v749, 128
    %v1206 = vpop.trf.xlu0
    %v1207 = vpop.trf.xlu0
    %v1208 = vpop.trf.xlu0
    %v1209 = vpop.trf.xlu0
    %v1210 = vpop.trf.xlu0
    %v1211 = vpop.trf.xlu0
    %v1212 = vpop.trf.xlu0
    %v1213 = vpop.trf.xlu0
    %1214 = vxpose.xlu0.c.b16.start [1/8] %v750, 128
    %1215 = vxpose.xlu0.c.b16.cont [2/8] %v751, 128
    %1216 = vxpose.xlu0.c.b16.cont [3/8] %v752, 128
    %1217 = vxpose.xlu0.c.b16.cont [4/8] %v753, 128
    %1218 = vxpose.xlu0.c.b16.cont [5/8] %v754, 128
    %1219 = vxpose.xlu0.c.b16.cont [6/8] %v755, 128
    %1220 = vxpose.xlu0.c.b16.cont [7/8] %v756, 128
    %1221 = vxpose.xlu0.c.b16.end [8/8] %v757, 128
    %v1222 = vpop.trf.xlu0
    %v1223 = vpop.trf.xlu0
    %v1224 = vpop.trf.xlu0
    %v1225 = vpop.trf.xlu0
    %v1226 = vpop.trf.xlu0
    %v1227 = vpop.trf.xlu0
    %v1228 = vpop.trf.xlu0
    %v1229 = vpop.trf.xlu0
    %1230 = vxpose.xlu0.c.b16.start [1/8] %v758, 128
    %1231 = vxpose.xlu0.c.b16.cont [2/8] %v759, 128
    %1232 = vxpose.xlu0.c.b16.cont [3/8] %v760, 128
    %1233 = vxpose.xlu0.c.b16.cont [4/8] %v761, 128
    %1234 = vxpose.xlu0.c.b16.cont [5/8] %v762, 128
    %1235 = vxpose.xlu0.c.b16.cont [6/8] %v763, 128
    %1236 = vxpose.xlu0.c.b16.cont [7/8] %v764, 128
    %1237 = vxpose.xlu0.c.b16.end [8/8] %v765, 128
    %v1238 = vpop.trf.xlu0
    %v1239 = vpop.trf.xlu0
    %v1240 = vpop.trf.xlu0
    %v1241 = vpop.trf.xlu0
    %v1242 = vpop.trf.xlu0
    %v1243 = vpop.trf.xlu0
    %v1244 = vpop.trf.xlu0
    %v1245 = vpop.trf.xlu0
    %1246 = vxpose.xlu0.c.b16.start [1/8] %v766, 128
    %1247 = vxpose.xlu0.c.b16.cont [2/8] %v767, 128
    %1248 = vxpose.xlu0.c.b16.cont [3/8] %v768, 128
    %1249 = vxpose.xlu0.c.b16.cont [4/8] %v769, 128
    %1250 = vxpose.xlu0.c.b16.cont [5/8] %v770, 128
    %1251 = vxpose.xlu0.c.b16.cont [6/8] %v771, 128
    %1252 = vxpose.xlu0.c.b16.cont [7/8] %v772, 128
    %1253 = vxpose.xlu0.c.b16.end [8/8] %v773, 128
    %v1254 = vpop.trf.xlu0
    %v1255 = vpop.trf.xlu0
    %v1256 = vpop.trf.xlu0
    %v1257 = vpop.trf.xlu0
    %v1258 = vpop.trf.xlu0
    %v1259 = vpop.trf.xlu0
    %v1260 = vpop.trf.xlu0
    %v1261 = vpop.trf.xlu0
    %1262 = vxpose.xlu0.c.b16.start [1/8] %v774, 128
    %1263 = vxpose.xlu0.c.b16.cont [2/8] %v775, 128
    %1264 = vxpose.xlu0.c.b16.cont [3/8] %v776, 128
    %1265 = vxpose.xlu0.c.b16.cont [4/8] %v777, 128
    %1266 = vxpose.xlu0.c.b16.cont [5/8] %v778, 128
    %1267 = vxpose.xlu0.c.b16.cont [6/8] %v779, 128
    %1268 = vxpose.xlu0.c.b16.cont [7/8] %v780, 128
    %1269 = vxpose.xlu0.c.b16.end [8/8] %v781, 128
    %v1270 = vpop.trf.xlu0
    %v1271 = vpop.trf.xlu0
    %v1272 = vpop.trf.xlu0
    %v1273 = vpop.trf.xlu0
    %v1274 = vpop.trf.xlu0
    %v1275 = vpop.trf.xlu0
    %v1276 = vpop.trf.xlu0
    %v1277 = vpop.trf.xlu0
    %1278 = vxpose.xlu0.c.b16.start [1/8] %v782, 128
    %1279 = vxpose.xlu0.c.b16.cont [2/8] %v783, 128
    %1280 = vxpose.xlu0.c.b16.cont [3/8] %v784, 128
    %1281 = vxpose.xlu0.c.b16.cont [4/8] %v785, 128
    %1282 = vxpose.xlu0.c.b16.cont [5/8] %v786, 128
    %1283 = vxpose.xlu0.c.b16.cont [6/8] %v787, 128
    %1284 = vxpose.xlu0.c.b16.cont [7/8] %v788, 128
    %1285 = vxpose.xlu0.c.b16.end [8/8] %v789, 128
    %v1286 = vpop.trf.xlu0
    %v1287 = vpop.trf.xlu0
    %v1288 = vpop.trf.xlu0
    %v1289 = vpop.trf.xlu0
    %v1290 = vpop.trf.xlu0
    %v1291 = vpop.trf.xlu0
    %v1292 = vpop.trf.xlu0
    %v1293 = vpop.trf.xlu0
    %1294 = vxpose.xlu0.c.b16.start [1/8] %v790, 128
    %1295 = vxpose.xlu0.c.b16.cont [2/8] %v791, 128
    %1296 = vxpose.xlu0.c.b16.cont [3/8] %v792, 128
    %1297 = vxpose.xlu0.c.b16.cont [4/8] %v793, 128
    %1298 = vxpose.xlu0.c.b16.cont [5/8] %v794, 128
    %1299 = vxpose.xlu0.c.b16.cont [6/8] %v795, 128
    %1300 = vxpose.xlu0.c.b16.cont [7/8] %v796, 128
    %1301 = vxpose.xlu0.c.b16.end [8/8] %v797, 128
    %v1302 = vpop.trf.xlu0
    %v1303 = vpop.trf.xlu0
    %v1304 = vpop.trf.xlu0
    %v1305 = vpop.trf.xlu0
    %v1306 = vpop.trf.xlu0
    %v1307 = vpop.trf.xlu0
    %v1308 = vpop.trf.xlu0
    %v1309 = vpop.trf.xlu0
    %v1310 = vld [vmem:[%s1] sm:$0xff]
    %v1311 = vld [vmem:[%s1 + $0x8] sm:$0xff]
    %v1312 = vld [vmem:[%s1 + $0x10] sm:$0xff]
    %v1313 = vld [vmem:[%s1 + $0x18] sm:$0xff]
    %v1314 = vld [vmem:[%s1 + $0x20] sm:$0xff]
    %v1315 = vld [vmem:[%s1 + $0x28] sm:$0xff]
    %v1316 = vld [vmem:[%s1 + $0x30] sm:$0xff]
    %v1317 = vld [vmem:[%s1 + $0x38] sm:$0xff]
    %v1318 = vld [vmem:[%s1 + $0x40] sm:$0xff]
    %v1319 = vld [vmem:[%s1 + $0x48] sm:$0xff]
    %v1320 = vld [vmem:[%s1 + $0x50] sm:$0xff]
    %v1321 = vld [vmem:[%s1 + $0x58] sm:$0xff]
    %v1322 = vld [vmem:[%s1 + $0x60] sm:$0xff]
    %v1323 = vld [vmem:[%s1 + $0x68] sm:$0xff]
    %v1324 = vld [vmem:[%s1 + $0x70] sm:$0xff]
    %v1325 = vld [vmem:[%s1 + $0x78] sm:$0xff]
    %v1326 = vld [vmem:[%s1 + $0x80] sm:$0xff]
    %v1327 = vld [vmem:[%s1 + $0x88] sm:$0xff]
    %v1328 = vld [vmem:[%s1 + $0x90] sm:$0xff]
    %v1329 = vld [vmem:[%s1 + $0x98] sm:$0xff]
    %v1330 = vld [vmem:[%s1 + $0xa0] sm:$0xff]
    %v1331 = vld [vmem:[%s1 + $0xa8] sm:$0xff]
    %v1332 = vld [vmem:[%s1 + $0xb0] sm:$0xff]
    %v1333 = vld [vmem:[%s1 + $0xb8] sm:$0xff]
    %v1334 = vld [vmem:[%s1 + $0xc0] sm:$0xff]
    %v1335 = vld [vmem:[%s1 + $0xc8] sm:$0xff]
    %v1336 = vld [vmem:[%s1 + $0xd0] sm:$0xff]
    %v1337 = vld [vmem:[%s1 + $0xd8] sm:$0xff]
    %v1338 = vld [vmem:[%s1 + $0xe0] sm:$0xff]
    %v1339 = vld [vmem:[%s1 + $0xe8] sm:$0xff]
    %v1340 = vld [vmem:[%s1 + $0xf0] sm:$0xff]
    %v1341 = vld [vmem:[%s1 + $0xf8] sm:$0xff]
    %v1342 = vld [vmem:[%s1 + $0x100] sm:$0xff]
    %v1343 = vld [vmem:[%s1 + $0x108] sm:$0xff]
    %v1344 = vld [vmem:[%s1 + $0x110] sm:$0xff]
    %v1345 = vld [vmem:[%s1 + $0x118] sm:$0xff]
    %v1346 = vld [vmem:[%s1 + $0x120] sm:$0xff]
    %v1347 = vld [vmem:[%s1 + $0x128] sm:$0xff]
    %v1348 = vld [vmem:[%s1 + $0x130] sm:$0xff]
    %v1349 = vld [vmem:[%s1 + $0x138] sm:$0xff]
    %v1350 = vld [vmem:[%s1 + $0x140] sm:$0xff]
    %v1351 = vld [vmem:[%s1 + $0x148] sm:$0xff]
    %v1352 = vld [vmem:[%s1 + $0x150] sm:$0xff]
    %v1353 = vld [vmem:[%s1 + $0x158] sm:$0xff]
    %v1354 = vld [vmem:[%s1 + $0x160] sm:$0xff]
    %v1355 = vld [vmem:[%s1 + $0x168] sm:$0xff]
    %v1356 = vld [vmem:[%s1 + $0x170] sm:$0xff]
    %v1357 = vld [vmem:[%s1 + $0x178] sm:$0xff]
    %v1358 = vld [vmem:[%s1 + $0x180] sm:$0xff]
    %v1359 = vld [vmem:[%s1 + $0x188] sm:$0xff]
    %v1360 = vld [vmem:[%s1 + $0x190] sm:$0xff]
    %v1361 = vld [vmem:[%s1 + $0x198] sm:$0xff]
    %v1362 = vld [vmem:[%s1 + $0x1a0] sm:$0xff]
    %v1363 = vld [vmem:[%s1 + $0x1a8] sm:$0xff]
    %v1364 = vld [vmem:[%s1 + $0x1b0] sm:$0xff]
    %v1365 = vld [vmem:[%s1 + $0x1b8] sm:$0xff]
    %v1366 = vld [vmem:[%s1 + $0x1c0] sm:$0xff]
    %v1367 = vld [vmem:[%s1 + $0x1c8] sm:$0xff]
    %v1368 = vld [vmem:[%s1 + $0x1d0] sm:$0xff]
    %v1369 = vld [vmem:[%s1 + $0x1d8] sm:$0xff]
    %v1370 = vld [vmem:[%s1 + $0x1e0] sm:$0xff]
    %v1371 = vld [vmem:[%s1 + $0x1e8] sm:$0xff]
    %v1372 = vld [vmem:[%s1 + $0x1f0] sm:$0xff]
    %v1373 = vld [vmem:[%s1 + $0x1f8] sm:$0xff]
    %v1374 = vld [vmem:[%s1 + $0x200] sm:$0xff]
    %v1375 = vld [vmem:[%s1 + $0x208] sm:$0xff]
    %v1376 = vld [vmem:[%s1 + $0x210] sm:$0xff]
    %v1377 = vld [vmem:[%s1 + $0x218] sm:$0xff]
    %v1378 = vld [vmem:[%s1 + $0x220] sm:$0xff]
    %v1379 = vld [vmem:[%s1 + $0x228] sm:$0xff]
    %v1380 = vld [vmem:[%s1 + $0x230] sm:$0xff]
    %v1381 = vld [vmem:[%s1 + $0x238] sm:$0xff]
    %v1382 = vld [vmem:[%s1 + $0x240] sm:$0xff]
    %v1383 = vld [vmem:[%s1 + $0x248] sm:$0xff]
    %v1384 = vld [vmem:[%s1 + $0x250] sm:$0xff]
    %v1385 = vld [vmem:[%s1 + $0x258] sm:$0xff]
    %v1386 = vld [vmem:[%s1 + $0x260] sm:$0xff]
    %v1387 = vld [vmem:[%s1 + $0x268] sm:$0xff]
    %v1388 = vld [vmem:[%s1 + $0x270] sm:$0xff]
    %v1389 = vld [vmem:[%s1 + $0x278] sm:$0xff]
    %v1390 = vld [vmem:[%s1 + $0x280] sm:$0xff]
    %v1391 = vld [vmem:[%s1 + $0x288] sm:$0xff]
    %v1392 = vld [vmem:[%s1 + $0x290] sm:$0xff]
    %v1393 = vld [vmem:[%s1 + $0x298] sm:$0xff]
    %v1394 = vld [vmem:[%s1 + $0x2a0] sm:$0xff]
    %v1395 = vld [vmem:[%s1 + $0x2a8] sm:$0xff]
    %v1396 = vld [vmem:[%s1 + $0x2b0] sm:$0xff]
    %v1397 = vld [vmem:[%s1 + $0x2b8] sm:$0xff]
    %v1398 = vld [vmem:[%s1 + $0x2c0] sm:$0xff]
    %v1399 = vld [vmem:[%s1 + $0x2c8] sm:$0xff]
    %v1400 = vld [vmem:[%s1 + $0x2d0] sm:$0xff]
    %v1401 = vld [vmem:[%s1 + $0x2d8] sm:$0xff]
    %v1402 = vld [vmem:[%s1 + $0x2e0] sm:$0xff]
    %v1403 = vld [vmem:[%s1 + $0x2e8] sm:$0xff]
    %v1404 = vld [vmem:[%s1 + $0x2f0] sm:$0xff]
    %v1405 = vld [vmem:[%s1 + $0x2f8] sm:$0xff]
    %v1406 = vld [vmem:[%s1 + $0x300] sm:$0xff]
    %v1407 = vld [vmem:[%s1 + $0x308] sm:$0xff]
    %v1408 = vld [vmem:[%s1 + $0x310] sm:$0xff]
    %v1409 = vld [vmem:[%s1 + $0x318] sm:$0xff]
    %v1410 = vld [vmem:[%s1 + $0x320] sm:$0xff]
    %v1411 = vld [vmem:[%s1 + $0x328] sm:$0xff]
    %v1412 = vld [vmem:[%s1 + $0x330] sm:$0xff]
    %v1413 = vld [vmem:[%s1 + $0x338] sm:$0xff]
    %v1414 = vld [vmem:[%s1 + $0x340] sm:$0xff]
    %v1415 = vld [vmem:[%s1 + $0x348] sm:$0xff]
    %v1416 = vld [vmem:[%s1 + $0x350] sm:$0xff]
    %v1417 = vld [vmem:[%s1 + $0x358] sm:$0xff]
    %v1418 = vld [vmem:[%s1 + $0x360] sm:$0xff]
    %v1419 = vld [vmem:[%s1 + $0x368] sm:$0xff]
    %v1420 = vld [vmem:[%s1 + $0x370] sm:$0xff]
    %v1421 = vld [vmem:[%s1 + $0x378] sm:$0xff]
    %v1422 = vld [vmem:[%s1 + $0x380] sm:$0xff]
    %v1423 = vld [vmem:[%s1 + $0x388] sm:$0xff]
    %v1424 = vld [vmem:[%s1 + $0x390] sm:$0xff]
    %v1425 = vld [vmem:[%s1 + $0x398] sm:$0xff]
    %v1426 = vld [vmem:[%s1 + $0x3a0] sm:$0xff]
    %v1427 = vld [vmem:[%s1 + $0x3a8] sm:$0xff]
    %v1428 = vld [vmem:[%s1 + $0x3b0] sm:$0xff]
    %v1429 = vld [vmem:[%s1 + $0x3b8] sm:$0xff]
    %v1430 = vld [vmem:[%s1 + $0x3c0] sm:$0xff]
    %v1431 = vld [vmem:[%s1 + $0x3c8] sm:$0xff]
    %v1432 = vld [vmem:[%s1 + $0x3d0] sm:$0xff]
    %v1433 = vld [vmem:[%s1 + $0x3d8] sm:$0xff]
    %v1434 = vld [vmem:[%s1 + $0x3e0] sm:$0xff]
    %v1435 = vld [vmem:[%s1 + $0x3e8] sm:$0xff]
    %v1436 = vld [vmem:[%s1 + $0x3f0] sm:$0xff]
    %v1437 = vld [vmem:[%s1 + $0x3f8] sm:$0xff]
    %v1438 = vld [vmem:[%s2] sm:$0xf]
    %v1440 = vlaneseq
    %v1441 = vshrl.u32 %v1440, 7
    %v1442 = vsub.s32 0, %v1441
    %v1443 = vrot.slane %v1438, %v1442
    %v1444 = vlaneseq
    %v1445 = vshrl.u32 %v1444, 7
    %v1446 = vsub.s32 1, %v1445
    %v1447 = vrot.slane %v1438, %v1446
    %v1448 = vlaneseq
    %v1449 = vshrl.u32 %v1448, 7
    %v1450 = vsub.s32 2, %v1449
    %v1451 = vrot.slane %v1438, %v1450
    %v1452 = vlaneseq
    %v1453 = vshrl.u32 %v1452, 7
    %v1454 = vsub.s32 3, %v1453
    %v1455 = vrot.slane %v1438, %v1454
    %v1588 = vunpack.c.l.b16 %v1310
    %v1589 = vunpack.c.h.b16 %v1310
    %v1590 = vunpack.c.l.b16 %v1311
    %v1591 = vunpack.c.h.b16 %v1311
    %v1592 = vunpack.c.l.b16 %v1312
    %v1593 = vunpack.c.h.b16 %v1312
    %v1594 = vunpack.c.l.b16 %v1313
    %v1595 = vunpack.c.h.b16 %v1313
    %v1596 = vunpack.c.l.b16 %v1314
    %v1597 = vunpack.c.h.b16 %v1314
    %v1598 = vunpack.c.l.b16 %v1315
    %v1599 = vunpack.c.h.b16 %v1315
    %v1600 = vunpack.c.l.b16 %v1316
    %v1601 = vunpack.c.h.b16 %v1316
    %v1602 = vunpack.c.l.b16 %v1317
    %v1603 = vunpack.c.h.b16 %v1317
    %v1604 = vunpack.c.l.b16 %v1318
    %v1605 = vunpack.c.h.b16 %v1318
    %v1606 = vunpack.c.l.b16 %v1319
    %v1607 = vunpack.c.h.b16 %v1319
    %v1608 = vunpack.c.l.b16 %v1320
    %v1609 = vunpack.c.h.b16 %v1320
    %v1610 = vunpack.c.l.b16 %v1321
    %v1611 = vunpack.c.h.b16 %v1321
    %v1612 = vunpack.c.l.b16 %v1322
    %v1613 = vunpack.c.h.b16 %v1322
    %v1614 = vunpack.c.l.b16 %v1323
    %v1615 = vunpack.c.h.b16 %v1323
    %v1616 = vunpack.c.l.b16 %v1324
    %v1617 = vunpack.c.h.b16 %v1324
    %v1618 = vunpack.c.l.b16 %v1325
    %v1619 = vunpack.c.h.b16 %v1325
    %v1620 = vunpack.c.l.b16 %v1326
    %v1621 = vunpack.c.h.b16 %v1326
    %v1622 = vunpack.c.l.b16 %v1327
    %v1623 = vunpack.c.h.b16 %v1327
    %v1624 = vunpack.c.l.b16 %v1328
    %v1625 = vunpack.c.h.b16 %v1328
    %v1626 = vunpack.c.l.b16 %v1329
    %v1627 = vunpack.c.h.b16 %v1329
    %v1628 = vunpack.c.l.b16 %v1330
    %v1629 = vunpack.c.h.b16 %v1330
    %v1630 = vunpack.c.l.b16 %v1331
    %v1631 = vunpack.c.h.b16 %v1331
    %v1632 = vunpack.c.l.b16 %v1332
    %v1633 = vunpack.c.h.b16 %v1332
    %v1634 = vunpack.c.l.b16 %v1333
    %v1635 = vunpack.c.h.b16 %v1333
    %v1636 = vunpack.c.l.b16 %v1334
    %v1637 = vunpack.c.h.b16 %v1334
    %v1638 = vunpack.c.l.b16 %v1335
    %v1639 = vunpack.c.h.b16 %v1335
    %v1640 = vunpack.c.l.b16 %v1336
    %v1641 = vunpack.c.h.b16 %v1336
    %v1642 = vunpack.c.l.b16 %v1337
    %v1643 = vunpack.c.h.b16 %v1337
    %v1644 = vunpack.c.l.b16 %v1338
    %v1645 = vunpack.c.h.b16 %v1338
    %v1646 = vunpack.c.l.b16 %v1339
    %v1647 = vunpack.c.h.b16 %v1339
    %v1648 = vunpack.c.l.b16 %v1340
    %v1649 = vunpack.c.h.b16 %v1340
    %v1650 = vunpack.c.l.b16 %v1341
    %v1651 = vunpack.c.h.b16 %v1341
    %v1652 = vunpack.c.l.b16 %v1342
    %v1653 = vunpack.c.h.b16 %v1342
    %v1654 = vunpack.c.l.b16 %v1343
    %v1655 = vunpack.c.h.b16 %v1343
    %v1656 = vunpack.c.l.b16 %v1344
    %v1657 = vunpack.c.h.b16 %v1344
    %v1658 = vunpack.c.l.b16 %v1345
    %v1659 = vunpack.c.h.b16 %v1345
    %v1660 = vunpack.c.l.b16 %v1346
    %v1661 = vunpack.c.h.b16 %v1346
    %v1662 = vunpack.c.l.b16 %v1347
    %v1663 = vunpack.c.h.b16 %v1347
    %v1664 = vunpack.c.l.b16 %v1348
    %v1665 = vunpack.c.h.b16 %v1348
    %v1666 = vunpack.c.l.b16 %v1349
    %v1667 = vunpack.c.h.b16 %v1349
    %v1668 = vunpack.c.l.b16 %v1350
    %v1669 = vunpack.c.h.b16 %v1350
    %v1670 = vunpack.c.l.b16 %v1351
    %v1671 = vunpack.c.h.b16 %v1351
    %v1672 = vunpack.c.l.b16 %v1352
    %v1673 = vunpack.c.h.b16 %v1352
    %v1674 = vunpack.c.l.b16 %v1353
    %v1675 = vunpack.c.h.b16 %v1353
    %v1676 = vunpack.c.l.b16 %v1354
    %v1677 = vunpack.c.h.b16 %v1354
    %v1678 = vunpack.c.l.b16 %v1355
    %v1679 = vunpack.c.h.b16 %v1355
    %v1680 = vunpack.c.l.b16 %v1356
    %v1681 = vunpack.c.h.b16 %v1356
    %v1682 = vunpack.c.l.b16 %v1357
    %v1683 = vunpack.c.h.b16 %v1357
    %v1684 = vunpack.c.l.b16 %v1358
    %v1685 = vunpack.c.h.b16 %v1358
    %v1686 = vunpack.c.l.b16 %v1359
    %v1687 = vunpack.c.h.b16 %v1359
    %v1688 = vunpack.c.l.b16 %v1360
    %v1689 = vunpack.c.h.b16 %v1360
    %v1690 = vunpack.c.l.b16 %v1361
    %v1691 = vunpack.c.h.b16 %v1361
    %v1692 = vunpack.c.l.b16 %v1362
    %v1693 = vunpack.c.h.b16 %v1362
    %v1694 = vunpack.c.l.b16 %v1363
    %v1695 = vunpack.c.h.b16 %v1363
    %v1696 = vunpack.c.l.b16 %v1364
    %v1697 = vunpack.c.h.b16 %v1364
    %v1698 = vunpack.c.l.b16 %v1365
    %v1699 = vunpack.c.h.b16 %v1365
    %v1700 = vunpack.c.l.b16 %v1366
    %v1701 = vunpack.c.h.b16 %v1366
    %v1702 = vunpack.c.l.b16 %v1367
    %v1703 = vunpack.c.h.b16 %v1367
    %v1704 = vunpack.c.l.b16 %v1368
    %v1705 = vunpack.c.h.b16 %v1368
    %v1706 = vunpack.c.l.b16 %v1369
    %v1707 = vunpack.c.h.b16 %v1369
    %v1708 = vunpack.c.l.b16 %v1370
    %v1709 = vunpack.c.h.b16 %v1370
    %v1710 = vunpack.c.l.b16 %v1371
    %v1711 = vunpack.c.h.b16 %v1371
    %v1712 = vunpack.c.l.b16 %v1372
    %v1713 = vunpack.c.h.b16 %v1372
    %v1714 = vunpack.c.l.b16 %v1373
    %v1715 = vunpack.c.h.b16 %v1373
    %v1716 = vunpack.c.l.b16 %v1374
    %v1717 = vunpack.c.h.b16 %v1374
    %v1718 = vunpack.c.l.b16 %v1375
    %v1719 = vunpack.c.h.b16 %v1375
    %v1720 = vunpack.c.l.b16 %v1376
    %v1721 = vunpack.c.h.b16 %v1376
    %v1722 = vunpack.c.l.b16 %v1377
    %v1723 = vunpack.c.h.b16 %v1377
    %v1724 = vunpack.c.l.b16 %v1378
    %v1725 = vunpack.c.h.b16 %v1378
    %v1726 = vunpack.c.l.b16 %v1379
    %v1727 = vunpack.c.h.b16 %v1379
    %v1728 = vunpack.c.l.b16 %v1380
    %v1729 = vunpack.c.h.b16 %v1380
    %v1730 = vunpack.c.l.b16 %v1381
    %v1731 = vunpack.c.h.b16 %v1381
    %v1732 = vunpack.c.l.b16 %v1382
    %v1733 = vunpack.c.h.b16 %v1382
    %v1734 = vunpack.c.l.b16 %v1383
    %v1735 = vunpack.c.h.b16 %v1383
    %v1736 = vunpack.c.l.b16 %v1384
    %v1737 = vunpack.c.h.b16 %v1384
    %v1738 = vunpack.c.l.b16 %v1385
    %v1739 = vunpack.c.h.b16 %v1385
    %v1740 = vunpack.c.l.b16 %v1386
    %v1741 = vunpack.c.h.b16 %v1386
    %v1742 = vunpack.c.l.b16 %v1387
    %v1743 = vunpack.c.h.b16 %v1387
    %v1744 = vunpack.c.l.b16 %v1388
    %v1745 = vunpack.c.h.b16 %v1388
    %v1746 = vunpack.c.l.b16 %v1389
    %v1747 = vunpack.c.h.b16 %v1389
    %v1748 = vunpack.c.l.b16 %v1390
    %v1749 = vunpack.c.h.b16 %v1390
    %v1750 = vunpack.c.l.b16 %v1391
    %v1751 = vunpack.c.h.b16 %v1391
    %v1752 = vunpack.c.l.b16 %v1392
    %v1753 = vunpack.c.h.b16 %v1392
    %v1754 = vunpack.c.l.b16 %v1393
    %v1755 = vunpack.c.h.b16 %v1393
    %v1756 = vunpack.c.l.b16 %v1394
    %v1757 = vunpack.c.h.b16 %v1394
    %v1758 = vunpack.c.l.b16 %v1395
    %v1759 = vunpack.c.h.b16 %v1395
    %v1760 = vunpack.c.l.b16 %v1396
    %v1761 = vunpack.c.h.b16 %v1396
    %v1762 = vunpack.c.l.b16 %v1397
    %v1763 = vunpack.c.h.b16 %v1397
    %v1764 = vunpack.c.l.b16 %v1398
    %v1765 = vunpack.c.h.b16 %v1398
    %v1766 = vunpack.c.l.b16 %v1399
    %v1767 = vunpack.c.h.b16 %v1399
    %v1768 = vunpack.c.l.b16 %v1400
    %v1769 = vunpack.c.h.b16 %v1400
    %v1770 = vunpack.c.l.b16 %v1401
    %v1771 = vunpack.c.h.b16 %v1401
    %v1772 = vunpack.c.l.b16 %v1402
    %v1773 = vunpack.c.h.b16 %v1402
    %v1774 = vunpack.c.l.b16 %v1403
    %v1775 = vunpack.c.h.b16 %v1403
    %v1776 = vunpack.c.l.b16 %v1404
    %v1777 = vunpack.c.h.b16 %v1404
    %v1778 = vunpack.c.l.b16 %v1405
    %v1779 = vunpack.c.h.b16 %v1405
    %v1780 = vunpack.c.l.b16 %v1406
    %v1781 = vunpack.c.h.b16 %v1406
    %v1782 = vunpack.c.l.b16 %v1407
    %v1783 = vunpack.c.h.b16 %v1407
    %v1784 = vunpack.c.l.b16 %v1408
    %v1785 = vunpack.c.h.b16 %v1408
    %v1786 = vunpack.c.l.b16 %v1409
    %v1787 = vunpack.c.h.b16 %v1409
    %v1788 = vunpack.c.l.b16 %v1410
    %v1789 = vunpack.c.h.b16 %v1410
    %v1790 = vunpack.c.l.b16 %v1411
    %v1791 = vunpack.c.h.b16 %v1411
    %v1792 = vunpack.c.l.b16 %v1412
    %v1793 = vunpack.c.h.b16 %v1412
    %v1794 = vunpack.c.l.b16 %v1413
    %v1795 = vunpack.c.h.b16 %v1413
    %v1796 = vunpack.c.l.b16 %v1414
    %v1797 = vunpack.c.h.b16 %v1414
    %v1798 = vunpack.c.l.b16 %v1415
    %v1799 = vunpack.c.h.b16 %v1415
    %v1800 = vunpack.c.l.b16 %v1416
    %v1801 = vunpack.c.h.b16 %v1416
    %v1802 = vunpack.c.l.b16 %v1417
    %v1803 = vunpack.c.h.b16 %v1417
    %v1804 = vunpack.c.l.b16 %v1418
    %v1805 = vunpack.c.h.b16 %v1418
    %v1806 = vunpack.c.l.b16 %v1419
    %v1807 = vunpack.c.h.b16 %v1419
    %v1808 = vunpack.c.l.b16 %v1420
    %v1809 = vunpack.c.h.b16 %v1420
    %v1810 = vunpack.c.l.b16 %v1421
    %v1811 = vunpack.c.h.b16 %v1421
    %v1812 = vunpack.c.l.b16 %v1422
    %v1813 = vunpack.c.h.b16 %v1422
    %v1814 = vunpack.c.l.b16 %v1423
    %v1815 = vunpack.c.h.b16 %v1423
    %v1816 = vunpack.c.l.b16 %v1424
    %v1817 = vunpack.c.h.b16 %v1424
    %v1818 = vunpack.c.l.b16 %v1425
    %v1819 = vunpack.c.h.b16 %v1425
    %v1820 = vunpack.c.l.b16 %v1426
    %v1821 = vunpack.c.h.b16 %v1426
    %v1822 = vunpack.c.l.b16 %v1427
    %v1823 = vunpack.c.h.b16 %v1427
    %v1824 = vunpack.c.l.b16 %v1428
    %v1825 = vunpack.c.h.b16 %v1428
    %v1826 = vunpack.c.l.b16 %v1429
    %v1827 = vunpack.c.h.b16 %v1429
    %v1828 = vunpack.c.l.b16 %v1430
    %v1829 = vunpack.c.h.b16 %v1430
    %v1830 = vunpack.c.l.b16 %v1431
    %v1831 = vunpack.c.h.b16 %v1431
    %v1832 = vunpack.c.l.b16 %v1432
    %v1833 = vunpack.c.h.b16 %v1432
    %v1834 = vunpack.c.l.b16 %v1433
    %v1835 = vunpack.c.h.b16 %v1433
    %v1836 = vunpack.c.l.b16 %v1434
    %v1837 = vunpack.c.h.b16 %v1434
    %v1838 = vunpack.c.l.b16 %v1435
    %v1839 = vunpack.c.h.b16 %v1435
    %v1840 = vunpack.c.l.b16 %v1436
    %v1841 = vunpack.c.h.b16 %v1436
    %v1842 = vunpack.c.l.b16 %v1437
    %v1843 = vunpack.c.h.b16 %v1437
    %v1844 = vpack.c.b16 %v1592, %v1588
    %v1845 = vpack.c.b16 %v1593, %v1589
    %v1846 = vpack.c.b16 %v1594, %v1590
    %v1847 = vpack.c.b16 %v1595, %v1591
    %v1848 = vpack.c.b16 %v1600, %v1596
    %v1849 = vpack.c.b16 %v1601, %v1597
    %v1850 = vpack.c.b16 %v1602, %v1598
    %v1851 = vpack.c.b16 %v1603, %v1599
    %v1852 = vpack.c.b16 %v1608, %v1604
    %v1853 = vpack.c.b16 %v1609, %v1605
    %v1854 = vpack.c.b16 %v1610, %v1606
    %v1855 = vpack.c.b16 %v1611, %v1607
    %v1856 = vpack.c.b16 %v1616, %v1612
    %v1857 = vpack.c.b16 %v1617, %v1613
    %v1858 = vpack.c.b16 %v1618, %v1614
    %v1859 = vpack.c.b16 %v1619, %v1615
    %v1860 = vpack.c.b16 %v1624, %v1620
    %v1861 = vpack.c.b16 %v1625, %v1621
    %v1862 = vpack.c.b16 %v1626, %v1622
    %v1863 = vpack.c.b16 %v1627, %v1623
    %v1864 = vpack.c.b16 %v1632, %v1628
    %v1865 = vpack.c.b16 %v1633, %v1629
    %v1866 = vpack.c.b16 %v1634, %v1630
    %v1867 = vpack.c.b16 %v1635, %v1631
    %v1868 = vpack.c.b16 %v1640, %v1636
    %v1869 = vpack.c.b16 %v1641, %v1637
    %v1870 = vpack.c.b16 %v1642, %v1638
    %v1871 = vpack.c.b16 %v1643, %v1639
    %v1872 = vpack.c.b16 %v1648, %v1644
    %v1873 = vpack.c.b16 %v1649, %v1645
    %v1874 = vpack.c.b16 %v1650, %v1646
    %v1875 = vpack.c.b16 %v1651, %v1647
    %v1876 = vpack.c.b16 %v1656, %v1652
    %v1877 = vpack.c.b16 %v1657, %v1653
    %v1878 = vpack.c.b16 %v1658, %v1654
    %v1879 = vpack.c.b16 %v1659, %v1655
    %v1880 = vpack.c.b16 %v1664, %v1660
    %v1881 = vpack.c.b16 %v1665, %v1661
    %v1882 = vpack.c.b16 %v1666, %v1662
    %v1883 = vpack.c.b16 %v1667, %v1663
    %v1884 = vpack.c.b16 %v1672, %v1668
    %v1885 = vpack.c.b16 %v1673, %v1669
    %v1886 = vpack.c.b16 %v1674, %v1670
    %v1887 = vpack.c.b16 %v1675, %v1671
    %v1888 = vpack.c.b16 %v1680, %v1676
    %v1889 = vpack.c.b16 %v1681, %v1677
    %v1890 = vpack.c.b16 %v1682, %v1678
    %v1891 = vpack.c.b16 %v1683, %v1679
    %v1892 = vpack.c.b16 %v1688, %v1684
    %v1893 = vpack.c.b16 %v1689, %v1685
    %v1894 = vpack.c.b16 %v1690, %v1686
    %v1895 = vpack.c.b16 %v1691, %v1687
    %v1896 = vpack.c.b16 %v1696, %v1692
    %v1897 = vpack.c.b16 %v1697, %v1693
    %v1898 = vpack.c.b16 %v1698, %v1694
    %v1899 = vpack.c.b16 %v1699, %v1695
    %v1900 = vpack.c.b16 %v1704, %v1700
    %v1901 = vpack.c.b16 %v1705, %v1701
    %v1902 = vpack.c.b16 %v1706, %v1702
    %v1903 = vpack.c.b16 %v1707, %v1703
    %v1904 = vpack.c.b16 %v1712, %v1708
    %v1905 = vpack.c.b16 %v1713, %v1709
    %v1906 = vpack.c.b16 %v1714, %v1710
    %v1907 = vpack.c.b16 %v1715, %v1711
    %v1908 = vpack.c.b16 %v1720, %v1716
    %v1909 = vpack.c.b16 %v1721, %v1717
    %v1910 = vpack.c.b16 %v1722, %v1718
    %v1911 = vpack.c.b16 %v1723, %v1719
    %v1912 = vpack.c.b16 %v1728, %v1724
    %v1913 = vpack.c.b16 %v1729, %v1725
    %v1914 = vpack.c.b16 %v1730, %v1726
    %v1915 = vpack.c.b16 %v1731, %v1727
    %v1916 = vpack.c.b16 %v1736, %v1732
    %v1917 = vpack.c.b16 %v1737, %v1733
    %v1918 = vpack.c.b16 %v1738, %v1734
    %v1919 = vpack.c.b16 %v1739, %v1735
    %v1920 = vpack.c.b16 %v1744, %v1740
    %v1921 = vpack.c.b16 %v1745, %v1741
    %v1922 = vpack.c.b16 %v1746, %v1742
    %v1923 = vpack.c.b16 %v1747, %v1743
    %v1924 = vpack.c.b16 %v1752, %v1748
    %v1925 = vpack.c.b16 %v1753, %v1749
    %v1926 = vpack.c.b16 %v1754, %v1750
    %v1927 = vpack.c.b16 %v1755, %v1751
    %v1928 = vpack.c.b16 %v1760, %v1756
    %v1929 = vpack.c.b16 %v1761, %v1757
    %v1930 = vpack.c.b16 %v1762, %v1758
    %v1931 = vpack.c.b16 %v1763, %v1759
    %v1932 = vpack.c.b16 %v1768, %v1764
    %v1933 = vpack.c.b16 %v1769, %v1765
    %v1934 = vpack.c.b16 %v1770, %v1766
    %v1935 = vpack.c.b16 %v1771, %v1767
    %v1936 = vpack.c.b16 %v1776, %v1772
    %v1937 = vpack.c.b16 %v1777, %v1773
    %v1938 = vpack.c.b16 %v1778, %v1774
    %v1939 = vpack.c.b16 %v1779, %v1775
    %v1940 = vpack.c.b16 %v1784, %v1780
    %v1941 = vpack.c.b16 %v1785, %v1781
    %v1942 = vpack.c.b16 %v1786, %v1782
    %v1943 = vpack.c.b16 %v1787, %v1783
    %v1944 = vpack.c.b16 %v1792, %v1788
    %v1945 = vpack.c.b16 %v1793, %v1789
    %v1946 = vpack.c.b16 %v1794, %v1790
    %v1947 = vpack.c.b16 %v1795, %v1791
    %v1948 = vpack.c.b16 %v1800, %v1796
    %v1949 = vpack.c.b16 %v1801, %v1797
    %v1950 = vpack.c.b16 %v1802, %v1798
    %v1951 = vpack.c.b16 %v1803, %v1799
    %v1952 = vpack.c.b16 %v1808, %v1804
    %v1953 = vpack.c.b16 %v1809, %v1805
    %v1954 = vpack.c.b16 %v1810, %v1806
    %v1955 = vpack.c.b16 %v1811, %v1807
    %v1956 = vpack.c.b16 %v1816, %v1812
    %v1957 = vpack.c.b16 %v1817, %v1813
    %v1958 = vpack.c.b16 %v1818, %v1814
    %v1959 = vpack.c.b16 %v1819, %v1815
    %v1960 = vpack.c.b16 %v1824, %v1820
    %v1961 = vpack.c.b16 %v1825, %v1821
    %v1962 = vpack.c.b16 %v1826, %v1822
    %v1963 = vpack.c.b16 %v1827, %v1823
    %v1964 = vpack.c.b16 %v1832, %v1828
    %v1965 = vpack.c.b16 %v1833, %v1829
    %v1966 = vpack.c.b16 %v1834, %v1830
    %v1967 = vpack.c.b16 %v1835, %v1831
    %v1968 = vpack.c.b16 %v1840, %v1836
    %v1969 = vpack.c.b16 %v1841, %v1837
    %v1970 = vpack.c.b16 %v1842, %v1838
    %v1971 = vpack.c.b16 %v1843, %v1839
    %2100 = vmatprep.subr.bf16.mxu0 %v1845
    %2101 = vmatpush1.bf16.msra.mxu0 %v1844
    %2102 = vmatprep.subr.bf16.mxu0 %v1849
    %2103 = vmatpush1.bf16.msra.mxu0 %v1848
    %2104 = vmatprep.subr.bf16.mxu0 %v1853
    %2105 = vmatpush1.bf16.msra.mxu0 %v1852
    %2106 = vmatprep.subr.bf16.mxu0 %v1857
    %2107 = vmatpush1.bf16.msra.mxu0 %v1856
    %2108 = vmatprep.subr.bf16.mxu0 %v1861
    %2109 = vmatpush1.bf16.msra.mxu0 %v1860
    %2110 = vmatprep.subr.bf16.mxu0 %v1865
    %2111 = vmatpush1.bf16.msra.mxu0 %v1864
    %2112 = vmatprep.subr.bf16.mxu0 %v1869
    %2113 = vmatpush1.bf16.msra.mxu0 %v1868
    %2114 = vmatprep.subr.bf16.mxu0 %v1873
    %2115 = vmatpush1.bf16.msra.mxu0 %v1872
    %2116 = vmatprep.subr.bf16.mxu0 %v1877
    %2117 = vmatpush1.bf16.msra.mxu0 %v1876
    %2118 = vmatprep.subr.bf16.mxu0 %v1881
    %2119 = vmatpush1.bf16.msra.mxu0 %v1880
    %2120 = vmatprep.subr.bf16.mxu0 %v1885
    %2121 = vmatpush1.bf16.msra.mxu0 %v1884
    %2122 = vmatprep.subr.bf16.mxu0 %v1889
    %2123 = vmatpush1.bf16.msra.mxu0 %v1888
    %2124 = vmatprep.subr.bf16.mxu0 %v1893
    %2125 = vmatpush1.bf16.msra.mxu0 %v1892
    %2126 = vmatprep.subr.bf16.mxu0 %v1897
    %2127 = vmatpush1.bf16.msra.mxu0 %v1896
    %2128 = vmatprep.subr.bf16.mxu0 %v1901
    %2129 = vmatpush1.bf16.msra.mxu0 %v1900
    %2130 = vmatprep.subr.bf16.mxu0 %v1905
    %2131 = vmatpush1.bf16.msra.mxu0 %v1904
    %2132 = vmatprep.mubr.bf16.mxu0 %v822
    %2133 = vmatmul.mubr.bf16.gmra.mrb[0].mxu0 %v806
    %v2134 = vpop.f32.mrb[0].mxu0
    %v2135 = vadd.f32 %v1443, %v2134
    %v2136 = vpop.f32.mrb[0].mxu0
    %v2137 = vadd.f32 %v1447, %v2136
    %v2138 = vpop.f32.mrb[0].mxu0
    %v2139 = vadd.f32 %v1443, %v2138
    %v2140 = vpop.f32.mrb[0].mxu0
    %v2141 = vadd.f32 %v1447, %v2140
    %2142 = vmatprep.mubr.bf16.mxu0 %v823
    %2143 = vmatmul.mubr.bf16.gmra.mrb[0].mxu0 %v807
    %v2144 = vpop.f32.mrb[0].mxu0
    %v2145 = vadd.f32 %v1443, %v2144
    %v2146 = vpop.f32.mrb[0].mxu0
    %v2147 = vadd.f32 %v1447, %v2146
    %v2148 = vpop.f32.mrb[0].mxu0
    %v2149 = vadd.f32 %v1443, %v2148
    %v2150 = vpop.f32.mrb[0].mxu0
    %v2151 = vadd.f32 %v1447, %v2150
    %2152 = vmatprep.mubr.bf16.mxu0 %v824
    %2153 = vmatmul.mubr.bf16.gmra.mrb[0].mxu0 %v808
    %v2154 = vpop.f32.mrb[0].mxu0
    %v2155 = vadd.f32 %v1443, %v2154
    %v2156 = vpop.f32.mrb[0].mxu0
    %v2157 = vadd.f32 %v1447, %v2156
    %v2158 = vpop.f32.mrb[0].mxu0
    %v2159 = vadd.f32 %v1443, %v2158
    %v2160 = vpop.f32.mrb[0].mxu0
    %v2161 = vadd.f32 %v1447, %v2160
    %2162 = vmatprep.mubr.bf16.mxu0 %v825
    %2163 = vmatmul.mubr.bf16.gmra.mrb[0].mxu0 %v809
    %v2164 = vpop.f32.mrb[0].mxu0
    %v2165 = vadd.f32 %v1443, %v2164
    %v2166 = vpop.f32.mrb[0].mxu0
    %v2167 = vadd.f32 %v1447, %v2166
    %v2168 = vpop.f32.mrb[0].mxu0
    %v2169 = vadd.f32 %v1443, %v2168
    %v2170 = vpop.f32.mrb[0].mxu0
    %v2171 = vadd.f32 %v1447, %v2170
    %2172 = vmatprep.mubr.bf16.mxu0 %v886
    %2173 = vmatmul.mubr.bf16.gmra.mrb[0].mxu0 %v870
    %v2174 = vpop.f32.mrb[0].mxu0
    %v2175 = vadd.f32 %v1443, %v2174
    %v2176 = vpop.f32.mrb[0].mxu0
    %v2177 = vadd.f32 %v1447, %v2176
    %v2178 = vpop.f32.mrb[0].mxu0
    %v2179 = vadd.f32 %v1443, %v2178
    %v2180 = vpop.f32.mrb[0].mxu0
    %v2181 = vadd.f32 %v1447, %v2180
    %2182 = vmatprep.mubr.bf16.mxu0 %v887
    %2183 = vmatmul.mubr.bf16.gmra.mrb[0].mxu0 %v871
    %v2184 = vpop.f32.mrb[0].mxu0
    %v2185 = vadd.f32 %v1443, %v2184
    %v2186 = vpop.f32.mrb[0].mxu0
    %v2187 = vadd.f32 %v1447, %v2186
    %v2188 = vpop.f32.mrb[0].mxu0
    %v2189 = vadd.f32 %v1443, %v2188
    %v2190 = vpop.f32.mrb[0].mxu0
    %v2191 = vadd.f32 %v1447, %v2190
    %2192 = vmatprep.mubr.bf16.mxu0 %v888
    %2193 = vmatmul.mubr.bf16.gmra.mrb[0].mxu0 %v872
    %v2194 = vpop.f32.mrb[0].mxu0
    %v2195 = vadd.f32 %v1443, %v2194
    %v2196 = vpop.f32.mrb[0].mxu0
    %v2197 = vadd.f32 %v1447, %v2196
    %v2198 = vpop.f32.mrb[0].mxu0
    %v2199 = vadd.f32 %v1443, %v2198
    %v2200 = vpop.f32.mrb[0].mxu0
    %v2201 = vadd.f32 %v1447, %v2200
    %2202 = vmatprep.mubr.bf16.mxu0 %v889
    %2203 = vmatmul.mubr.bf16.gmra.mrb[0].mxu0 %v873
    %v2204 = vpop.f32.mrb[0].mxu0
    %v2205 = vadd.f32 %v1443, %v2204
    %v2206 = vpop.f32.mrb[0].mxu0
    %v2207 = vadd.f32 %v1447, %v2206
    %v2208 = vpop.f32.mrb[0].mxu0
    %v2209 = vadd.f32 %v1443, %v2208
    %v2210 = vpop.f32.mrb[0].mxu0
    %v2211 = vadd.f32 %v1447, %v2210
    %2212 = vmatprep.mubr.bf16.mxu0 %v950
    %2213 = vmatmul.mubr.bf16.gmra.mrb[0].mxu0 %v934
    %v2214 = vpop.f32.mrb[0].mxu0
    %v2215 = vadd.f32 %v1443, %v2214
    %v2216 = vpop.f32.mrb[0].mxu0
    %v2217 = vadd.f32 %v1447, %v2216
    %v2218 = vpop.f32.mrb[0].mxu0
    %v2219 = vadd.f32 %v1443, %v2218
    %v2220 = vpop.f32.mrb[0].mxu0
    %v2221 = vadd.f32 %v1447, %v2220
    %2222 = vmatprep.mubr.bf16.mxu0 %v951
    %2223 = vmatmul.mubr.bf16.gmra.mrb[0].mxu0 %v935
    %v2224 = vpop.f32.mrb[0].mxu0
    %v2225 = vadd.f32 %v1443, %v2224
    %v2226 = vpop.f32.mrb[0].mxu0
    %v2227 = vadd.f32 %v1447, %v2226
    %v2228 = vpop.f32.mrb[0].mxu0
    %v2229 = vadd.f32 %v1443, %v2228
    %v2230 = vpop.f32.mrb[0].mxu0
    %v2231 = vadd.f32 %v1447, %v2230
    %2232 = vmatprep.mubr.bf16.mxu0 %v952
    %2233 = vmatmul.mubr.bf16.gmra.mrb[0].mxu0 %v936
    %v2234 = vpop.f32.mrb[0].mxu0
    %v2235 = vadd.f32 %v1443, %v2234
    %v2236 = vpop.f32.mrb[0].mxu0
    %v2237 = vadd.f32 %v1447, %v2236
    %v2238 = vpop.f32.mrb[0].mxu0
    %v2239 = vadd.f32 %v1443, %v2238
    %v2240 = vpop.f32.mrb[0].mxu0
    %v2241 = vadd.f32 %v1447, %v2240
    %2242 = vmatprep.mubr.bf16.mxu0 %v953
    %2243 = vmatmul.mubr.bf16.gmra.mrb[0].mxu0 %v937
    %v2244 = vpop.f32.mrb[0].mxu0
    %v2245 = vadd.f32 %v1443, %v2244
    %v2246 = vpop.f32.mrb[0].mxu0
    %v2247 = vadd.f32 %v1447, %v2246
    %v2248 = vpop.f32.mrb[0].mxu0
    %v2249 = vadd.f32 %v1443, %v2248
    %v2250 = vpop.f32.mrb[0].mxu0
    %v2251 = vadd.f32 %v1447, %v2250
    %2252 = vmatprep.mubr.bf16.mxu0 %v1014
    %2253 = vmatmul.mubr.bf16.gmra.mrb[0].mxu0 %v998
    %v2254 = vpop.f32.mrb[0].mxu0
    %v2255 = vadd.f32 %v1443, %v2254
    %v2256 = vpop.f32.mrb[0].mxu0
    %v2257 = vadd.f32 %v1447, %v2256
    %v2258 = vpop.f32.mrb[0].mxu0
    %v2259 = vadd.f32 %v1443, %v2258
    %v2260 = vpop.f32.mrb[0].mxu0
    %v2261 = vadd.f32 %v1447, %v2260
    %2262 = vmatprep.mubr.bf16.mxu0 %v1015
    %2263 = vmatmul.mubr.bf16.gmra.mrb[0].mxu0 %v999
    %v2264 = vpop.f32.mrb[0].mxu0
    %v2265 = vadd.f32 %v1443, %v2264
    %v2266 = vpop.f32.mrb[0].mxu0
    %v2267 = vadd.f32 %v1447, %v2266
    %v2268 = vpop.f32.mrb[0].mxu0
    %v2269 = vadd.f32 %v1443, %v2268
    %v2270 = vpop.f32.mrb[0].mxu0
    %v2271 = vadd.f32 %v1447, %v2270
    %2272 = vmatprep.mubr.bf16.mxu0 %v1016
    %2273 = vmatmul.mubr.bf16.gmra.mrb[0].mxu0 %v1000
    %v2274 = vpop.f32.mrb[0].mxu0
    %v2275 = vadd.f32 %v1443, %v2274
    %v2276 = vpop.f32.mrb[0].mxu0
    %v2277 = vadd.f32 %v1447, %v2276
    %v2278 = vpop.f32.mrb[0].mxu0
    %v2279 = vadd.f32 %v1443, %v2278
    %v2280 = vpop.f32.mrb[0].mxu0
    %v2281 = vadd.f32 %v1447, %v2280
    %2282 = vmatprep.mubr.bf16.mxu0 %v1017
    %2283 = vmatmul.mubr.bf16.gmra.mrb[0].mxu0 %v1001
    %v2284 = vpop.f32.mrb[0].mxu0
    %v2285 = vadd.f32 %v1443, %v2284
    %v2286 = vpop.f32.mrb[0].mxu0
    %v2287 = vadd.f32 %v1447, %v2286
    %v2288 = vpop.f32.mrb[0].mxu0
    %v2289 = vadd.f32 %v1443, %v2288
    %v2290 = vpop.f32.mrb[0].mxu0
    %v2291 = vadd.f32 %v1447, %v2290
    %2292 = vmatprep.mubr.bf16.mxu0 %v1078
    %2293 = vmatmul.mubr.bf16.gmra.mrb[0].mxu0 %v1062
    %v2294 = vpop.f32.mrb[0].mxu0
    %v2295 = vadd.f32 %v1443, %v2294
    %v2296 = vpop.f32.mrb[0].mxu0
    %v2297 = vadd.f32 %v1447, %v2296
    %v2298 = vpop.f32.mrb[0].mxu0
    %v2299 = vadd.f32 %v1443, %v2298
    %v2300 = vpop.f32.mrb[0].mxu0
    %v2301 = vadd.f32 %v1447, %v2300
    %2302 = vmatprep.mubr.bf16.mxu0 %v1079
    %2303 = vmatmul.mubr.bf16.gmra.mrb[0].mxu0 %v1063
    %v2304 = vpop.f32.mrb[0].mxu0
    %v2305 = vadd.f32 %v1443, %v2304
    %v2306 = vpop.f32.mrb[0].mxu0
    %v2307 = vadd.f32 %v1447, %v2306
    %v2308 = vpop.f32.mrb[0].mxu0
    %v2309 = vadd.f32 %v1443, %v2308
    %v2310 = vpop.f32.mrb[0].mxu0
    %v2311 = vadd.f32 %v1447, %v2310
    %2312 = vmatprep.mubr.bf16.mxu0 %v1080
    %2313 = vmatmul.mubr.bf16.gmra.mrb[0].mxu0 %v1064
    %v2314 = vpop.f32.mrb[0].mxu0
    %v2315 = vadd.f32 %v1443, %v2314
    %v2316 = vpop.f32.mrb[0].mxu0
    %v2317 = vadd.f32 %v1447, %v2316
    %v2318 = vpop.f32.mrb[0].mxu0
    %v2319 = vadd.f32 %v1443, %v2318
    %v2320 = vpop.f32.mrb[0].mxu0
    %v2321 = vadd.f32 %v1447, %v2320
    %2322 = vmatprep.mubr.bf16.mxu0 %v1081
    %2323 = vmatmul.mubr.bf16.gmra.mrb[0].mxu0 %v1065
    %v2324 = vpop.f32.mrb[0].mxu0
    %v2325 = vadd.f32 %v1443, %v2324
    %v2326 = vpop.f32.mrb[0].mxu0
    %v2327 = vadd.f32 %v1447, %v2326
    %v2328 = vpop.f32.mrb[0].mxu0
    %v2329 = vadd.f32 %v1443, %v2328
    %v2330 = vpop.f32.mrb[0].mxu0
    %v2331 = vadd.f32 %v1447, %v2330
    %2332 = vmatprep.mubr.bf16.mxu0 %v1142
    %2333 = vmatmul.mubr.bf16.gmra.mrb[0].mxu0 %v1126
    %v2334 = vpop.f32.mrb[0].mxu0
    %v2335 = vadd.f32 %v1443, %v2334
    %v2336 = vpop.f32.mrb[0].mxu0
    %v2337 = vadd.f32 %v1447, %v2336
    %v2338 = vpop.f32.mrb[0].mxu0
    %v2339 = vadd.f32 %v1443, %v2338
    %v2340 = vpop.f32.mrb[0].mxu0
    %v2341 = vadd.f32 %v1447, %v2340
    %2342 = vmatprep.mubr.bf16.mxu0 %v1143
    %2343 = vmatmul.mubr.bf16.gmra.mrb[0].mxu0 %v1127
    %v2344 = vpop.f32.mrb[0].mxu0
    %v2345 = vadd.f32 %v1443, %v2344
    %v2346 = vpop.f32.mrb[0].mxu0
    %v2347 = vadd.f32 %v1447, %v2346
    %v2348 = vpop.f32.mrb[0].mxu0
    %v2349 = vadd.f32 %v1443, %v2348
    %v2350 = vpop.f32.mrb[0].mxu0
    %v2351 = vadd.f32 %v1447, %v2350
    %2352 = vmatprep.mubr.bf16.mxu0 %v1144
    %2353 = vmatmul.mubr.bf16.gmra.mrb[0].mxu0 %v1128
    %v2354 = vpop.f32.mrb[0].mxu0
    %v2355 = vadd.f32 %v1443, %v2354
    %v2356 = vpop.f32.mrb[0].mxu0
    %v2357 = vadd.f32 %v1447, %v2356
    %v2358 = vpop.f32.mrb[0].mxu0
    %v2359 = vadd.f32 %v1443, %v2358
    %v2360 = vpop.f32.mrb[0].mxu0
    %v2361 = vadd.f32 %v1447, %v2360
    %2362 = vmatprep.mubr.bf16.mxu0 %v1145
    %2363 = vmatmul.mubr.bf16.gmra.mrb[0].mxu0 %v1129
    %v2364 = vpop.f32.mrb[0].mxu0
    %v2365 = vadd.f32 %v1443, %v2364
    %v2366 = vpop.f32.mrb[0].mxu0
    %v2367 = vadd.f32 %v1447, %v2366
    %v2368 = vpop.f32.mrb[0].mxu0
    %v2369 = vadd.f32 %v1443, %v2368
    %v2370 = vpop.f32.mrb[0].mxu0
    %v2371 = vadd.f32 %v1447, %v2370
    %2372 = vmatprep.mubr.bf16.mxu0 %v1206
    %2373 = vmatmul.mubr.bf16.gmra.mrb[0].mxu0 %v1190
    %v2374 = vpop.f32.mrb[0].mxu0
    %v2375 = vadd.f32 %v1443, %v2374
    %v2376 = vpop.f32.mrb[0].mxu0
    %v2377 = vadd.f32 %v1447, %v2376
    %v2378 = vpop.f32.mrb[0].mxu0
    %v2379 = vadd.f32 %v1443, %v2378
    %v2380 = vpop.f32.mrb[0].mxu0
    %v2381 = vadd.f32 %v1447, %v2380
    %2382 = vmatprep.mubr.bf16.mxu0 %v1207
    %2383 = vmatmul.mubr.bf16.gmra.mrb[0].mxu0 %v1191
    %v2384 = vpop.f32.mrb[0].mxu0
    %v2385 = vadd.f32 %v1443, %v2384
    %v2386 = vpop.f32.mrb[0].mxu0
    %v2387 = vadd.f32 %v1447, %v2386
    %v2388 = vpop.f32.mrb[0].mxu0
    %v2389 = vadd.f32 %v1443, %v2388
    %v2390 = vpop.f32.mrb[0].mxu0
    %v2391 = vadd.f32 %v1447, %v2390
    %2392 = vmatprep.mubr.bf16.mxu0 %v1208
    %2393 = vmatmul.mubr.bf16.gmra.mrb[0].mxu0 %v1192
    %v2394 = vpop.f32.mrb[0].mxu0
    %v2395 = vadd.f32 %v1443, %v2394
    %v2396 = vpop.f32.mrb[0].mxu0
    %v2397 = vadd.f32 %v1447, %v2396
    %v2398 = vpop.f32.mrb[0].mxu0
    %v2399 = vadd.f32 %v1443, %v2398
    %v2400 = vpop.f32.mrb[0].mxu0
    %v2401 = vadd.f32 %v1447, %v2400
    %2402 = vmatprep.mubr.bf16.mxu0 %v1209
    %2403 = vmatmul.mubr.bf16.gmra.mrb[0].mxu0 %v1193
    %v2404 = vpop.f32.mrb[0].mxu0
    %v2405 = vadd.f32 %v1443, %v2404
    %v2406 = vpop.f32.mrb[0].mxu0
    %v2407 = vadd.f32 %v1447, %v2406
    %v2408 = vpop.f32.mrb[0].mxu0
    %v2409 = vadd.f32 %v1443, %v2408
    %v2410 = vpop.f32.mrb[0].mxu0
    %v2411 = vadd.f32 %v1447, %v2410
    %2412 = vmatprep.mubr.bf16.mxu0 %v1270
    %2413 = vmatmul.mubr.bf16.gmra.mrb[0].mxu0 %v1254
    %v2414 = vpop.f32.mrb[0].mxu0
    %v2415 = vadd.f32 %v1443, %v2414
    %v2416 = vpop.f32.mrb[0].mxu0
    %v2417 = vadd.f32 %v1447, %v2416
    %v2418 = vpop.f32.mrb[0].mxu0
    %v2419 = vadd.f32 %v1443, %v2418
    %v2420 = vpop.f32.mrb[0].mxu0
    %v2421 = vadd.f32 %v1447, %v2420
    %2422 = vmatprep.mubr.bf16.mxu0 %v1271
    %2423 = vmatmul.mubr.bf16.gmra.mrb[0].mxu0 %v1255
    %v2424 = vpop.f32.mrb[0].mxu0
    %v2425 = vadd.f32 %v1443, %v2424
    %v2426 = vpop.f32.mrb[0].mxu0
    %v2427 = vadd.f32 %v1447, %v2426
    %v2428 = vpop.f32.mrb[0].mxu0
    %v2429 = vadd.f32 %v1443, %v2428
    %v2430 = vpop.f32.mrb[0].mxu0
    %v2431 = vadd.f32 %v1447, %v2430
    %2432 = vmatprep.mubr.bf16.mxu0 %v1272
    %2433 = vmatmul.mubr.bf16.gmra.mrb[0].mxu0 %v1256
    %v2434 = vpop.f32.mrb[0].mxu0
    %v2435 = vadd.f32 %v1443, %v2434
    %v2436 = vpop.f32.mrb[0].mxu0
    %v2437 = vadd.f32 %v1447, %v2436
    %v2438 = vpop.f32.mrb[0].mxu0
    %v2439 = vadd.f32 %v1443, %v2438
    %v2440 = vpop.f32.mrb[0].mxu0
    %v2441 = vadd.f32 %v1447, %v2440
    %2442 = vmatprep.mubr.bf16.mxu0 %v1273
    %2443 = vmatmul.mubr.bf16.gmra.mrb[0].mxu0 %v1257
    %v2444 = vpop.f32.mrb[0].mxu0
    %v2445 = vadd.f32 %v1443, %v2444
    %v2446 = vpop.f32.mrb[0].mxu0
    %v2447 = vadd.f32 %v1447, %v2446
    %v2448 = vpop.f32.mrb[0].mxu0
    %v2449 = vadd.f32 %v1443, %v2448
    %v2450 = vpop.f32.mrb[0].mxu0
    %v2451 = vadd.f32 %v1447, %v2450
    %2452 = vdwg.mxu0
    %2453 = vmatprep.subr.bf16.mxu0 %v1909
    %2454 = vmatpush1.bf16.msra.mxu0 %v1908
    %2455 = vmatprep.subr.bf16.mxu0 %v1913
    %2456 = vmatpush1.bf16.msra.mxu0 %v1912
    %2457 = vmatprep.subr.bf16.mxu0 %v1917
    %2458 = vmatpush1.bf16.msra.mxu0 %v1916
    %2459 = vmatprep.subr.bf16.mxu0 %v1921
    %2460 = vmatpush1.bf16.msra.mxu0 %v1920
    %2461 = vmatprep.subr.bf16.mxu0 %v1925
    %2462 = vmatpush1.bf16.msra.mxu0 %v1924
    %2463 = vmatprep.subr.bf16.mxu0 %v1929
    %2464 = vmatpush1.bf16.msra.mxu0 %v1928
    %2465 = vmatprep.subr.bf16.mxu0 %v1933
    %2466 = vmatpush1.bf16.msra.mxu0 %v1932
    %2467 = vmatprep.subr.bf16.mxu0 %v1937
    %2468 = vmatpush1.bf16.msra.mxu0 %v1936
    %2469 = vmatprep.subr.bf16.mxu0 %v1941
    %2470 = vmatpush1.bf16.msra.mxu0 %v1940
    %2471 = vmatprep.subr.bf16.mxu0 %v1945
    %2472 = vmatpush1.bf16.msra.mxu0 %v1944
    %2473 = vmatprep.subr.bf16.mxu0 %v1949
    %2474 = vmatpush1.bf16.msra.mxu0 %v1948
    %2475 = vmatprep.subr.bf16.mxu0 %v1953
    %2476 = vmatpush1.bf16.msra.mxu0 %v1952
    %2477 = vmatprep.subr.bf16.mxu0 %v1957
    %2478 = vmatpush1.bf16.msra.mxu0 %v1956
    %2479 = vmatprep.subr.bf16.mxu0 %v1961
    %2480 = vmatpush1.bf16.msra.mxu0 %v1960
    %2481 = vmatprep.subr.bf16.mxu0 %v1965
    %2482 = vmatpush1.bf16.msra.mxu0 %v1964
    %2483 = vmatprep.subr.bf16.mxu0 %v1969
    %2484 = vmatpush1.bf16.msra.mxu0 %v1968
    %2485 = vmatprep.mubr.bf16.mxu0 %v854
    %2486 = vmatmul.mubr.bf16.gmra.mrb[0].mxu0 %v838
    %v2487 = vpop.f32.mrb[0].mxu0
    %v2488 = vadd.f32 %v2135, %v2487
    %v2489 = vpop.f32.mrb[0].mxu0
    %v2490 = vadd.f32 %v2137, %v2489
    %v2491 = vpop.f32.mrb[0].mxu0
    %v2492 = vadd.f32 %v2139, %v2491
    %v2493 = vpop.f32.mrb[0].mxu0
    %v2494 = vadd.f32 %v2141, %v2493
    %2495 = vmatprep.mubr.bf16.mxu0 %v855
    %2496 = vmatmul.mubr.bf16.gmra.mrb[0].mxu0 %v839
    %v2497 = vpop.f32.mrb[0].mxu0
    %v2498 = vadd.f32 %v2145, %v2497
    %v2499 = vpop.f32.mrb[0].mxu0
    %v2500 = vadd.f32 %v2147, %v2499
    %v2501 = vpop.f32.mrb[0].mxu0
    %v2502 = vadd.f32 %v2149, %v2501
    %v2503 = vpop.f32.mrb[0].mxu0
    %v2504 = vadd.f32 %v2151, %v2503
    %2505 = vmatprep.mubr.bf16.mxu0 %v856
    %2506 = vmatmul.mubr.bf16.gmra.mrb[0].mxu0 %v840
    %v2507 = vpop.f32.mrb[0].mxu0
    %v2508 = vadd.f32 %v2155, %v2507
    %v2509 = vpop.f32.mrb[0].mxu0
    %v2510 = vadd.f32 %v2157, %v2509
    %v2511 = vpop.f32.mrb[0].mxu0
    %v2512 = vadd.f32 %v2159, %v2511
    %v2513 = vpop.f32.mrb[0].mxu0
    %v2514 = vadd.f32 %v2161, %v2513
    %2515 = vmatprep.mubr.bf16.mxu0 %v857
    %2516 = vmatmul.mubr.bf16.gmra.mrb[0].mxu0 %v841
    %v2517 = vpop.f32.mrb[0].mxu0
    %v2518 = vadd.f32 %v2165, %v2517
    %v2519 = vpop.f32.mrb[0].mxu0
    %v2520 = vadd.f32 %v2167, %v2519
    %v2521 = vpop.f32.mrb[0].mxu0
    %v2522 = vadd.f32 %v2169, %v2521
    %v2523 = vpop.f32.mrb[0].mxu0
    %v2524 = vadd.f32 %v2171, %v2523
    %2525 = vmatprep.mubr.bf16.mxu0 %v918
    %2526 = vmatmul.mubr.bf16.gmra.mrb[0].mxu0 %v902
    %v2527 = vpop.f32.mrb[0].mxu0
    %v2528 = vadd.f32 %v2175, %v2527
    %v2529 = vpop.f32.mrb[0].mxu0
    %v2530 = vadd.f32 %v2177, %v2529
    %v2531 = vpop.f32.mrb[0].mxu0
    %v2532 = vadd.f32 %v2179, %v2531
    %v2533 = vpop.f32.mrb[0].mxu0
    %v2534 = vadd.f32 %v2181, %v2533
    %2535 = vmatprep.mubr.bf16.mxu0 %v919
    %2536 = vmatmul.mubr.bf16.gmra.mrb[0].mxu0 %v903
    %v2537 = vpop.f32.mrb[0].mxu0
    %v2538 = vadd.f32 %v2185, %v2537
    %v2539 = vpop.f32.mrb[0].mxu0
    %v2540 = vadd.f32 %v2187, %v2539
    %v2541 = vpop.f32.mrb[0].mxu0
    %v2542 = vadd.f32 %v2189, %v2541
    %v2543 = vpop.f32.mrb[0].mxu0
    %v2544 = vadd.f32 %v2191, %v2543
    %2545 = vmatprep.mubr.bf16.mxu0 %v920
    %2546 = vmatmul.mubr.bf16.gmra.mrb[0].mxu0 %v904
    %v2547 = vpop.f32.mrb[0].mxu0
    %v2548 = vadd.f32 %v2195, %v2547
    %v2549 = vpop.f32.mrb[0].mxu0
    %v2550 = vadd.f32 %v2197, %v2549
    %v2551 = vpop.f32.mrb[0].mxu0
    %v2552 = vadd.f32 %v2199, %v2551
    %v2553 = vpop.f32.mrb[0].mxu0
    %v2554 = vadd.f32 %v2201, %v2553
    %2555 = vmatprep.mubr.bf16.mxu0 %v921
    %2556 = vmatmul.mubr.bf16.gmra.mrb[0].mxu0 %v905
    %v2557 = vpop.f32.mrb[0].mxu0
    %v2558 = vadd.f32 %v2205, %v2557
    %v2559 = vpop.f32.mrb[0].mxu0
    %v2560 = vadd.f32 %v2207, %v2559
    %v2561 = vpop.f32.mrb[0].mxu0
    %v2562 = vadd.f32 %v2209, %v2561
    %v2563 = vpop.f32.mrb[0].mxu0
    %v2564 = vadd.f32 %v2211, %v2563
    %2565 = vmatprep.mubr.bf16.mxu0 %v982
    %2566 = vmatmul.mubr.bf16.gmra.mrb[0].mxu0 %v966
    %v2567 = vpop.f32.mrb[0].mxu0
    %v2568 = vadd.f32 %v2215, %v2567
    %v2569 = vpop.f32.mrb[0].mxu0
    %v2570 = vadd.f32 %v2217, %v2569
    %v2571 = vpop.f32.mrb[0].mxu0
    %v2572 = vadd.f32 %v2219, %v2571
    %v2573 = vpop.f32.mrb[0].mxu0
    %v2574 = vadd.f32 %v2221, %v2573
    %2575 = vmatprep.mubr.bf16.mxu0 %v983
    %2576 = vmatmul.mubr.bf16.gmra.mrb[0].mxu0 %v967
    %v2577 = vpop.f32.mrb[0].mxu0
    %v2578 = vadd.f32 %v2225, %v2577
    %v2579 = vpop.f32.mrb[0].mxu0
    %v2580 = vadd.f32 %v2227, %v2579
    %v2581 = vpop.f32.mrb[0].mxu0
    %v2582 = vadd.f32 %v2229, %v2581
    %v2583 = vpop.f32.mrb[0].mxu0
    %v2584 = vadd.f32 %v2231, %v2583
    %2585 = vmatprep.mubr.bf16.mxu0 %v984
    %2586 = vmatmul.mubr.bf16.gmra.mrb[0].mxu0 %v968
    %v2587 = vpop.f32.mrb[0].mxu0
    %v2588 = vadd.f32 %v2235, %v2587
    %v2589 = vpop.f32.mrb[0].mxu0
    %v2590 = vadd.f32 %v2237, %v2589
    %v2591 = vpop.f32.mrb[0].mxu0
    %v2592 = vadd.f32 %v2239, %v2591
    %v2593 = vpop.f32.mrb[0].mxu0
    %v2594 = vadd.f32 %v2241, %v2593
    %2595 = vmatprep.mubr.bf16.mxu0 %v985
    %2596 = vmatmul.mubr.bf16.gmra.mrb[0].mxu0 %v969
    %v2597 = vpop.f32.mrb[0].mxu0
    %v2598 = vadd.f32 %v2245, %v2597
    %v2599 = vpop.f32.mrb[0].mxu0
    %v2600 = vadd.f32 %v2247, %v2599
    %v2601 = vpop.f32.mrb[0].mxu0
    %v2602 = vadd.f32 %v2249, %v2601
    %v2603 = vpop.f32.mrb[0].mxu0
    %v2604 = vadd.f32 %v2251, %v2603
    %2605 = vmatprep.mubr.bf16.mxu0 %v1046
    %2606 = vmatmul.mubr.bf16.gmra.mrb[0].mxu0 %v1030
    %v2607 = vpop.f32.mrb[0].mxu0
    %v2608 = vadd.f32 %v2255, %v2607
    %v2609 = vpop.f32.mrb[0].mxu0
    %v2610 = vadd.f32 %v2257, %v2609
    %v2611 = vpop.f32.mrb[0].mxu0
    %v2612 = vadd.f32 %v2259, %v2611
    %v2613 = vpop.f32.mrb[0].mxu0
    %v2614 = vadd.f32 %v2261, %v2613
    %2615 = vmatprep.mubr.bf16.mxu0 %v1047
    %2616 = vmatmul.mubr.bf16.gmra.mrb[0].mxu0 %v1031
    %v2617 = vpop.f32.mrb[0].mxu0
    %v2618 = vadd.f32 %v2265, %v2617
    %v2619 = vpop.f32.mrb[0].mxu0
    %v2620 = vadd.f32 %v2267, %v2619
    %v2621 = vpop.f32.mrb[0].mxu0
    %v2622 = vadd.f32 %v2269, %v2621
    %v2623 = vpop.f32.mrb[0].mxu0
    %v2624 = vadd.f32 %v2271, %v2623
    %2625 = vmatprep.mubr.bf16.mxu0 %v1048
    %2626 = vmatmul.mubr.bf16.gmra.mrb[0].mxu0 %v1032
    %v2627 = vpop.f32.mrb[0].mxu0
    %v2628 = vadd.f32 %v2275, %v2627
    %v2629 = vpop.f32.mrb[0].mxu0
    %v2630 = vadd.f32 %v2277, %v2629
    %v2631 = vpop.f32.mrb[0].mxu0
    %v2632 = vadd.f32 %v2279, %v2631
    %v2633 = vpop.f32.mrb[0].mxu0
    %v2634 = vadd.f32 %v2281, %v2633
    %2635 = vmatprep.mubr.bf16.mxu0 %v1049
    %2636 = vmatmul.mubr.bf16.gmra.mrb[0].mxu0 %v1033
    %v2637 = vpop.f32.mrb[0].mxu0
    %v2638 = vadd.f32 %v2285, %v2637
    %v2639 = vpop.f32.mrb[0].mxu0
    %v2640 = vadd.f32 %v2287, %v2639
    %v2641 = vpop.f32.mrb[0].mxu0
    %v2642 = vadd.f32 %v2289, %v2641
    %v2643 = vpop.f32.mrb[0].mxu0
    %v2644 = vadd.f32 %v2291, %v2643
    %2645 = vmatprep.mubr.bf16.mxu0 %v1110
    %2646 = vmatmul.mubr.bf16.gmra.mrb[0].mxu0 %v1094
    %v2647 = vpop.f32.mrb[0].mxu0
    %v2648 = vadd.f32 %v2295, %v2647
    %v2649 = vpop.f32.mrb[0].mxu0
    %v2650 = vadd.f32 %v2297, %v2649
    %v2651 = vpop.f32.mrb[0].mxu0
    %v2652 = vadd.f32 %v2299, %v2651
    %v2653 = vpop.f32.mrb[0].mxu0
    %v2654 = vadd.f32 %v2301, %v2653
    %2655 = vmatprep.mubr.bf16.mxu0 %v1111
    %2656 = vmatmul.mubr.bf16.gmra.mrb[0].mxu0 %v1095
    %v2657 = vpop.f32.mrb[0].mxu0
    %v2658 = vadd.f32 %v2305, %v2657
    %v2659 = vpop.f32.mrb[0].mxu0
    %v2660 = vadd.f32 %v2307, %v2659
    %v2661 = vpop.f32.mrb[0].mxu0
    %v2662 = vadd.f32 %v2309, %v2661
    %v2663 = vpop.f32.mrb[0].mxu0
    %v2664 = vadd.f32 %v2311, %v2663
    %2665 = vmatprep.mubr.bf16.mxu0 %v1112
    %2666 = vmatmul.mubr.bf16.gmra.mrb[0].mxu0 %v1096
    %v2667 = vpop.f32.mrb[0].mxu0
    %v2668 = vadd.f32 %v2315, %v2667
    %v2669 = vpop.f32.mrb[0].mxu0
    %v2670 = vadd.f32 %v2317, %v2669
    %v2671 = vpop.f32.mrb[0].mxu0
    %v2672 = vadd.f32 %v2319, %v2671
    %v2673 = vpop.f32.mrb[0].mxu0
    %v2674 = vadd.f32 %v2321, %v2673
    %2675 = vmatprep.mubr.bf16.mxu0 %v1113
    %2676 = vmatmul.mubr.bf16.gmra.mrb[0].mxu0 %v1097
    %v2677 = vpop.f32.mrb[0].mxu0
    %v2678 = vadd.f32 %v2325, %v2677
    %v2679 = vpop.f32.mrb[0].mxu0
    %v2680 = vadd.f32 %v2327, %v2679
    %v2681 = vpop.f32.mrb[0].mxu0
    %v2682 = vadd.f32 %v2329, %v2681
    %v2683 = vpop.f32.mrb[0].mxu0
    %v2684 = vadd.f32 %v2331, %v2683
    %2685 = vmatprep.mubr.bf16.mxu0 %v1174
    %2686 = vmatmul.mubr.bf16.gmra.mrb[0].mxu0 %v1158
    %v2687 = vpop.f32.mrb[0].mxu0
    %v2688 = vadd.f32 %v2335, %v2687
    %v2689 = vpop.f32.mrb[0].mxu0
    %v2690 = vadd.f32 %v2337, %v2689
    %v2691 = vpop.f32.mrb[0].mxu0
    %v2692 = vadd.f32 %v2339, %v2691
    %v2693 = vpop.f32.mrb[0].mxu0
    %v2694 = vadd.f32 %v2341, %v2693
    %2695 = vmatprep.mubr.bf16.mxu0 %v1175
    %2696 = vmatmul.mubr.bf16.gmra.mrb[0].mxu0 %v1159
    %v2697 = vpop.f32.mrb[0].mxu0
    %v2698 = vadd.f32 %v2345, %v2697
    %v2699 = vpop.f32.mrb[0].mxu0
    %v2700 = vadd.f32 %v2347, %v2699
    %v2701 = vpop.f32.mrb[0].mxu0
    %v2702 = vadd.f32 %v2349, %v2701
    %v2703 = vpop.f32.mrb[0].mxu0
    %v2704 = vadd.f32 %v2351, %v2703
    %2705 = vmatprep.mubr.bf16.mxu0 %v1176
    %2706 = vmatmul.mubr.bf16.gmra.mrb[0].mxu0 %v1160
    %v2707 = vpop.f32.mrb[0].mxu0
    %v2708 = vadd.f32 %v2355, %v2707
    %v2709 = vpop.f32.mrb[0].mxu0
    %v2710 = vadd.f32 %v2357, %v2709
    %v2711 = vpop.f32.mrb[0].mxu0
    %v2712 = vadd.f32 %v2359, %v2711
    %v2713 = vpop.f32.mrb[0].mxu0
    %v2714 = vadd.f32 %v2361, %v2713
    %2715 = vmatprep.mubr.bf16.mxu0 %v1177
    %2716 = vmatmul.mubr.bf16.gmra.mrb[0].mxu0 %v1161
    %v2717 = vpop.f32.mrb[0].mxu0
    %v2718 = vadd.f32 %v2365, %v2717
    %v2719 = vpop.f32.mrb[0].mxu0
    %v2720 = vadd.f32 %v2367, %v2719
    %v2721 = vpop.f32.mrb[0].mxu0
    %v2722 = vadd.f32 %v2369, %v2721
    %v2723 = vpop.f32.mrb[0].mxu0
    %v2724 = vadd.f32 %v2371, %v2723
    %2725 = vmatprep.mubr.bf16.mxu0 %v1238
    %2726 = vmatmul.mubr.bf16.gmra.mrb[0].mxu0 %v1222
    %v2727 = vpop.f32.mrb[0].mxu0
    %v2728 = vadd.f32 %v2375, %v2727
    %v2729 = vpop.f32.mrb[0].mxu0
    %v2730 = vadd.f32 %v2377, %v2729
    %v2731 = vpop.f32.mrb[0].mxu0
    %v2732 = vadd.f32 %v2379, %v2731
    %v2733 = vpop.f32.mrb[0].mxu0
    %v2734 = vadd.f32 %v2381, %v2733
    %2735 = vmatprep.mubr.bf16.mxu0 %v1239
    %2736 = vmatmul.mubr.bf16.gmra.mrb[0].mxu0 %v1223
    %v2737 = vpop.f32.mrb[0].mxu0
    %v2738 = vadd.f32 %v2385, %v2737
    %v2739 = vpop.f32.mrb[0].mxu0
    %v2740 = vadd.f32 %v2387, %v2739
    %v2741 = vpop.f32.mrb[0].mxu0
    %v2742 = vadd.f32 %v2389, %v2741
    %v2743 = vpop.f32.mrb[0].mxu0
    %v2744 = vadd.f32 %v2391, %v2743
    %2745 = vmatprep.mubr.bf16.mxu0 %v1240
    %2746 = vmatmul.mubr.bf16.gmra.mrb[0].mxu0 %v1224
    %v2747 = vpop.f32.mrb[0].mxu0
    %v2748 = vadd.f32 %v2395, %v2747
    %v2749 = vpop.f32.mrb[0].mxu0
    %v2750 = vadd.f32 %v2397, %v2749
    %v2751 = vpop.f32.mrb[0].mxu0
    %v2752 = vadd.f32 %v2399, %v2751
    %v2753 = vpop.f32.mrb[0].mxu0
    %v2754 = vadd.f32 %v2401, %v2753
    %2755 = vmatprep.mubr.bf16.mxu0 %v1241
    %2756 = vmatmul.mubr.bf16.gmra.mrb[0].mxu0 %v1225
    %v2757 = vpop.f32.mrb[0].mxu0
    %v2758 = vadd.f32 %v2405, %v2757
    %v2759 = vpop.f32.mrb[0].mxu0
    %v2760 = vadd.f32 %v2407, %v2759
    %v2761 = vpop.f32.mrb[0].mxu0
    %v2762 = vadd.f32 %v2409, %v2761
    %v2763 = vpop.f32.mrb[0].mxu0
    %v2764 = vadd.f32 %v2411, %v2763
    %2765 = vmatprep.mubr.bf16.mxu0 %v1302
    %2766 = vmatmul.mubr.bf16.gmra.mrb[0].mxu0 %v1286
    %v2767 = vpop.f32.mrb[0].mxu0
    %v2768 = vadd.f32 %v2415, %v2767
    %v2769 = vpop.f32.mrb[0].mxu0
    %v2770 = vadd.f32 %v2417, %v2769
    %v2771 = vpop.f32.mrb[0].mxu0
    %v2772 = vadd.f32 %v2419, %v2771
    %v2773 = vpop.f32.mrb[0].mxu0
    %v2774 = vadd.f32 %v2421, %v2773
    %2775 = vmatprep.mubr.bf16.mxu0 %v1303
    %2776 = vmatmul.mubr.bf16.gmra.mrb[0].mxu0 %v1287
    %v2777 = vpop.f32.mrb[0].mxu0
    %v2778 = vadd.f32 %v2425, %v2777
    %v2779 = vpop.f32.mrb[0].mxu0
    %v2780 = vadd.f32 %v2427, %v2779
    %v2781 = vpop.f32.mrb[0].mxu0
    %v2782 = vadd.f32 %v2429, %v2781
    %v2783 = vpop.f32.mrb[0].mxu0
    %v2784 = vadd.f32 %v2431, %v2783
    %2785 = vmatprep.mubr.bf16.mxu0 %v1304
    %2786 = vmatmul.mubr.bf16.gmra.mrb[0].mxu0 %v1288
    %v2787 = vpop.f32.mrb[0].mxu0
    %v2788 = vadd.f32 %v2435, %v2787
    %v2789 = vpop.f32.mrb[0].mxu0
    %v2790 = vadd.f32 %v2437, %v2789
    %v2791 = vpop.f32.mrb[0].mxu0
    %v2792 = vadd.f32 %v2439, %v2791
    %v2793 = vpop.f32.mrb[0].mxu0
    %v2794 = vadd.f32 %v2441, %v2793
    %2795 = vmatprep.mubr.bf16.mxu0 %v1305
    %2796 = vmatmul.mubr.bf16.gmra.mrb[0].mxu0 %v1289
    %v2797 = vpop.f32.mrb[0].mxu0
    %v2798 = vadd.f32 %v2445, %v2797
    %v2799 = vpop.f32.mrb[0].mxu0
    %v2800 = vadd.f32 %v2447, %v2799
    %v2801 = vpop.f32.mrb[0].mxu0
    %v2802 = vadd.f32 %v2449, %v2801
    %v2803 = vpop.f32.mrb[0].mxu0
    %v2804 = vadd.f32 %v2451, %v2803
    %2805 = vdwg.mxu0
    %2806 = vmatprep.subr.bf16.mxu0 %v1847
    %2807 = vmatpush1.bf16.msra.mxu0 %v1846
    %2808 = vmatprep.subr.bf16.mxu0 %v1851
    %2809 = vmatpush1.bf16.msra.mxu0 %v1850
    %2810 = vmatprep.subr.bf16.mxu0 %v1855
    %2811 = vmatpush1.bf16.msra.mxu0 %v1854
    %2812 = vmatprep.subr.bf16.mxu0 %v1859
    %2813 = vmatpush1.bf16.msra.mxu0 %v1858
    %2814 = vmatprep.subr.bf16.mxu0 %v1863
    %2815 = vmatpush1.bf16.msra.mxu0 %v1862
    %2816 = vmatprep.subr.bf16.mxu0 %v1867
    %2817 = vmatpush1.bf16.msra.mxu0 %v1866
    %2818 = vmatprep.subr.bf16.mxu0 %v1871
    %2819 = vmatpush1.bf16.msra.mxu0 %v1870
    %2820 = vmatprep.subr.bf16.mxu0 %v1875
    %2821 = vmatpush1.bf16.msra.mxu0 %v1874
    %2822 = vmatprep.subr.bf16.mxu0 %v1879
    %2823 = vmatpush1.bf16.msra.mxu0 %v1878
    %2824 = vmatprep.subr.bf16.mxu0 %v1883
    %2825 = vmatpush1.bf16.msra.mxu0 %v1882
    %2826 = vmatprep.subr.bf16.mxu0 %v1887
    %2827 = vmatpush1.bf16.msra.mxu0 %v1886
    %2828 = vmatprep.subr.bf16.mxu0 %v1891
    %2829 = vmatpush1.bf16.msra.mxu0 %v1890
    %2830 = vmatprep.subr.bf16.mxu0 %v1895
    %2831 = vmatpush1.bf16.msra.mxu0 %v1894
    %2832 = vmatprep.subr.bf16.mxu0 %v1899
    %2833 = vmatpush1.bf16.msra.mxu0 %v1898
    %2834 = vmatprep.subr.bf16.mxu0 %v1903
    %2835 = vmatpush1.bf16.msra.mxu0 %v1902
    %2836 = vmatprep.subr.bf16.mxu0 %v1907
    %2837 = vmatpush1.bf16.msra.mxu0 %v1906
    %2838 = vmatprep.mubr.bf16.mxu0 %v822
    %2839 = vmatmul.mubr.bf16.gmra.mrb[0].mxu0 %v806
    %v2840 = vpop.f32.mrb[0].mxu0
    %v2841 = vadd.f32 %v1451, %v2840
    %v2842 = vpop.f32.mrb[0].mxu0
    %v2843 = vadd.f32 %v1455, %v2842
    %v2844 = vpop.f32.mrb[0].mxu0
    %v2845 = vadd.f32 %v1451, %v2844
    %v2846 = vpop.f32.mrb[0].mxu0
    %v2847 = vadd.f32 %v1455, %v2846
    %2848 = vmatprep.mubr.bf16.mxu0 %v823
    %2849 = vmatmul.mubr.bf16.gmra.mrb[0].mxu0 %v807
    %v2850 = vpop.f32.mrb[0].mxu0
    %v2851 = vadd.f32 %v1451, %v2850
    %v2852 = vpop.f32.mrb[0].mxu0
    %v2853 = vadd.f32 %v1455, %v2852
    %v2854 = vpop.f32.mrb[0].mxu0
    %v2855 = vadd.f32 %v1451, %v2854
    %v2856 = vpop.f32.mrb[0].mxu0
    %v2857 = vadd.f32 %v1455, %v2856
    %2858 = vmatprep.mubr.bf16.mxu0 %v824
    %2859 = vmatmul.mubr.bf16.gmra.mrb[0].mxu0 %v808
    %v2860 = vpop.f32.mrb[0].mxu0
    %v2861 = vadd.f32 %v1451, %v2860
    %v2862 = vpop.f32.mrb[0].mxu0
    %v2863 = vadd.f32 %v1455, %v2862
    %v2864 = vpop.f32.mrb[0].mxu0
    %v2865 = vadd.f32 %v1451, %v2864
    %v2866 = vpop.f32.mrb[0].mxu0
    %v2867 = vadd.f32 %v1455, %v2866
    %2868 = vmatprep.mubr.bf16.mxu0 %v825
    %2869 = vmatmul.mubr.bf16.gmra.mrb[0].mxu0 %v809
    %v2870 = vpop.f32.mrb[0].mxu0
    %v2871 = vadd.f32 %v1451, %v2870
    %v2872 = vpop.f32.mrb[0].mxu0
    %v2873 = vadd.f32 %v1455, %v2872
    %v2874 = vpop.f32.mrb[0].mxu0
    %v2875 = vadd.f32 %v1451, %v2874
    %v2876 = vpop.f32.mrb[0].mxu0
    %v2877 = vadd.f32 %v1455, %v2876
    %2878 = vmatprep.mubr.bf16.mxu0 %v886
    %2879 = vmatmul.mubr.bf16.gmra.mrb[0].mxu0 %v870
    %v2880 = vpop.f32.mrb[0].mxu0
    %v2881 = vadd.f32 %v1451, %v2880
    %v2882 = vpop.f32.mrb[0].mxu0
    %v2883 = vadd.f32 %v1455, %v2882
    %v2884 = vpop.f32.mrb[0].mxu0
    %v2885 = vadd.f32 %v1451, %v2884
    %v2886 = vpop.f32.mrb[0].mxu0
    %v2887 = vadd.f32 %v1455, %v2886
    %2888 = vmatprep.mubr.bf16.mxu0 %v887
    %2889 = vmatmul.mubr.bf16.gmra.mrb[0].mxu0 %v871
    %v2890 = vpop.f32.mrb[0].mxu0
    %v2891 = vadd.f32 %v1451, %v2890
    %v2892 = vpop.f32.mrb[0].mxu0
    %v2893 = vadd.f32 %v1455, %v2892
    %v2894 = vpop.f32.mrb[0].mxu0
    %v2895 = vadd.f32 %v1451, %v2894
    %v2896 = vpop.f32.mrb[0].mxu0
    %v2897 = vadd.f32 %v1455, %v2896
    %2898 = vmatprep.mubr.bf16.mxu0 %v888
    %2899 = vmatmul.mubr.bf16.gmra.mrb[0].mxu0 %v872
    %v2900 = vpop.f32.mrb[0].mxu0
    %v2901 = vadd.f32 %v1451, %v2900
    %v2902 = vpop.f32.mrb[0].mxu0
    %v2903 = vadd.f32 %v1455, %v2902
    %v2904 = vpop.f32.mrb[0].mxu0
    %v2905 = vadd.f32 %v1451, %v2904
    %v2906 = vpop.f32.mrb[0].mxu0
    %v2907 = vadd.f32 %v1455, %v2906
    %2908 = vmatprep.mubr.bf16.mxu0 %v889
    %2909 = vmatmul.mubr.bf16.gmra.mrb[0].mxu0 %v873
    %v2910 = vpop.f32.mrb[0].mxu0
    %v2911 = vadd.f32 %v1451, %v2910
    %v2912 = vpop.f32.mrb[0].mxu0
    %v2913 = vadd.f32 %v1455, %v2912
    %v2914 = vpop.f32.mrb[0].mxu0
    %v2915 = vadd.f32 %v1451, %v2914
    %v2916 = vpop.f32.mrb[0].mxu0
    %v2917 = vadd.f32 %v1455, %v2916
    %2918 = vmatprep.mubr.bf16.mxu0 %v950
    %2919 = vmatmul.mubr.bf16.gmra.mrb[0].mxu0 %v934
    %v2920 = vpop.f32.mrb[0].mxu0
    %v2921 = vadd.f32 %v1451, %v2920
    %v2922 = vpop.f32.mrb[0].mxu0
    %v2923 = vadd.f32 %v1455, %v2922
    %v2924 = vpop.f32.mrb[0].mxu0
    %v2925 = vadd.f32 %v1451, %v2924
    %v2926 = vpop.f32.mrb[0].mxu0
    %v2927 = vadd.f32 %v1455, %v2926
    %2928 = vmatprep.mubr.bf16.mxu0 %v951
    %2929 = vmatmul.mubr.bf16.gmra.mrb[0].mxu0 %v935
    %v2930 = vpop.f32.mrb[0].mxu0
    %v2931 = vadd.f32 %v1451, %v2930
    %v2932 = vpop.f32.mrb[0].mxu0
    %v2933 = vadd.f32 %v1455, %v2932
    %v2934 = vpop.f32.mrb[0].mxu0
    %v2935 = vadd.f32 %v1451, %v2934
    %v2936 = vpop.f32.mrb[0].mxu0
    %v2937 = vadd.f32 %v1455, %v2936
    %2938 = vmatprep.mubr.bf16.mxu0 %v952
    %2939 = vmatmul.mubr.bf16.gmra.mrb[0].mxu0 %v936
    %v2940 = vpop.f32.mrb[0].mxu0
    %v2941 = vadd.f32 %v1451, %v2940
    %v2942 = vpop.f32.mrb[0].mxu0
    %v2943 = vadd.f32 %v1455, %v2942
    %v2944 = vpop.f32.mrb[0].mxu0
    %v2945 = vadd.f32 %v1451, %v2944
    %v2946 = vpop.f32.mrb[0].mxu0
    %v2947 = vadd.f32 %v1455, %v2946
    %2948 = vmatprep.mubr.bf16.mxu0 %v953
    %2949 = vmatmul.mubr.bf16.gmra.mrb[0].mxu0 %v937
    %v2950 = vpop.f32.mrb[0].mxu0
    %v2951 = vadd.f32 %v1451, %v2950
    %v2952 = vpop.f32.mrb[0].mxu0
    %v2953 = vadd.f32 %v1455, %v2952
    %v2954 = vpop.f32.mrb[0].mxu0
    %v2955 = vadd.f32 %v1451, %v2954
    %v2956 = vpop.f32.mrb[0].mxu0
    %v2957 = vadd.f32 %v1455, %v2956
    %2958 = vmatprep.mubr.bf16.mxu0 %v1014
    %2959 = vmatmul.mubr.bf16.gmra.mrb[0].mxu0 %v998
    %v2960 = vpop.f32.mrb[0].mxu0
    %v2961 = vadd.f32 %v1451, %v2960
    %v2962 = vpop.f32.mrb[0].mxu0
    %v2963 = vadd.f32 %v1455, %v2962
    %v2964 = vpop.f32.mrb[0].mxu0
    %v2965 = vadd.f32 %v1451, %v2964
    %v2966 = vpop.f32.mrb[0].mxu0
    %v2967 = vadd.f32 %v1455, %v2966
    %2968 = vmatprep.mubr.bf16.mxu0 %v1015
    %2969 = vmatmul.mubr.bf16.gmra.mrb[0].mxu0 %v999
    %v2970 = vpop.f32.mrb[0].mxu0
    %v2971 = vadd.f32 %v1451, %v2970
    %v2972 = vpop.f32.mrb[0].mxu0
    %v2973 = vadd.f32 %v1455, %v2972
    %v2974 = vpop.f32.mrb[0].mxu0
    %v2975 = vadd.f32 %v1451, %v2974
    %v2976 = vpop.f32.mrb[0].mxu0
    %v2977 = vadd.f32 %v1455, %v2976
    %2978 = vmatprep.mubr.bf16.mxu0 %v1016
    %2979 = vmatmul.mubr.bf16.gmra.mrb[0].mxu0 %v1000
    %v2980 = vpop.f32.mrb[0].mxu0
    %v2981 = vadd.f32 %v1451, %v2980
    %v2982 = vpop.f32.mrb[0].mxu0
    %v2983 = vadd.f32 %v1455, %v2982
    %v2984 = vpop.f32.mrb[0].mxu0
    %v2985 = vadd.f32 %v1451, %v2984
    %v2986 = vpop.f32.mrb[0].mxu0
    %v2987 = vadd.f32 %v1455, %v2986
    %2988 = vmatprep.mubr.bf16.mxu0 %v1017
    %2989 = vmatmul.mubr.bf16.gmra.mrb[0].mxu0 %v1001
    %v2990 = vpop.f32.mrb[0].mxu0
    %v2991 = vadd.f32 %v1451, %v2990
    %v2992 = vpop.f32.mrb[0].mxu0
    %v2993 = vadd.f32 %v1455, %v2992
    %v2994 = vpop.f32.mrb[0].mxu0
    %v2995 = vadd.f32 %v1451, %v2994
    %v2996 = vpop.f32.mrb[0].mxu0
    %v2997 = vadd.f32 %v1455, %v2996
    %2998 = vmatprep.mubr.bf16.mxu0 %v1078
    %2999 = vmatmul.mubr.bf16.gmra.mrb[0].mxu0 %v1062
    %v3000 = vpop.f32.mrb[0].mxu0
    %v3001 = vadd.f32 %v1451, %v3000
    %v3002 = vpop.f32.mrb[0].mxu0
    %v3003 = vadd.f32 %v1455, %v3002
    %v3004 = vpop.f32.mrb[0].mxu0
    %v3005 = vadd.f32 %v1451, %v3004
    %v3006 = vpop.f32.mrb[0].mxu0
    %v3007 = vadd.f32 %v1455, %v3006
    %3008 = vmatprep.mubr.bf16.mxu0 %v1079
    %3009 = vmatmul.mubr.bf16.gmra.mrb[0].mxu0 %v1063
    %v3010 = vpop.f32.mrb[0].mxu0
    %v3011 = vadd.f32 %v1451, %v3010
    %v3012 = vpop.f32.mrb[0].mxu0
    %v3013 = vadd.f32 %v1455, %v3012
    %v3014 = vpop.f32.mrb[0].mxu0
    %v3015 = vadd.f32 %v1451, %v3014
    %v3016 = vpop.f32.mrb[0].mxu0
    %v3017 = vadd.f32 %v1455, %v3016
    %3018 = vmatprep.mubr.bf16.mxu0 %v1080
    %3019 = vmatmul.mubr.bf16.gmra.mrb[0].mxu0 %v1064
    %v3020 = vpop.f32.mrb[0].mxu0
    %v3021 = vadd.f32 %v1451, %v3020
    %v3022 = vpop.f32.mrb[0].mxu0
    %v3023 = vadd.f32 %v1455, %v3022
    %v3024 = vpop.f32.mrb[0].mxu0
    %v3025 = vadd.f32 %v1451, %v3024
    %v3026 = vpop.f32.mrb[0].mxu0
    %v3027 = vadd.f32 %v1455, %v3026
    %3028 = vmatprep.mubr.bf16.mxu0 %v1081
    %3029 = vmatmul.mubr.bf16.gmra.mrb[0].mxu0 %v1065
    %v3030 = vpop.f32.mrb[0].mxu0
    %v3031 = vadd.f32 %v1451, %v3030
    %v3032 = vpop.f32.mrb[0].mxu0
    %v3033 = vadd.f32 %v1455, %v3032
    %v3034 = vpop.f32.mrb[0].mxu0
    %v3035 = vadd.f32 %v1451, %v3034
    %v3036 = vpop.f32.mrb[0].mxu0
    %v3037 = vadd.f32 %v1455, %v3036
    %3038 = vmatprep.mubr.bf16.mxu0 %v1142
    %3039 = vmatmul.mubr.bf16.gmra.mrb[0].mxu0 %v1126
    %v3040 = vpop.f32.mrb[0].mxu0
    %v3041 = vadd.f32 %v1451, %v3040
    %v3042 = vpop.f32.mrb[0].mxu0
    %v3043 = vadd.f32 %v1455, %v3042
    %v3044 = vpop.f32.mrb[0].mxu0
    %v3045 = vadd.f32 %v1451, %v3044
    %v3046 = vpop.f32.mrb[0].mxu0
    %v3047 = vadd.f32 %v1455, %v3046
    %3048 = vmatprep.mubr.bf16.mxu0 %v1143
    %3049 = vmatmul.mubr.bf16.gmra.mrb[0].mxu0 %v1127
    %v3050 = vpop.f32.mrb[0].mxu0
    %v3051 = vadd.f32 %v1451, %v3050
    %v3052 = vpop.f32.mrb[0].mxu0
    %v3053 = vadd.f32 %v1455, %v3052
    %v3054 = vpop.f32.mrb[0].mxu0
    %v3055 = vadd.f32 %v1451, %v3054
    %v3056 = vpop.f32.mrb[0].mxu0
    %v3057 = vadd.f32 %v1455, %v3056
    %3058 = vmatprep.mubr.bf16.mxu0 %v1144
    %3059 = vmatmul.mubr.bf16.gmra.mrb[0].mxu0 %v1128
    %v3060 = vpop.f32.mrb[0].mxu0
    %v3061 = vadd.f32 %v1451, %v3060
    %v3062 = vpop.f32.mrb[0].mxu0
    %v3063 = vadd.f32 %v1455, %v3062
    %v3064 = vpop.f32.mrb[0].mxu0
    %v3065 = vadd.f32 %v1451, %v3064
    %v3066 = vpop.f32.mrb[0].mxu0
    %v3067 = vadd.f32 %v1455, %v3066
    %3068 = vmatprep.mubr.bf16.mxu0 %v1145
    %3069 = vmatmul.mubr.bf16.gmra.mrb[0].mxu0 %v1129
    %v3070 = vpop.f32.mrb[0].mxu0
    %v3071 = vadd.f32 %v1451, %v3070
    %v3072 = vpop.f32.mrb[0].mxu0
    %v3073 = vadd.f32 %v1455, %v3072
    %v3074 = vpop.f32.mrb[0].mxu0
    %v3075 = vadd.f32 %v1451, %v3074
    %v3076 = vpop.f32.mrb[0].mxu0
    %v3077 = vadd.f32 %v1455, %v3076
    %3078 = vmatprep.mubr.bf16.mxu0 %v1206
    %3079 = vmatmul.mubr.bf16.gmra.mrb[0].mxu0 %v1190
    %v3080 = vpop.f32.mrb[0].mxu0
    %v3081 = vadd.f32 %v1451, %v3080
    %v3082 = vpop.f32.mrb[0].mxu0
    %v3083 = vadd.f32 %v1455, %v3082
    %v3084 = vpop.f32.mrb[0].mxu0
    %v3085 = vadd.f32 %v1451, %v3084
    %v3086 = vpop.f32.mrb[0].mxu0
    %v3087 = vadd.f32 %v1455, %v3086
    %3088 = vmatprep.mubr.bf16.mxu0 %v1207
    %3089 = vmatmul.mubr.bf16.gmra.mrb[0].mxu0 %v1191
    %v3090 = vpop.f32.mrb[0].mxu0
    %v3091 = vadd.f32 %v1451, %v3090
    %v3092 = vpop.f32.mrb[0].mxu0
    %v3093 = vadd.f32 %v1455, %v3092
    %v3094 = vpop.f32.mrb[0].mxu0
    %v3095 = vadd.f32 %v1451, %v3094
    %v3096 = vpop.f32.mrb[0].mxu0
    %v3097 = vadd.f32 %v1455, %v3096
    %3098 = vmatprep.mubr.bf16.mxu0 %v1208
    %3099 = vmatmul.mubr.bf16.gmra.mrb[0].mxu0 %v1192
    %v3100 = vpop.f32.mrb[0].mxu0
    %v3101 = vadd.f32 %v1451, %v3100
    %v3102 = vpop.f32.mrb[0].mxu0
    %v3103 = vadd.f32 %v1455, %v3102
    %v3104 = vpop.f32.mrb[0].mxu0
    %v3105 = vadd.f32 %v1451, %v3104
    %v3106 = vpop.f32.mrb[0].mxu0
    %v3107 = vadd.f32 %v1455, %v3106
    %3108 = vmatprep.mubr.bf16.mxu0 %v1209
    %3109 = vmatmul.mubr.bf16.gmra.mrb[0].mxu0 %v1193
    %v3110 = vpop.f32.mrb[0].mxu0
    %v3111 = vadd.f32 %v1451, %v3110
    %v3112 = vpop.f32.mrb[0].mxu0
    %v3113 = vadd.f32 %v1455, %v3112
    %v3114 = vpop.f32.mrb[0].mxu0
    %v3115 = vadd.f32 %v1451, %v3114
    %v3116 = vpop.f32.mrb[0].mxu0
    %v3117 = vadd.f32 %v1455, %v3116
    %3118 = vmatprep.mubr.bf16.mxu0 %v1270
    %3119 = vmatmul.mubr.bf16.gmra.mrb[0].mxu0 %v1254
    %v3120 = vpop.f32.mrb[0].mxu0
    %v3121 = vadd.f32 %v1451, %v3120
    %v3122 = vpop.f32.mrb[0].mxu0
    %v3123 = vadd.f32 %v1455, %v3122
    %v3124 = vpop.f32.mrb[0].mxu0
    %v3125 = vadd.f32 %v1451, %v3124
    %v3126 = vpop.f32.mrb[0].mxu0
    %v3127 = vadd.f32 %v1455, %v3126
    %3128 = vmatprep.mubr.bf16.mxu0 %v1271
    %3129 = vmatmul.mubr.bf16.gmra.mrb[0].mxu0 %v1255
    %v3130 = vpop.f32.mrb[0].mxu0
    %v3131 = vadd.f32 %v1451, %v3130
    %v3132 = vpop.f32.mrb[0].mxu0
    %v3133 = vadd.f32 %v1455, %v3132
    %v3134 = vpop.f32.mrb[0].mxu0
    %v3135 = vadd.f32 %v1451, %v3134
    %v3136 = vpop.f32.mrb[0].mxu0
    %v3137 = vadd.f32 %v1455, %v3136
    %3138 = vmatprep.mubr.bf16.mxu0 %v1272
    %3139 = vmatmul.mubr.bf16.gmra.mrb[0].mxu0 %v1256
    %v3140 = vpop.f32.mrb[0].mxu0
    %v3141 = vadd.f32 %v1451, %v3140
    %v3142 = vpop.f32.mrb[0].mxu0
    %v3143 = vadd.f32 %v1455, %v3142
    %v3144 = vpop.f32.mrb[0].mxu0
    %v3145 = vadd.f32 %v1451, %v3144
    %v3146 = vpop.f32.mrb[0].mxu0
    %v3147 = vadd.f32 %v1455, %v3146
    %3148 = vmatprep.mubr.bf16.mxu0 %v1273
    %3149 = vmatmul.mubr.bf16.gmra.mrb[0].mxu0 %v1257
    %v3150 = vpop.f32.mrb[0].mxu0
    %v3151 = vadd.f32 %v1451, %v3150
    %v3152 = vpop.f32.mrb[0].mxu0
    %v3153 = vadd.f32 %v1455, %v3152
    %v3154 = vpop.f32.mrb[0].mxu0
    %v3155 = vadd.f32 %v1451, %v3154
    %v3156 = vpop.f32.mrb[0].mxu0
    %v3157 = vadd.f32 %v1455, %v3156
    %3158 = vdwg.mxu0
    %3159 = vmatprep.subr.bf16.mxu0 %v1911
    %3160 = vmatpush1.bf16.msra.mxu0 %v1910
    %3161 = vmatprep.subr.bf16.mxu0 %v1915
    %3162 = vmatpush1.bf16.msra.mxu0 %v1914
    %3163 = vmatprep.subr.bf16.mxu0 %v1919
    %3164 = vmatpush1.bf16.msra.mxu0 %v1918
    %3165 = vmatprep.subr.bf16.mxu0 %v1923
    %3166 = vmatpush1.bf16.msra.mxu0 %v1922
    %3167 = vmatprep.subr.bf16.mxu0 %v1927
    %3168 = vmatpush1.bf16.msra.mxu0 %v1926
    %3169 = vmatprep.subr.bf16.mxu0 %v1931
    %3170 = vmatpush1.bf16.msra.mxu0 %v1930
    %3171 = vmatprep.subr.bf16.mxu0 %v1935
    %3172 = vmatpush1.bf16.msra.mxu0 %v1934
    %3173 = vmatprep.subr.bf16.mxu0 %v1939
    %3174 = vmatpush1.bf16.msra.mxu0 %v1938
    %3175 = vmatprep.subr.bf16.mxu0 %v1943
    %3176 = vmatpush1.bf16.msra.mxu0 %v1942
    %3177 = vmatprep.subr.bf16.mxu0 %v1947
    %3178 = vmatpush1.bf16.msra.mxu0 %v1946
    %3179 = vmatprep.subr.bf16.mxu0 %v1951
    %3180 = vmatpush1.bf16.msra.mxu0 %v1950
    %3181 = vmatprep.subr.bf16.mxu0 %v1955
    %3182 = vmatpush1.bf16.msra.mxu0 %v1954
    %3183 = vmatprep.subr.bf16.mxu0 %v1959
    %3184 = vmatpush1.bf16.msra.mxu0 %v1958
    %3185 = vmatprep.subr.bf16.mxu0 %v1963
    %3186 = vmatpush1.bf16.msra.mxu0 %v1962
    %3187 = vmatprep.subr.bf16.mxu0 %v1967
    %3188 = vmatpush1.bf16.msra.mxu0 %v1966
    %3189 = vmatprep.subr.bf16.mxu0 %v1971
    %3190 = vmatpush1.bf16.msra.mxu0 %v1970
    %3191 = vmatprep.mubr.bf16.mxu0 %v854
    %3192 = vmatmul.mubr.bf16.gmra.mrb[0].mxu0 %v838
    %v3193 = vpop.f32.mrb[0].mxu0
    %v3194 = vadd.f32 %v2841, %v3193
    %v3195 = vpop.f32.mrb[0].mxu0
    %v3196 = vadd.f32 %v2843, %v3195
    %v3197 = vpop.f32.mrb[0].mxu0
    %v3198 = vadd.f32 %v2845, %v3197
    %v3199 = vpop.f32.mrb[0].mxu0
    %v3200 = vadd.f32 %v2847, %v3199
    %3201 = vmatprep.mubr.bf16.mxu0 %v855
    %3202 = vmatmul.mubr.bf16.gmra.mrb[0].mxu0 %v839
    %v3203 = vpop.f32.mrb[0].mxu0
    %v3204 = vadd.f32 %v2851, %v3203
    %v3205 = vpop.f32.mrb[0].mxu0
    %v3206 = vadd.f32 %v2853, %v3205
    %v3207 = vpop.f32.mrb[0].mxu0
    %v3208 = vadd.f32 %v2855, %v3207
    %v3209 = vpop.f32.mrb[0].mxu0
    %v3210 = vadd.f32 %v2857, %v3209
    %3211 = vmatprep.mubr.bf16.mxu0 %v856
    %3212 = vmatmul.mubr.bf16.gmra.mrb[0].mxu0 %v840
    %v3213 = vpop.f32.mrb[0].mxu0
    %v3214 = vadd.f32 %v2861, %v3213
    %v3215 = vpop.f32.mrb[0].mxu0
    %v3216 = vadd.f32 %v2863, %v3215
    %v3217 = vpop.f32.mrb[0].mxu0
    %v3218 = vadd.f32 %v2865, %v3217
    %v3219 = vpop.f32.mrb[0].mxu0
    %v3220 = vadd.f32 %v2867, %v3219
    %3221 = vmatprep.mubr.bf16.mxu0 %v857
    %3222 = vmatmul.mubr.bf16.gmra.mrb[0].mxu0 %v841
    %v3223 = vpop.f32.mrb[0].mxu0
    %v3224 = vadd.f32 %v2871, %v3223
    %v3225 = vpop.f32.mrb[0].mxu0
    %v3226 = vadd.f32 %v2873, %v3225
    %v3227 = vpop.f32.mrb[0].mxu0
    %v3228 = vadd.f32 %v2875, %v3227
    %v3229 = vpop.f32.mrb[0].mxu0
    %v3230 = vadd.f32 %v2877, %v3229
    %3231 = vmatprep.mubr.bf16.mxu0 %v918
    %3232 = vmatmul.mubr.bf16.gmra.mrb[0].mxu0 %v902
    %v3233 = vpop.f32.mrb[0].mxu0
    %v3234 = vadd.f32 %v2881, %v3233
    %v3235 = vpop.f32.mrb[0].mxu0
    %v3236 = vadd.f32 %v2883, %v3235
    %v3237 = vpop.f32.mrb[0].mxu0
    %v3238 = vadd.f32 %v2885, %v3237
    %v3239 = vpop.f32.mrb[0].mxu0
    %v3240 = vadd.f32 %v2887, %v3239
    %3241 = vmatprep.mubr.bf16.mxu0 %v919
    %3242 = vmatmul.mubr.bf16.gmra.mrb[0].mxu0 %v903
    %v3243 = vpop.f32.mrb[0].mxu0
    %v3244 = vadd.f32 %v2891, %v3243
    %v3245 = vpop.f32.mrb[0].mxu0
    %v3246 = vadd.f32 %v2893, %v3245
    %v3247 = vpop.f32.mrb[0].mxu0
    %v3248 = vadd.f32 %v2895, %v3247
    %v3249 = vpop.f32.mrb[0].mxu0
    %v3250 = vadd.f32 %v2897, %v3249
    %3251 = vmatprep.mubr.bf16.mxu0 %v920
    %3252 = vmatmul.mubr.bf16.gmra.mrb[0].mxu0 %v904
    %v3253 = vpop.f32.mrb[0].mxu0
    %v3254 = vadd.f32 %v2901, %v3253
    %v3255 = vpop.f32.mrb[0].mxu0
    %v3256 = vadd.f32 %v2903, %v3255
    %v3257 = vpop.f32.mrb[0].mxu0
    %v3258 = vadd.f32 %v2905, %v3257
    %v3259 = vpop.f32.mrb[0].mxu0
    %v3260 = vadd.f32 %v2907, %v3259
    %3261 = vmatprep.mubr.bf16.mxu0 %v921
    %3262 = vmatmul.mubr.bf16.gmra.mrb[0].mxu0 %v905
    %v3263 = vpop.f32.mrb[0].mxu0
    %v3264 = vadd.f32 %v2911, %v3263
    %v3265 = vpop.f32.mrb[0].mxu0
    %v3266 = vadd.f32 %v2913, %v3265
    %v3267 = vpop.f32.mrb[0].mxu0
    %v3268 = vadd.f32 %v2915, %v3267
    %v3269 = vpop.f32.mrb[0].mxu0
    %v3270 = vadd.f32 %v2917, %v3269
    %3271 = vmatprep.mubr.bf16.mxu0 %v982
    %3272 = vmatmul.mubr.bf16.gmra.mrb[0].mxu0 %v966
    %v3273 = vpop.f32.mrb[0].mxu0
    %v3274 = vadd.f32 %v2921, %v3273
    %v3275 = vpop.f32.mrb[0].mxu0
    %v3276 = vadd.f32 %v2923, %v3275
    %v3277 = vpop.f32.mrb[0].mxu0
    %v3278 = vadd.f32 %v2925, %v3277
    %v3279 = vpop.f32.mrb[0].mxu0
    %v3280 = vadd.f32 %v2927, %v3279
    %3281 = vmatprep.mubr.bf16.mxu0 %v983
    %3282 = vmatmul.mubr.bf16.gmra.mrb[0].mxu0 %v967
    %v3283 = vpop.f32.mrb[0].mxu0
    %v3284 = vadd.f32 %v2931, %v3283
    %v3285 = vpop.f32.mrb[0].mxu0
    %v3286 = vadd.f32 %v2933, %v3285
    %v3287 = vpop.f32.mrb[0].mxu0
    %v3288 = vadd.f32 %v2935, %v3287
    %v3289 = vpop.f32.mrb[0].mxu0
    %v3290 = vadd.f32 %v2937, %v3289
    %3291 = vmatprep.mubr.bf16.mxu0 %v984
    %3292 = vmatmul.mubr.bf16.gmra.mrb[0].mxu0 %v968
    %v3293 = vpop.f32.mrb[0].mxu0
    %v3294 = vadd.f32 %v2941, %v3293
    %v3295 = vpop.f32.mrb[0].mxu0
    %v3296 = vadd.f32 %v2943, %v3295
    %v3297 = vpop.f32.mrb[0].mxu0
    %v3298 = vadd.f32 %v2945, %v3297
    %v3299 = vpop.f32.mrb[0].mxu0
    %v3300 = vadd.f32 %v2947, %v3299
    %3301 = vmatprep.mubr.bf16.mxu0 %v985
    %3302 = vmatmul.mubr.bf16.gmra.mrb[0].mxu0 %v969
    %v3303 = vpop.f32.mrb[0].mxu0
    %v3304 = vadd.f32 %v2951, %v3303
    %v3305 = vpop.f32.mrb[0].mxu0
    %v3306 = vadd.f32 %v2953, %v3305
    %v3307 = vpop.f32.mrb[0].mxu0
    %v3308 = vadd.f32 %v2955, %v3307
    %v3309 = vpop.f32.mrb[0].mxu0
    %v3310 = vadd.f32 %v2957, %v3309
    %3311 = vmatprep.mubr.bf16.mxu0 %v1046
    %3312 = vmatmul.mubr.bf16.gmra.mrb[0].mxu0 %v1030
    %v3313 = vpop.f32.mrb[0].mxu0
    %v3314 = vadd.f32 %v2961, %v3313
    %v3315 = vpop.f32.mrb[0].mxu0
    %v3316 = vadd.f32 %v2963, %v3315
    %v3317 = vpop.f32.mrb[0].mxu0
    %v3318 = vadd.f32 %v2965, %v3317
    %v3319 = vpop.f32.mrb[0].mxu0
    %v3320 = vadd.f32 %v2967, %v3319
    %3321 = vmatprep.mubr.bf16.mxu0 %v1047
    %3322 = vmatmul.mubr.bf16.gmra.mrb[0].mxu0 %v1031
    %v3323 = vpop.f32.mrb[0].mxu0
    %v3324 = vadd.f32 %v2971, %v3323
    %v3325 = vpop.f32.mrb[0].mxu0
    %v3326 = vadd.f32 %v2973, %v3325
    %v3327 = vpop.f32.mrb[0].mxu0
    %v3328 = vadd.f32 %v2975, %v3327
    %v3329 = vpop.f32.mrb[0].mxu0
    %v3330 = vadd.f32 %v2977, %v3329
    %3331 = vmatprep.mubr.bf16.mxu0 %v1048
    %3332 = vmatmul.mubr.bf16.gmra.mrb[0].mxu0 %v1032
    %v3333 = vpop.f32.mrb[0].mxu0
    %v3334 = vadd.f32 %v2981, %v3333
    %v3335 = vpop.f32.mrb[0].mxu0
    %v3336 = vadd.f32 %v2983, %v3335
    %v3337 = vpop.f32.mrb[0].mxu0
    %v3338 = vadd.f32 %v2985, %v3337
    %v3339 = vpop.f32.mrb[0].mxu0
    %v3340 = vadd.f32 %v2987, %v3339
    %3341 = vmatprep.mubr.bf16.mxu0 %v1049
    %3342 = vmatmul.mubr.bf16.gmra.mrb[0].mxu0 %v1033
    %v3343 = vpop.f32.mrb[0].mxu0
    %v3344 = vadd.f32 %v2991, %v3343
    %v3345 = vpop.f32.mrb[0].mxu0
    %v3346 = vadd.f32 %v2993, %v3345
    %v3347 = vpop.f32.mrb[0].mxu0
    %v3348 = vadd.f32 %v2995, %v3347
    %v3349 = vpop.f32.mrb[0].mxu0
    %v3350 = vadd.f32 %v2997, %v3349
    %3351 = vmatprep.mubr.bf16.mxu0 %v1110
    %3352 = vmatmul.mubr.bf16.gmra.mrb[0].mxu0 %v1094
    %v3353 = vpop.f32.mrb[0].mxu0
    %v3354 = vadd.f32 %v3001, %v3353
    %v3355 = vpop.f32.mrb[0].mxu0
    %v3356 = vadd.f32 %v3003, %v3355
    %v3357 = vpop.f32.mrb[0].mxu0
    %v3358 = vadd.f32 %v3005, %v3357
    %v3359 = vpop.f32.mrb[0].mxu0
    %v3360 = vadd.f32 %v3007, %v3359
    %3361 = vmatprep.mubr.bf16.mxu0 %v1111
    %3362 = vmatmul.mubr.bf16.gmra.mrb[0].mxu0 %v1095
    %v3363 = vpop.f32.mrb[0].mxu0
    %v3364 = vadd.f32 %v3011, %v3363
    %v3365 = vpop.f32.mrb[0].mxu0
    %v3366 = vadd.f32 %v3013, %v3365
    %v3367 = vpop.f32.mrb[0].mxu0
    %v3368 = vadd.f32 %v3015, %v3367
    %v3369 = vpop.f32.mrb[0].mxu0
    %v3370 = vadd.f32 %v3017, %v3369
    %3371 = vmatprep.mubr.bf16.mxu0 %v1112
    %3372 = vmatmul.mubr.bf16.gmra.mrb[0].mxu0 %v1096
    %v3373 = vpop.f32.mrb[0].mxu0
    %v3374 = vadd.f32 %v3021, %v3373
    %v3375 = vpop.f32.mrb[0].mxu0
    %v3376 = vadd.f32 %v3023, %v3375
    %v3377 = vpop.f32.mrb[0].mxu0
    %v3378 = vadd.f32 %v3025, %v3377
    %v3379 = vpop.f32.mrb[0].mxu0
    %v3380 = vadd.f32 %v3027, %v3379
    %3381 = vmatprep.mubr.bf16.mxu0 %v1113
    %3382 = vmatmul.mubr.bf16.gmra.mrb[0].mxu0 %v1097
    %v3383 = vpop.f32.mrb[0].mxu0
    %v3384 = vadd.f32 %v3031, %v3383
    %v3385 = vpop.f32.mrb[0].mxu0
    %v3386 = vadd.f32 %v3033, %v3385
    %v3387 = vpop.f32.mrb[0].mxu0
    %v3388 = vadd.f32 %v3035, %v3387
    %v3389 = vpop.f32.mrb[0].mxu0
    %v3390 = vadd.f32 %v3037, %v3389
    %3391 = vmatprep.mubr.bf16.mxu0 %v1174
    %3392 = vmatmul.mubr.bf16.gmra.mrb[0].mxu0 %v1158
    %v3393 = vpop.f32.mrb[0].mxu0
    %v3394 = vadd.f32 %v3041, %v3393
    %v3395 = vpop.f32.mrb[0].mxu0
    %v3396 = vadd.f32 %v3043, %v3395
    %v3397 = vpop.f32.mrb[0].mxu0
    %v3398 = vadd.f32 %v3045, %v3397
    %v3399 = vpop.f32.mrb[0].mxu0
    %v3400 = vadd.f32 %v3047, %v3399
    %3401 = vmatprep.mubr.bf16.mxu0 %v1175
    %3402 = vmatmul.mubr.bf16.gmra.mrb[0].mxu0 %v1159
    %v3403 = vpop.f32.mrb[0].mxu0
    %v3404 = vadd.f32 %v3051, %v3403
    %v3405 = vpop.f32.mrb[0].mxu0
    %v3406 = vadd.f32 %v3053, %v3405
    %v3407 = vpop.f32.mrb[0].mxu0
    %v3408 = vadd.f32 %v3055, %v3407
    %v3409 = vpop.f32.mrb[0].mxu0
    %v3410 = vadd.f32 %v3057, %v3409
    %3411 = vmatprep.mubr.bf16.mxu0 %v1176
    %3412 = vmatmul.mubr.bf16.gmra.mrb[0].mxu0 %v1160
    %v3413 = vpop.f32.mrb[0].mxu0
    %v3414 = vadd.f32 %v3061, %v3413
    %v3415 = vpop.f32.mrb[0].mxu0
    %v3416 = vadd.f32 %v3063, %v3415
    %v3417 = vpop.f32.mrb[0].mxu0
    %v3418 = vadd.f32 %v3065, %v3417
    %v3419 = vpop.f32.mrb[0].mxu0
    %v3420 = vadd.f32 %v3067, %v3419
    %3421 = vmatprep.mubr.bf16.mxu0 %v1177
    %3422 = vmatmul.mubr.bf16.gmra.mrb[0].mxu0 %v1161
    %v3423 = vpop.f32.mrb[0].mxu0
    %v3424 = vadd.f32 %v3071, %v3423
    %v3425 = vpop.f32.mrb[0].mxu0
    %v3426 = vadd.f32 %v3073, %v3425
    %v3427 = vpop.f32.mrb[0].mxu0
    %v3428 = vadd.f32 %v3075, %v3427
    %v3429 = vpop.f32.mrb[0].mxu0
    %v3430 = vadd.f32 %v3077, %v3429
    %3431 = vmatprep.mubr.bf16.mxu0 %v1238
    %3432 = vmatmul.mubr.bf16.gmra.mrb[0].mxu0 %v1222
    %v3433 = vpop.f32.mrb[0].mxu0
    %v3434 = vadd.f32 %v3081, %v3433
    %v3435 = vpop.f32.mrb[0].mxu0
    %v3436 = vadd.f32 %v3083, %v3435
    %v3437 = vpop.f32.mrb[0].mxu0
    %v3438 = vadd.f32 %v3085, %v3437
    %v3439 = vpop.f32.mrb[0].mxu0
    %v3440 = vadd.f32 %v3087, %v3439
    %3441 = vmatprep.mubr.bf16.mxu0 %v1239
    %3442 = vmatmul.mubr.bf16.gmra.mrb[0].mxu0 %v1223
    %v3443 = vpop.f32.mrb[0].mxu0
    %v3444 = vadd.f32 %v3091, %v3443
    %v3445 = vpop.f32.mrb[0].mxu0
    %v3446 = vadd.f32 %v3093, %v3445
    %v3447 = vpop.f32.mrb[0].mxu0
    %v3448 = vadd.f32 %v3095, %v3447
    %v3449 = vpop.f32.mrb[0].mxu0
    %v3450 = vadd.f32 %v3097, %v3449
    %3451 = vmatprep.mubr.bf16.mxu0 %v1240
    %3452 = vmatmul.mubr.bf16.gmra.mrb[0].mxu0 %v1224
    %v3453 = vpop.f32.mrb[0].mxu0
    %v3454 = vadd.f32 %v3101, %v3453
    %v3455 = vpop.f32.mrb[0].mxu0
    %v3456 = vadd.f32 %v3103, %v3455
    %v3457 = vpop.f32.mrb[0].mxu0
    %v3458 = vadd.f32 %v3105, %v3457
    %v3459 = vpop.f32.mrb[0].mxu0
    %v3460 = vadd.f32 %v3107, %v3459
    %3461 = vmatprep.mubr.bf16.mxu0 %v1241
    %3462 = vmatmul.mubr.bf16.gmra.mrb[0].mxu0 %v1225
    %v3463 = vpop.f32.mrb[0].mxu0
    %v3464 = vadd.f32 %v3111, %v3463
    %v3465 = vpop.f32.mrb[0].mxu0
    %v3466 = vadd.f32 %v3113, %v3465
    %v3467 = vpop.f32.mrb[0].mxu0
    %v3468 = vadd.f32 %v3115, %v3467
    %v3469 = vpop.f32.mrb[0].mxu0
    %v3470 = vadd.f32 %v3117, %v3469
    %3471 = vmatprep.mubr.bf16.mxu0 %v1302
    %3472 = vmatmul.mubr.bf16.gmra.mrb[0].mxu0 %v1286
    %v3473 = vpop.f32.mrb[0].mxu0
    %v3474 = vadd.f32 %v3121, %v3473
    %v3475 = vpop.f32.mrb[0].mxu0
    %v3476 = vadd.f32 %v3123, %v3475
    %v3477 = vpop.f32.mrb[0].mxu0
    %v3478 = vadd.f32 %v3125, %v3477
    %v3479 = vpop.f32.mrb[0].mxu0
    %v3480 = vadd.f32 %v3127, %v3479
    %3481 = vmatprep.mubr.bf16.mxu0 %v1303
    %3482 = vmatmul.mubr.bf16.gmra.mrb[0].mxu0 %v1287
    %v3483 = vpop.f32.mrb[0].mxu0
    %v3484 = vadd.f32 %v3131, %v3483
    %v3485 = vpop.f32.mrb[0].mxu0
    %v3486 = vadd.f32 %v3133, %v3485
    %v3487 = vpop.f32.mrb[0].mxu0
    %v3488 = vadd.f32 %v3135, %v3487
    %v3489 = vpop.f32.mrb[0].mxu0
    %v3490 = vadd.f32 %v3137, %v3489
    %3491 = vmatprep.mubr.bf16.mxu0 %v1304
    %3492 = vmatmul.mubr.bf16.gmra.mrb[0].mxu0 %v1288
    %v3493 = vpop.f32.mrb[0].mxu0
    %v3494 = vadd.f32 %v3141, %v3493
    %v3495 = vpop.f32.mrb[0].mxu0
    %v3496 = vadd.f32 %v3143, %v3495
    %v3497 = vpop.f32.mrb[0].mxu0
    %v3498 = vadd.f32 %v3145, %v3497
    %v3499 = vpop.f32.mrb[0].mxu0
    %v3500 = vadd.f32 %v3147, %v3499
    %3501 = vmatprep.mubr.bf16.mxu0 %v1305
    %3502 = vmatmul.mubr.bf16.gmra.mrb[0].mxu0 %v1289
    %v3503 = vpop.f32.mrb[0].mxu0
    %v3504 = vadd.f32 %v3151, %v3503
    %v3505 = vpop.f32.mrb[0].mxu0
    %v3506 = vadd.f32 %v3153, %v3505
    %v3507 = vpop.f32.mrb[0].mxu0
    %v3508 = vadd.f32 %v3155, %v3507
    %v3509 = vpop.f32.mrb[0].mxu0
    %v3510 = vadd.f32 %v3157, %v3509
    %3511 = vdwg.mxu0
    %v3512 = vmax.f32 %v2488, 0.0
    %v3513 = vmax.f32 %v2490, 0.0
    %v3514 = vmax.f32 %v3194, 0.0
    %v3515 = vmax.f32 %v3196, 0.0
    %v3516 = vmax.f32 %v2492, 0.0
    %v3517 = vmax.f32 %v2494, 0.0
    %v3518 = vmax.f32 %v3198, 0.0
    %v3519 = vmax.f32 %v3200, 0.0
    %v3520 = vmax.f32 %v2498, 0.0
    %v3521 = vmax.f32 %v2500, 0.0
    %v3522 = vmax.f32 %v3204, 0.0
    %v3523 = vmax.f32 %v3206, 0.0
    %v3524 = vmax.f32 %v2502, 0.0
    %v3525 = vmax.f32 %v2504, 0.0
    %v3526 = vmax.f32 %v3208, 0.0
    %v3527 = vmax.f32 %v3210, 0.0
    %v3528 = vmax.f32 %v2508, 0.0
    %v3529 = vmax.f32 %v2510, 0.0
    %v3530 = vmax.f32 %v3214, 0.0
    %v3531 = vmax.f32 %v3216, 0.0
    %v3532 = vmax.f32 %v2512, 0.0
    %v3533 = vmax.f32 %v2514, 0.0
    %v3534 = vmax.f32 %v3218, 0.0
    %v3535 = vmax.f32 %v3220, 0.0
    %v3536 = vmax.f32 %v2518, 0.0
    %v3537 = vmax.f32 %v2520, 0.0
    %v3538 = vmax.f32 %v3224, 0.0
    %v3539 = vmax.f32 %v3226, 0.0
    %v3540 = vmax.f32 %v2522, 0.0
    %v3541 = vmax.f32 %v2524, 0.0
    %v3542 = vmax.f32 %v3228, 0.0
    %v3543 = vmax.f32 %v3230, 0.0
    %v3544 = vmax.f32 %v2528, 0.0
    %v3545 = vmax.f32 %v2530, 0.0
    %v3546 = vmax.f32 %v3234, 0.0
    %v3547 = vmax.f32 %v3236, 0.0
    %v3548 = vmax.f32 %v2532, 0.0
    %v3549 = vmax.f32 %v2534, 0.0
    %v3550 = vmax.f32 %v3238, 0.0
    %v3551 = vmax.f32 %v3240, 0.0
    %v3552 = vmax.f32 %v2538, 0.0
    %v3553 = vmax.f32 %v2540, 0.0
    %v3554 = vmax.f32 %v3244, 0.0
    %v3555 = vmax.f32 %v3246, 0.0
    %v3556 = vmax.f32 %v2542, 0.0
    %v3557 = vmax.f32 %v2544, 0.0
    %v3558 = vmax.f32 %v3248, 0.0
    %v3559 = vmax.f32 %v3250, 0.0
    %v3560 = vmax.f32 %v2548, 0.0
    %v3561 = vmax.f32 %v2550, 0.0
    %v3562 = vmax.f32 %v3254, 0.0
    %v3563 = vmax.f32 %v3256, 0.0
    %v3564 = vmax.f32 %v2552, 0.0
    %v3565 = vmax.f32 %v2554, 0.0
    %v3566 = vmax.f32 %v3258, 0.0
    %v3567 = vmax.f32 %v3260, 0.0
    %v3568 = vmax.f32 %v2558, 0.0
    %v3569 = vmax.f32 %v2560, 0.0
    %v3570 = vmax.f32 %v3264, 0.0
    %v3571 = vmax.f32 %v3266, 0.0
    %v3572 = vmax.f32 %v2562, 0.0
    %v3573 = vmax.f32 %v2564, 0.0
    %v3574 = vmax.f32 %v3268, 0.0
    %v3575 = vmax.f32 %v3270, 0.0
    %v3576 = vmax.f32 %v2568, 0.0
    %v3577 = vmax.f32 %v2570, 0.0
    %v3578 = vmax.f32 %v3274, 0.0
    %v3579 = vmax.f32 %v3276, 0.0
    %v3580 = vmax.f32 %v2572, 0.0
    %v3581 = vmax.f32 %v2574, 0.0
    %v3582 = vmax.f32 %v3278, 0.0
    %v3583 = vmax.f32 %v3280, 0.0
    %v3584 = vmax.f32 %v2578, 0.0
    %v3585 = vmax.f32 %v2580, 0.0
    %v3586 = vmax.f32 %v3284, 0.0
    %v3587 = vmax.f32 %v3286, 0.0
    %v3588 = vmax.f32 %v2582, 0.0
    %v3589 = vmax.f32 %v2584, 0.0
    %v3590 = vmax.f32 %v3288, 0.0
    %v3591 = vmax.f32 %v3290, 0.0
    %v3592 = vmax.f32 %v2588, 0.0
    %v3593 = vmax.f32 %v2590, 0.0
    %v3594 = vmax.f32 %v3294, 0.0
    %v3595 = vmax.f32 %v3296, 0.0
    %v3596 = vmax.f32 %v2592, 0.0
    %v3597 = vmax.f32 %v2594, 0.0
    %v3598 = vmax.f32 %v3298, 0.0
    %v3599 = vmax.f32 %v3300, 0.0
    %v3600 = vmax.f32 %v2598, 0.0
    %v3601 = vmax.f32 %v2600, 0.0
    %v3602 = vmax.f32 %v3304, 0.0
    %v3603 = vmax.f32 %v3306, 0.0
    %v3604 = vmax.f32 %v2602, 0.0
    %v3605 = vmax.f32 %v2604, 0.0
    %v3606 = vmax.f32 %v3308, 0.0
    %v3607 = vmax.f32 %v3310, 0.0
    %v3608 = vmax.f32 %v2608, 0.0
    %v3609 = vmax.f32 %v2610, 0.0
    %v3610 = vmax.f32 %v3314, 0.0
    %v3611 = vmax.f32 %v3316, 0.0
    %v3612 = vmax.f32 %v2612, 0.0
    %v3613 = vmax.f32 %v2614, 0.0
    %v3614 = vmax.f32 %v3318, 0.0
    %v3615 = vmax.f32 %v3320, 0.0
    %v3616 = vmax.f32 %v2618, 0.0
    %v3617 = vmax.f32 %v2620, 0.0
    %v3618 = vmax.f32 %v3324, 0.0
    %v3619 = vmax.f32 %v3326, 0.0
    %v3620 = vmax.f32 %v2622, 0.0
    %v3621 = vmax.f32 %v2624, 0.0
    %v3622 = vmax.f32 %v3328, 0.0
    %v3623 = vmax.f32 %v3330, 0.0
    %v3624 = vmax.f32 %v2628, 0.0
    %v3625 = vmax.f32 %v2630, 0.0
    %v3626 = vmax.f32 %v3334, 0.0
    %v3627 = vmax.f32 %v3336, 0.0
    %v3628 = vmax.f32 %v2632, 0.0
    %v3629 = vmax.f32 %v2634, 0.0
    %v3630 = vmax.f32 %v3338, 0.0
    %v3631 = vmax.f32 %v3340, 0.0
    %v3632 = vmax.f32 %v2638, 0.0
    %v3633 = vmax.f32 %v2640, 0.0
    %v3634 = vmax.f32 %v3344, 0.0
    %v3635 = vmax.f32 %v3346, 0.0
    %v3636 = vmax.f32 %v2642, 0.0
    %v3637 = vmax.f32 %v2644, 0.0
    %v3638 = vmax.f32 %v3348, 0.0
    %v3639 = vmax.f32 %v3350, 0.0
    %v3640 = vmax.f32 %v2648, 0.0
    %v3641 = vmax.f32 %v2650, 0.0
    %v3642 = vmax.f32 %v3354, 0.0
    %v3643 = vmax.f32 %v3356, 0.0
    %v3644 = vmax.f32 %v2652, 0.0
    %v3645 = vmax.f32 %v2654, 0.0
    %v3646 = vmax.f32 %v3358, 0.0
    %v3647 = vmax.f32 %v3360, 0.0
    %v3648 = vmax.f32 %v2658, 0.0
    %v3649 = vmax.f32 %v2660, 0.0
    %v3650 = vmax.f32 %v3364, 0.0
    %v3651 = vmax.f32 %v3366, 0.0
    %v3652 = vmax.f32 %v2662, 0.0
    %v3653 = vmax.f32 %v2664, 0.0
    %v3654 = vmax.f32 %v3368, 0.0
    %v3655 = vmax.f32 %v3370, 0.0
    %v3656 = vmax.f32 %v2668, 0.0
    %v3657 = vmax.f32 %v2670, 0.0
    %v3658 = vmax.f32 %v3374, 0.0
    %v3659 = vmax.f32 %v3376, 0.0
    %v3660 = vmax.f32 %v2672, 0.0
    %v3661 = vmax.f32 %v2674, 0.0
    %v3662 = vmax.f32 %v3378, 0.0
    %v3663 = vmax.f32 %v3380, 0.0
    %v3664 = vmax.f32 %v2678, 0.0
    %v3665 = vmax.f32 %v2680, 0.0
    %v3666 = vmax.f32 %v3384, 0.0
    %v3667 = vmax.f32 %v3386, 0.0
    %v3668 = vmax.f32 %v2682, 0.0
    %v3669 = vmax.f32 %v2684, 0.0
    %v3670 = vmax.f32 %v3388, 0.0
    %v3671 = vmax.f32 %v3390, 0.0
    %v3672 = vmax.f32 %v2688, 0.0
    %v3673 = vmax.f32 %v2690, 0.0
    %v3674 = vmax.f32 %v3394, 0.0
    %v3675 = vmax.f32 %v3396, 0.0
    %v3676 = vmax.f32 %v2692, 0.0
    %v3677 = vmax.f32 %v2694, 0.0
    %v3678 = vmax.f32 %v3398, 0.0
    %v3679 = vmax.f32 %v3400, 0.0
    %v3680 = vmax.f32 %v2698, 0.0
    %v3681 = vmax.f32 %v2700, 0.0
    %v3682 = vmax.f32 %v3404, 0.0
    %v3683 = vmax.f32 %v3406, 0.0
    %v3684 = vmax.f32 %v2702, 0.0
    %v3685 = vmax.f32 %v2704, 0.0
    %v3686 = vmax.f32 %v3408, 0.0
    %v3687 = vmax.f32 %v3410, 0.0
    %v3688 = vmax.f32 %v2708, 0.0
    %v3689 = vmax.f32 %v2710, 0.0
    %v3690 = vmax.f32 %v3414, 0.0
    %v3691 = vmax.f32 %v3416, 0.0
    %v3692 = vmax.f32 %v2712, 0.0
    %v3693 = vmax.f32 %v2714, 0.0
    %v3694 = vmax.f32 %v3418, 0.0
    %v3695 = vmax.f32 %v3420, 0.0
    %v3696 = vmax.f32 %v2718, 0.0
    %v3697 = vmax.f32 %v2720, 0.0
    %v3698 = vmax.f32 %v3424, 0.0
    %v3699 = vmax.f32 %v3426, 0.0
    %v3700 = vmax.f32 %v2722, 0.0
    %v3701 = vmax.f32 %v2724, 0.0
    %v3702 = vmax.f32 %v3428, 0.0
    %v3703 = vmax.f32 %v3430, 0.0
    %v3704 = vmax.f32 %v2728, 0.0
    %v3705 = vmax.f32 %v2730, 0.0
    %v3706 = vmax.f32 %v3434, 0.0
    %v3707 = vmax.f32 %v3436, 0.0
    %v3708 = vmax.f32 %v2732, 0.0
    %v3709 = vmax.f32 %v2734, 0.0
    %v3710 = vmax.f32 %v3438, 0.0
    %v3711 = vmax.f32 %v3440, 0.0
    %v3712 = vmax.f32 %v2738, 0.0
    %v3713 = vmax.f32 %v2740, 0.0
    %v3714 = vmax.f32 %v3444, 0.0
    %v3715 = vmax.f32 %v3446, 0.0
    %v3716 = vmax.f32 %v2742, 0.0
    %v3717 = vmax.f32 %v2744, 0.0
    %v3718 = vmax.f32 %v3448, 0.0
    %v3719 = vmax.f32 %v3450, 0.0
    %v3720 = vmax.f32 %v2748, 0.0
    %v3721 = vmax.f32 %v2750, 0.0
    %v3722 = vmax.f32 %v3454, 0.0
    %v3723 = vmax.f32 %v3456, 0.0
    %v3724 = vmax.f32 %v2752, 0.0
    %v3725 = vmax.f32 %v2754, 0.0
    %v3726 = vmax.f32 %v3458, 0.0
    %v3727 = vmax.f32 %v3460, 0.0
    %v3728 = vmax.f32 %v2758, 0.0
    %v3729 = vmax.f32 %v2760, 0.0
    %v3730 = vmax.f32 %v3464, 0.0
    %v3731 = vmax.f32 %v3466, 0.0
    %v3732 = vmax.f32 %v2762, 0.0
    %v3733 = vmax.f32 %v2764, 0.0
    %v3734 = vmax.f32 %v3468, 0.0
    %v3735 = vmax.f32 %v3470, 0.0
    %v3736 = vmax.f32 %v2768, 0.0
    %v3737 = vmax.f32 %v2770, 0.0
    %v3738 = vmax.f32 %v3474, 0.0
    %v3739 = vmax.f32 %v3476, 0.0
    %v3740 = vmax.f32 %v2772, 0.0
    %v3741 = vmax.f32 %v2774, 0.0
    %v3742 = vmax.f32 %v3478, 0.0
    %v3743 = vmax.f32 %v3480, 0.0
    %v3744 = vmax.f32 %v2778, 0.0
    %v3745 = vmax.f32 %v2780, 0.0
    %v3746 = vmax.f32 %v3484, 0.0
    %v3747 = vmax.f32 %v3486, 0.0
    %v3748 = vmax.f32 %v2782, 0.0
    %v3749 = vmax.f32 %v2784, 0.0
    %v3750 = vmax.f32 %v3488, 0.0
    %v3751 = vmax.f32 %v3490, 0.0
    %v3752 = vmax.f32 %v2788, 0.0
    %v3753 = vmax.f32 %v2790, 0.0
    %v3754 = vmax.f32 %v3494, 0.0
    %v3755 = vmax.f32 %v3496, 0.0
    %v3756 = vmax.f32 %v2792, 0.0
    %v3757 = vmax.f32 %v2794, 0.0
    %v3758 = vmax.f32 %v3498, 0.0
    %v3759 = vmax.f32 %v3500, 0.0
    %v3760 = vmax.f32 %v2798, 0.0
    %v3761 = vmax.f32 %v2800, 0.0
    %v3762 = vmax.f32 %v3504, 0.0
    %v3763 = vmax.f32 %v3506, 0.0
    %v3764 = vmax.f32 %v2802, 0.0
    %v3765 = vmax.f32 %v2804, 0.0
    %v3766 = vmax.f32 %v3508, 0.0
    %v3767 = vmax.f32 %v3510, 0.0
    %v3768 = vadd.f32 %v3512, %v3516
    %v3769 = vadd.f32 %v3768, %v3520
    %v3770 = vadd.f32 %v3769, %v3524
    %v3771 = vadd.f32 %v3770, %v3528
    %v3772 = vadd.f32 %v3771, %v3532
    %v3773 = vadd.f32 %v3772, %v3536
    %v3774 = vadd.f32 %v3773, %v3540
    %v3775 = vrot.slane %v3774, 4
    %v3776 = vadd.f32 %v3774, %v3775
    %v3777 = vrot.slane %v3776, 2
    %v3778 = vadd.f32 %v3776, %v3777
    %v3779 = vrot.slane %v3778, 1
    %v3780 = vadd.f32 %v3778, %v3779
    %v3781 = vadd.f32 %v3513, %v3517
    %v3782 = vadd.f32 %v3781, %v3521
    %v3783 = vadd.f32 %v3782, %v3525
    %v3784 = vadd.f32 %v3783, %v3529
    %v3785 = vadd.f32 %v3784, %v3533
    %v3786 = vadd.f32 %v3785, %v3537
    %v3787 = vadd.f32 %v3786, %v3541
    %v3788 = vrot.slane %v3787, 4
    %v3789 = vadd.f32 %v3787, %v3788
    %v3790 = vrot.slane %v3789, 2
    %v3791 = vadd.f32 %v3789, %v3790
    %v3792 = vrot.slane %v3791, 1
    %v3793 = vadd.f32 %v3791, %v3792
    %v3794 = vadd.f32 %v3514, %v3518
    %v3795 = vadd.f32 %v3794, %v3522
    %v3796 = vadd.f32 %v3795, %v3526
    %v3797 = vadd.f32 %v3796, %v3530
    %v3798 = vadd.f32 %v3797, %v3534
    %v3799 = vadd.f32 %v3798, %v3538
    %v3800 = vadd.f32 %v3799, %v3542
    %v3801 = vrot.slane %v3800, 4
    %v3802 = vadd.f32 %v3800, %v3801
    %v3803 = vrot.slane %v3802, 2
    %v3804 = vadd.f32 %v3802, %v3803
    %v3805 = vrot.slane %v3804, 1
    %v3806 = vadd.f32 %v3804, %v3805
    %v3807 = vadd.f32 %v3515, %v3519
    %v3808 = vadd.f32 %v3807, %v3523
    %v3809 = vadd.f32 %v3808, %v3527
    %v3810 = vadd.f32 %v3809, %v3531
    %v3811 = vadd.f32 %v3810, %v3535
    %v3812 = vadd.f32 %v3811, %v3539
    %v3813 = vadd.f32 %v3812, %v3543
    %v3814 = vrot.slane %v3813, 4
    %v3815 = vadd.f32 %v3813, %v3814
    %v3816 = vrot.slane %v3815, 2
    %v3817 = vadd.f32 %v3815, %v3816
    %v3818 = vrot.slane %v3817, 1
    %v3819 = vadd.f32 %v3817, %v3818
    %v3820 = vadd.f32 %v3544, %v3548
    %v3821 = vadd.f32 %v3820, %v3552
    %v3822 = vadd.f32 %v3821, %v3556
    %v3823 = vadd.f32 %v3822, %v3560
    %v3824 = vadd.f32 %v3823, %v3564
    %v3825 = vadd.f32 %v3824, %v3568
    %v3826 = vadd.f32 %v3825, %v3572
    %v3827 = vrot.slane %v3826, 4
    %v3828 = vadd.f32 %v3826, %v3827
    %v3829 = vrot.slane %v3828, 2
    %v3830 = vadd.f32 %v3828, %v3829
    %v3831 = vrot.slane %v3830, 1
    %v3832 = vadd.f32 %v3830, %v3831
    %v3833 = vadd.f32 %v3545, %v3549
    %v3834 = vadd.f32 %v3833, %v3553
    %v3835 = vadd.f32 %v3834, %v3557
    %v3836 = vadd.f32 %v3835, %v3561
    %v3837 = vadd.f32 %v3836, %v3565
    %v3838 = vadd.f32 %v3837, %v3569
    %v3839 = vadd.f32 %v3838, %v3573
    %v3840 = vrot.slane %v3839, 4
    %v3841 = vadd.f32 %v3839, %v3840
    %v3842 = vrot.slane %v3841, 2
    %v3843 = vadd.f32 %v3841, %v3842
    %v3844 = vrot.slane %v3843, 1
    %v3845 = vadd.f32 %v3843, %v3844
    %v3846 = vadd.f32 %v3546, %v3550
    %v3847 = vadd.f32 %v3846, %v3554
    %v3848 = vadd.f32 %v3847, %v3558
    %v3849 = vadd.f32 %v3848, %v3562
    %v3850 = vadd.f32 %v3849, %v3566
    %v3851 = vadd.f32 %v3850, %v3570
    %v3852 = vadd.f32 %v3851, %v3574
    %v3853 = vrot.slane %v3852, 4
    %v3854 = vadd.f32 %v3852, %v3853
    %v3855 = vrot.slane %v3854, 2
    %v3856 = vadd.f32 %v3854, %v3855
    %v3857 = vrot.slane %v3856, 1
    %v3858 = vadd.f32 %v3856, %v3857
    %v3859 = vadd.f32 %v3547, %v3551
    %v3860 = vadd.f32 %v3859, %v3555
    %v3861 = vadd.f32 %v3860, %v3559
    %v3862 = vadd.f32 %v3861, %v3563
    %v3863 = vadd.f32 %v3862, %v3567
    %v3864 = vadd.f32 %v3863, %v3571
    %v3865 = vadd.f32 %v3864, %v3575
    %v3866 = vrot.slane %v3865, 4
    %v3867 = vadd.f32 %v3865, %v3866
    %v3868 = vrot.slane %v3867, 2
    %v3869 = vadd.f32 %v3867, %v3868
    %v3870 = vrot.slane %v3869, 1
    %v3871 = vadd.f32 %v3869, %v3870
    %v3872 = vadd.f32 %v3576, %v3580
    %v3873 = vadd.f32 %v3872, %v3584
    %v3874 = vadd.f32 %v3873, %v3588
    %v3875 = vadd.f32 %v3874, %v3592
    %v3876 = vadd.f32 %v3875, %v3596
    %v3877 = vadd.f32 %v3876, %v3600
    %v3878 = vadd.f32 %v3877, %v3604
    %v3879 = vrot.slane %v3878, 4
    %v3880 = vadd.f32 %v3878, %v3879
    %v3881 = vrot.slane %v3880, 2
    %v3882 = vadd.f32 %v3880, %v3881
    %v3883 = vrot.slane %v3882, 1
    %v3884 = vadd.f32 %v3882, %v3883
    %v3885 = vadd.f32 %v3577, %v3581
    %v3886 = vadd.f32 %v3885, %v3585
    %v3887 = vadd.f32 %v3886, %v3589
    %v3888 = vadd.f32 %v3887, %v3593
    %v3889 = vadd.f32 %v3888, %v3597
    %v3890 = vadd.f32 %v3889, %v3601
    %v3891 = vadd.f32 %v3890, %v3605
    %v3892 = vrot.slane %v3891, 4
    %v3893 = vadd.f32 %v3891, %v3892
    %v3894 = vrot.slane %v3893, 2
    %v3895 = vadd.f32 %v3893, %v3894
    %v3896 = vrot.slane %v3895, 1
    %v3897 = vadd.f32 %v3895, %v3896
    %v3898 = vadd.f32 %v3578, %v3582
    %v3899 = vadd.f32 %v3898, %v3586
    %v3900 = vadd.f32 %v3899, %v3590
    %v3901 = vadd.f32 %v3900, %v3594
    %v3902 = vadd.f32 %v3901, %v3598
    %v3903 = vadd.f32 %v3902, %v3602
    %v3904 = vadd.f32 %v3903, %v3606
    %v3905 = vrot.slane %v3904, 4
    %v3906 = vadd.f32 %v3904, %v3905
    %v3907 = vrot.slane %v3906, 2
    %v3908 = vadd.f32 %v3906, %v3907
    %v3909 = vrot.slane %v3908, 1
    %v3910 = vadd.f32 %v3908, %v3909
    %v3911 = vadd.f32 %v3579, %v3583
    %v3912 = vadd.f32 %v3911, %v3587
    %v3913 = vadd.f32 %v3912, %v3591
    %v3914 = vadd.f32 %v3913, %v3595
    %v3915 = vadd.f32 %v3914, %v3599
    %v3916 = vadd.f32 %v3915, %v3603
    %v3917 = vadd.f32 %v3916, %v3607
    %v3918 = vrot.slane %v3917, 4
    %v3919 = vadd.f32 %v3917, %v3918
    %v3920 = vrot.slane %v3919, 2
    %v3921 = vadd.f32 %v3919, %v3920
    %v3922 = vrot.slane %v3921, 1
    %v3923 = vadd.f32 %v3921, %v3922
    %v3924 = vadd.f32 %v3608, %v3612
    %v3925 = vadd.f32 %v3924, %v3616
    %v3926 = vadd.f32 %v3925, %v3620
    %v3927 = vadd.f32 %v3926, %v3624
    %v3928 = vadd.f32 %v3927, %v3628
    %v3929 = vadd.f32 %v3928, %v3632
    %v3930 = vadd.f32 %v3929, %v3636
    %v3931 = vrot.slane %v3930, 4
    %v3932 = vadd.f32 %v3930, %v3931
    %v3933 = vrot.slane %v3932, 2
    %v3934 = vadd.f32 %v3932, %v3933
    %v3935 = vrot.slane %v3934, 1
    %v3936 = vadd.f32 %v3934, %v3935
    %v3937 = vadd.f32 %v3609, %v3613
    %v3938 = vadd.f32 %v3937, %v3617
    %v3939 = vadd.f32 %v3938, %v3621
    %v3940 = vadd.f32 %v3939, %v3625
    %v3941 = vadd.f32 %v3940, %v3629
    %v3942 = vadd.f32 %v3941, %v3633
    %v3943 = vadd.f32 %v3942, %v3637
    %v3944 = vrot.slane %v3943, 4
    %v3945 = vadd.f32 %v3943, %v3944
    %v3946 = vrot.slane %v3945, 2
    %v3947 = vadd.f32 %v3945, %v3946
    %v3948 = vrot.slane %v3947, 1
    %v3949 = vadd.f32 %v3947, %v3948
    %v3950 = vadd.f32 %v3610, %v3614
    %v3951 = vadd.f32 %v3950, %v3618
    %v3952 = vadd.f32 %v3951, %v3622
    %v3953 = vadd.f32 %v3952, %v3626
    %v3954 = vadd.f32 %v3953, %v3630
    %v3955 = vadd.f32 %v3954, %v3634
    %v3956 = vadd.f32 %v3955, %v3638
    %v3957 = vrot.slane %v3956, 4
    %v3958 = vadd.f32 %v3956, %v3957
    %v3959 = vrot.slane %v3958, 2
    %v3960 = vadd.f32 %v3958, %v3959
    %v3961 = vrot.slane %v3960, 1
    %v3962 = vadd.f32 %v3960, %v3961
    %v3963 = vadd.f32 %v3611, %v3615
    %v3964 = vadd.f32 %v3963, %v3619
    %v3965 = vadd.f32 %v3964, %v3623
    %v3966 = vadd.f32 %v3965, %v3627
    %v3967 = vadd.f32 %v3966, %v3631
    %v3968 = vadd.f32 %v3967, %v3635
    %v3969 = vadd.f32 %v3968, %v3639
    %v3970 = vrot.slane %v3969, 4
    %v3971 = vadd.f32 %v3969, %v3970
    %v3972 = vrot.slane %v3971, 2
    %v3973 = vadd.f32 %v3971, %v3972
    %v3974 = vrot.slane %v3973, 1
    %v3975 = vadd.f32 %v3973, %v3974
    %v3976 = vadd.f32 %v3640, %v3644
    %v3977 = vadd.f32 %v3976, %v3648
    %v3978 = vadd.f32 %v3977, %v3652
    %v3979 = vadd.f32 %v3978, %v3656
    %v3980 = vadd.f32 %v3979, %v3660
    %v3981 = vadd.f32 %v3980, %v3664
    %v3982 = vadd.f32 %v3981, %v3668
    %v3983 = vrot.slane %v3982, 4
    %v3984 = vadd.f32 %v3982, %v3983
    %v3985 = vrot.slane %v3984, 2
    %v3986 = vadd.f32 %v3984, %v3985
    %v3987 = vrot.slane %v3986, 1
    %v3988 = vadd.f32 %v3986, %v3987
    %v3989 = vadd.f32 %v3641, %v3645
    %v3990 = vadd.f32 %v3989, %v3649
    %v3991 = vadd.f32 %v3990, %v3653
    %v3992 = vadd.f32 %v3991, %v3657
    %v3993 = vadd.f32 %v3992, %v3661
    %v3994 = vadd.f32 %v3993, %v3665
    %v3995 = vadd.f32 %v3994, %v3669
    %v3996 = vrot.slane %v3995, 4
    %v3997 = vadd.f32 %v3995, %v3996
    %v3998 = vrot.slane %v3997, 2
    %v3999 = vadd.f32 %v3997, %v3998
    %v4000 = vrot.slane %v3999, 1
    %v4001 = vadd.f32 %v3999, %v4000
    %v4002 = vadd.f32 %v3642, %v3646
    %v4003 = vadd.f32 %v4002, %v3650
    %v4004 = vadd.f32 %v4003, %v3654
    %v4005 = vadd.f32 %v4004, %v3658
    %v4006 = vadd.f32 %v4005, %v3662
    %v4007 = vadd.f32 %v4006, %v3666
    %v4008 = vadd.f32 %v4007, %v3670
    %v4009 = vrot.slane %v4008, 4
    %v4010 = vadd.f32 %v4008, %v4009
    %v4011 = vrot.slane %v4010, 2
    %v4012 = vadd.f32 %v4010, %v4011
    %v4013 = vrot.slane %v4012, 1
    %v4014 = vadd.f32 %v4012, %v4013
    %v4015 = vadd.f32 %v3643, %v3647
    %v4016 = vadd.f32 %v4015, %v3651
    %v4017 = vadd.f32 %v4016, %v3655
    %v4018 = vadd.f32 %v4017, %v3659
    %v4019 = vadd.f32 %v4018, %v3663
    %v4020 = vadd.f32 %v4019, %v3667
    %v4021 = vadd.f32 %v4020, %v3671
    %v4022 = vrot.slane %v4021, 4
    %v4023 = vadd.f32 %v4021, %v4022
    %v4024 = vrot.slane %v4023, 2
    %v4025 = vadd.f32 %v4023, %v4024
    %v4026 = vrot.slane %v4025, 1
    %v4027 = vadd.f32 %v4025, %v4026
    %v4028 = vadd.f32 %v3672, %v3676
    %v4029 = vadd.f32 %v4028, %v3680
    %v4030 = vadd.f32 %v4029, %v3684
    %v4031 = vadd.f32 %v4030, %v3688
    %v4032 = vadd.f32 %v4031, %v3692
    %v4033 = vadd.f32 %v4032, %v3696
    %v4034 = vadd.f32 %v4033, %v3700
    %v4035 = vrot.slane %v4034, 4
    %v4036 = vadd.f32 %v4034, %v4035
    %v4037 = vrot.slane %v4036, 2
    %v4038 = vadd.f32 %v4036, %v4037
    %v4039 = vrot.slane %v4038, 1
    %v4040 = vadd.f32 %v4038, %v4039
    %v4041 = vadd.f32 %v3673, %v3677
    %v4042 = vadd.f32 %v4041, %v3681
    %v4043 = vadd.f32 %v4042, %v3685
    %v4044 = vadd.f32 %v4043, %v3689
    %v4045 = vadd.f32 %v4044, %v3693
    %v4046 = vadd.f32 %v4045, %v3697
    %v4047 = vadd.f32 %v4046, %v3701
    %v4048 = vrot.slane %v4047, 4
    %v4049 = vadd.f32 %v4047, %v4048
    %v4050 = vrot.slane %v4049, 2
    %v4051 = vadd.f32 %v4049, %v4050
    %v4052 = vrot.slane %v4051, 1
    %v4053 = vadd.f32 %v4051, %v4052
    %v4054 = vadd.f32 %v3674, %v3678
    %v4055 = vadd.f32 %v4054, %v3682
    %v4056 = vadd.f32 %v4055, %v3686
    %v4057 = vadd.f32 %v4056, %v3690
    %v4058 = vadd.f32 %v4057, %v3694
    %v4059 = vadd.f32 %v4058, %v3698
    %v4060 = vadd.f32 %v4059, %v3702
    %v4061 = vrot.slane %v4060, 4
    %v4062 = vadd.f32 %v4060, %v4061
    %v4063 = vrot.slane %v4062, 2
    %v4064 = vadd.f32 %v4062, %v4063
    %v4065 = vrot.slane %v4064, 1
    %v4066 = vadd.f32 %v4064, %v4065
    %v4067 = vadd.f32 %v3675, %v3679
    %v4068 = vadd.f32 %v4067, %v3683
    %v4069 = vadd.f32 %v4068, %v3687
    %v4070 = vadd.f32 %v4069, %v3691
    %v4071 = vadd.f32 %v4070, %v3695
    %v4072 = vadd.f32 %v4071, %v3699
    %v4073 = vadd.f32 %v4072, %v3703
    %v4074 = vrot.slane %v4073, 4
    %v4075 = vadd.f32 %v4073, %v4074
    %v4076 = vrot.slane %v4075, 2
    %v4077 = vadd.f32 %v4075, %v4076
    %v4078 = vrot.slane %v4077, 1
    %v4079 = vadd.f32 %v4077, %v4078
    %v4080 = vadd.f32 %v3704, %v3708
    %v4081 = vadd.f32 %v4080, %v3712
    %v4082 = vadd.f32 %v4081, %v3716
    %v4083 = vadd.f32 %v4082, %v3720
    %v4084 = vadd.f32 %v4083, %v3724
    %v4085 = vadd.f32 %v4084, %v3728
    %v4086 = vadd.f32 %v4085, %v3732
    %v4087 = vrot.slane %v4086, 4
    %v4088 = vadd.f32 %v4086, %v4087
    %v4089 = vrot.slane %v4088, 2
    %v4090 = vadd.f32 %v4088, %v4089
    %v4091 = vrot.slane %v4090, 1
    %v4092 = vadd.f32 %v4090, %v4091
    %v4093 = vadd.f32 %v3705, %v3709
    %v4094 = vadd.f32 %v4093, %v3713
    %v4095 = vadd.f32 %v4094, %v3717
    %v4096 = vadd.f32 %v4095, %v3721
    %v4097 = vadd.f32 %v4096, %v3725
    %v4098 = vadd.f32 %v4097, %v3729
    %v4099 = vadd.f32 %v4098, %v3733
    %v4100 = vrot.slane %v4099, 4
    %v4101 = vadd.f32 %v4099, %v4100
    %v4102 = vrot.slane %v4101, 2
    %v4103 = vadd.f32 %v4101, %v4102
    %v4104 = vrot.slane %v4103, 1
    %v4105 = vadd.f32 %v4103, %v4104
    %v4106 = vadd.f32 %v3706, %v3710
    %v4107 = vadd.f32 %v4106, %v3714
    %v4108 = vadd.f32 %v4107, %v3718
    %v4109 = vadd.f32 %v4108, %v3722
    %v4110 = vadd.f32 %v4109, %v3726
    %v4111 = vadd.f32 %v4110, %v3730
    %v4112 = vadd.f32 %v4111, %v3734
    %v4113 = vrot.slane %v4112, 4
    %v4114 = vadd.f32 %v4112, %v4113
    %v4115 = vrot.slane %v4114, 2
    %v4116 = vadd.f32 %v4114, %v4115
    %v4117 = vrot.slane %v4116, 1
    %v4118 = vadd.f32 %v4116, %v4117
    %v4119 = vadd.f32 %v3707, %v3711
    %v4120 = vadd.f32 %v4119, %v3715
    %v4121 = vadd.f32 %v4120, %v3719
    %v4122 = vadd.f32 %v4121, %v3723
    %v4123 = vadd.f32 %v4122, %v3727
    %v4124 = vadd.f32 %v4123, %v3731
    %v4125 = vadd.f32 %v4124, %v3735
    %v4126 = vrot.slane %v4125, 4
    %v4127 = vadd.f32 %v4125, %v4126
    %v4128 = vrot.slane %v4127, 2
    %v4129 = vadd.f32 %v4127, %v4128
    %v4130 = vrot.slane %v4129, 1
    %v4131 = vadd.f32 %v4129, %v4130
    %v4132 = vadd.f32 %v3736, %v3740
    %v4133 = vadd.f32 %v4132, %v3744
    %v4134 = vadd.f32 %v4133, %v3748
    %v4135 = vadd.f32 %v4134, %v3752
    %v4136 = vadd.f32 %v4135, %v3756
    %v4137 = vadd.f32 %v4136, %v3760
    %v4138 = vadd.f32 %v4137, %v3764
    %v4139 = vrot.slane %v4138, 4
    %v4140 = vadd.f32 %v4138, %v4139
    %v4141 = vrot.slane %v4140, 2
    %v4142 = vadd.f32 %v4140, %v4141
    %v4143 = vrot.slane %v4142, 1
    %v4144 = vadd.f32 %v4142, %v4143
    %v4145 = vadd.f32 %v3737, %v3741
    %v4146 = vadd.f32 %v4145, %v3745
    %v4147 = vadd.f32 %v4146, %v3749
    %v4148 = vadd.f32 %v4147, %v3753
    %v4149 = vadd.f32 %v4148, %v3757
    %v4150 = vadd.f32 %v4149, %v3761
    %v4151 = vadd.f32 %v4150, %v3765
    %v4152 = vrot.slane %v4151, 4
    %v4153 = vadd.f32 %v4151, %v4152
    %v4154 = vrot.slane %v4153, 2
    %v4155 = vadd.f32 %v4153, %v4154
    %v4156 = vrot.slane %v4155, 1
    %v4157 = vadd.f32 %v4155, %v4156
    %v4158 = vadd.f32 %v3738, %v3742
    %v4159 = vadd.f32 %v4158, %v3746
    %v4160 = vadd.f32 %v4159, %v3750
    %v4161 = vadd.f32 %v4160, %v3754
    %v4162 = vadd.f32 %v4161, %v3758
    %v4163 = vadd.f32 %v4162, %v3762
    %v4164 = vadd.f32 %v4163, %v3766
    %v4165 = vrot.slane %v4164, 4
    %v4166 = vadd.f32 %v4164, %v4165
    %v4167 = vrot.slane %v4166, 2
    %v4168 = vadd.f32 %v4166, %v4167
    %v4169 = vrot.slane %v4168, 1
    %v4170 = vadd.f32 %v4168, %v4169
    %v4171 = vadd.f32 %v3739, %v3743
    %v4172 = vadd.f32 %v4171, %v3747
    %v4173 = vadd.f32 %v4172, %v3751
    %v4174 = vadd.f32 %v4173, %v3755
    %v4175 = vadd.f32 %v4174, %v3759
    %v4176 = vadd.f32 %v4175, %v3763
    %v4177 = vadd.f32 %v4176, %v3767
    %v4178 = vrot.slane %v4177, 4
    %v4179 = vadd.f32 %v4177, %v4178
    %v4180 = vrot.slane %v4179, 2
    %v4181 = vadd.f32 %v4179, %v4180
    %v4182 = vrot.slane %v4181, 1
    %v4183 = vadd.f32 %v4181, %v4182
    %v4184 = vmul.f32 %v3780, 0.015625
    %v4185 = vmul.f32 %v3793, 0.015625
    %v4186 = vmul.f32 %v3806, 0.015625
    %v4187 = vmul.f32 %v3819, 0.015625
    %v4188 = vmul.f32 %v3832, 0.015625
    %v4189 = vmul.f32 %v3845, 0.015625
    %v4190 = vmul.f32 %v3858, 0.015625
    %v4191 = vmul.f32 %v3871, 0.015625
    %v4192 = vmul.f32 %v3884, 0.015625
    %v4193 = vmul.f32 %v3897, 0.015625
    %v4194 = vmul.f32 %v3910, 0.015625
    %v4195 = vmul.f32 %v3923, 0.015625
    %v4196 = vmul.f32 %v3936, 0.015625
    %v4197 = vmul.f32 %v3949, 0.015625
    %v4198 = vmul.f32 %v3962, 0.015625
    %v4199 = vmul.f32 %v3975, 0.015625
    %v4200 = vmul.f32 %v3988, 0.015625
    %v4201 = vmul.f32 %v4001, 0.015625
    %v4202 = vmul.f32 %v4014, 0.015625
    %v4203 = vmul.f32 %v4027, 0.015625
    %v4204 = vmul.f32 %v4040, 0.015625
    %v4205 = vmul.f32 %v4053, 0.015625
    %v4206 = vmul.f32 %v4066, 0.015625
    %v4207 = vmul.f32 %v4079, 0.015625
    %v4208 = vmul.f32 %v4092, 0.015625
    %v4209 = vmul.f32 %v4105, 0.015625
    %v4210 = vmul.f32 %v4118, 0.015625
    %v4211 = vmul.f32 %v4131, 0.015625
    %v4212 = vmul.f32 %v4144, 0.015625
    %v4213 = vmul.f32 %v4157, 0.015625
    %v4214 = vmul.f32 %v4170, 0.015625
    %v4215 = vmul.f32 %v4183, 0.015625
    %v4216 = vmax.f32 %v3512, %v3516
    %v4217 = vmax.f32 %v4216, %v3520
    %v4218 = vmax.f32 %v4217, %v3524
    %v4219 = vmax.f32 %v4218, %v3528
    %v4220 = vmax.f32 %v4219, %v3532
    %v4221 = vmax.f32 %v4220, %v3536
    %v4222 = vmax.f32 %v4221, %v3540
    %v4223 = vrot.slane %v4222, 4
    %v4224 = vmax.f32 %v4222, %v4223
    %v4225 = vrot.slane %v4224, 2
    %v4226 = vmax.f32 %v4224, %v4225
    %v4227 = vrot.slane %v4226, 1
    %v4228 = vmax.f32 %v4226, %v4227
    %v4229 = vmax.f32 %v3513, %v3517
    %v4230 = vmax.f32 %v4229, %v3521
    %v4231 = vmax.f32 %v4230, %v3525
    %v4232 = vmax.f32 %v4231, %v3529
    %v4233 = vmax.f32 %v4232, %v3533
    %v4234 = vmax.f32 %v4233, %v3537
    %v4235 = vmax.f32 %v4234, %v3541
    %v4236 = vrot.slane %v4235, 4
    %v4237 = vmax.f32 %v4235, %v4236
    %v4238 = vrot.slane %v4237, 2
    %v4239 = vmax.f32 %v4237, %v4238
    %v4240 = vrot.slane %v4239, 1
    %v4241 = vmax.f32 %v4239, %v4240
    %v4242 = vmax.f32 %v3514, %v3518
    %v4243 = vmax.f32 %v4242, %v3522
    %v4244 = vmax.f32 %v4243, %v3526
    %v4245 = vmax.f32 %v4244, %v3530
    %v4246 = vmax.f32 %v4245, %v3534
    %v4247 = vmax.f32 %v4246, %v3538
    %v4248 = vmax.f32 %v4247, %v3542
    %v4249 = vrot.slane %v4248, 4
    %v4250 = vmax.f32 %v4248, %v4249
    %v4251 = vrot.slane %v4250, 2
    %v4252 = vmax.f32 %v4250, %v4251
    %v4253 = vrot.slane %v4252, 1
    %v4254 = vmax.f32 %v4252, %v4253
    %v4255 = vmax.f32 %v3515, %v3519
    %v4256 = vmax.f32 %v4255, %v3523
    %v4257 = vmax.f32 %v4256, %v3527
    %v4258 = vmax.f32 %v4257, %v3531
    %v4259 = vmax.f32 %v4258, %v3535
    %v4260 = vmax.f32 %v4259, %v3539
    %v4261 = vmax.f32 %v4260, %v3543
    %v4262 = vrot.slane %v4261, 4
    %v4263 = vmax.f32 %v4261, %v4262
    %v4264 = vrot.slane %v4263, 2
    %v4265 = vmax.f32 %v4263, %v4264
    %v4266 = vrot.slane %v4265, 1
    %v4267 = vmax.f32 %v4265, %v4266
    %v4268 = vmax.f32 %v3544, %v3548
    %v4269 = vmax.f32 %v4268, %v3552
    %v4270 = vmax.f32 %v4269, %v3556
    %v4271 = vmax.f32 %v4270, %v3560
    %v4272 = vmax.f32 %v4271, %v3564
    %v4273 = vmax.f32 %v4272, %v3568
    %v4274 = vmax.f32 %v4273, %v3572
    %v4275 = vrot.slane %v4274, 4
    %v4276 = vmax.f32 %v4274, %v4275
    %v4277 = vrot.slane %v4276, 2
    %v4278 = vmax.f32 %v4276, %v4277
    %v4279 = vrot.slane %v4278, 1
    %v4280 = vmax.f32 %v4278, %v4279
    %v4281 = vmax.f32 %v3545, %v3549
    %v4282 = vmax.f32 %v4281, %v3553
    %v4283 = vmax.f32 %v4282, %v3557
    %v4284 = vmax.f32 %v4283, %v3561
    %v4285 = vmax.f32 %v4284, %v3565
    %v4286 = vmax.f32 %v4285, %v3569
    %v4287 = vmax.f32 %v4286, %v3573
    %v4288 = vrot.slane %v4287, 4
    %v4289 = vmax.f32 %v4287, %v4288
    %v4290 = vrot.slane %v4289, 2
    %v4291 = vmax.f32 %v4289, %v4290
    %v4292 = vrot.slane %v4291, 1
    %v4293 = vmax.f32 %v4291, %v4292
    %v4294 = vmax.f32 %v3546, %v3550
    %v4295 = vmax.f32 %v4294, %v3554
    %v4296 = vmax.f32 %v4295, %v3558
    %v4297 = vmax.f32 %v4296, %v3562
    %v4298 = vmax.f32 %v4297, %v3566
    %v4299 = vmax.f32 %v4298, %v3570
    %v4300 = vmax.f32 %v4299, %v3574
    %v4301 = vrot.slane %v4300, 4
    %v4302 = vmax.f32 %v4300, %v4301
    %v4303 = vrot.slane %v4302, 2
    %v4304 = vmax.f32 %v4302, %v4303
    %v4305 = vrot.slane %v4304, 1
    %v4306 = vmax.f32 %v4304, %v4305
    %v4307 = vmax.f32 %v3547, %v3551
    %v4308 = vmax.f32 %v4307, %v3555
    %v4309 = vmax.f32 %v4308, %v3559
    %v4310 = vmax.f32 %v4309, %v3563
    %v4311 = vmax.f32 %v4310, %v3567
    %v4312 = vmax.f32 %v4311, %v3571
    %v4313 = vmax.f32 %v4312, %v3575
    %v4314 = vrot.slane %v4313, 4
    %v4315 = vmax.f32 %v4313, %v4314
    %v4316 = vrot.slane %v4315, 2
    %v4317 = vmax.f32 %v4315, %v4316
    %v4318 = vrot.slane %v4317, 1
    %v4319 = vmax.f32 %v4317, %v4318
    %v4320 = vmax.f32 %v3576, %v3580
    %v4321 = vmax.f32 %v4320, %v3584
    %v4322 = vmax.f32 %v4321, %v3588
    %v4323 = vmax.f32 %v4322, %v3592
    %v4324 = vmax.f32 %v4323, %v3596
    %v4325 = vmax.f32 %v4324, %v3600
    %v4326 = vmax.f32 %v4325, %v3604
    %v4327 = vrot.slane %v4326, 4
    %v4328 = vmax.f32 %v4326, %v4327
    %v4329 = vrot.slane %v4328, 2
    %v4330 = vmax.f32 %v4328, %v4329
    %v4331 = vrot.slane %v4330, 1
    %v4332 = vmax.f32 %v4330, %v4331
    %v4333 = vmax.f32 %v3577, %v3581
    %v4334 = vmax.f32 %v4333, %v3585
    %v4335 = vmax.f32 %v4334, %v3589
    %v4336 = vmax.f32 %v4335, %v3593
    %v4337 = vmax.f32 %v4336, %v3597
    %v4338 = vmax.f32 %v4337, %v3601
    %v4339 = vmax.f32 %v4338, %v3605
    %v4340 = vrot.slane %v4339, 4
    %v4341 = vmax.f32 %v4339, %v4340
    %v4342 = vrot.slane %v4341, 2
    %v4343 = vmax.f32 %v4341, %v4342
    %v4344 = vrot.slane %v4343, 1
    %v4345 = vmax.f32 %v4343, %v4344
    %v4346 = vmax.f32 %v3578, %v3582
    %v4347 = vmax.f32 %v4346, %v3586
    %v4348 = vmax.f32 %v4347, %v3590
    %v4349 = vmax.f32 %v4348, %v3594
    %v4350 = vmax.f32 %v4349, %v3598
    %v4351 = vmax.f32 %v4350, %v3602
    %v4352 = vmax.f32 %v4351, %v3606
    %v4353 = vrot.slane %v4352, 4
    %v4354 = vmax.f32 %v4352, %v4353
    %v4355 = vrot.slane %v4354, 2
    %v4356 = vmax.f32 %v4354, %v4355
    %v4357 = vrot.slane %v4356, 1
    %v4358 = vmax.f32 %v4356, %v4357
    %v4359 = vmax.f32 %v3579, %v3583
    %v4360 = vmax.f32 %v4359, %v3587
    %v4361 = vmax.f32 %v4360, %v3591
    %v4362 = vmax.f32 %v4361, %v3595
    %v4363 = vmax.f32 %v4362, %v3599
    %v4364 = vmax.f32 %v4363, %v3603
    %v4365 = vmax.f32 %v4364, %v3607
    %v4366 = vrot.slane %v4365, 4
    %v4367 = vmax.f32 %v4365, %v4366
    %v4368 = vrot.slane %v4367, 2
    %v4369 = vmax.f32 %v4367, %v4368
    %v4370 = vrot.slane %v4369, 1
    %v4371 = vmax.f32 %v4369, %v4370
    %v4372 = vmax.f32 %v3608, %v3612
    %v4373 = vmax.f32 %v4372, %v3616
    %v4374 = vmax.f32 %v4373, %v3620
    %v4375 = vmax.f32 %v4374, %v3624
    %v4376 = vmax.f32 %v4375, %v3628
    %v4377 = vmax.f32 %v4376, %v3632
    %v4378 = vmax.f32 %v4377, %v3636
    %v4379 = vrot.slane %v4378, 4
    %v4380 = vmax.f32 %v4378, %v4379
    %v4381 = vrot.slane %v4380, 2
    %v4382 = vmax.f32 %v4380, %v4381
    %v4383 = vrot.slane %v4382, 1
    %v4384 = vmax.f32 %v4382, %v4383
    %v4385 = vmax.f32 %v3609, %v3613
    %v4386 = vmax.f32 %v4385, %v3617
    %v4387 = vmax.f32 %v4386, %v3621
    %v4388 = vmax.f32 %v4387, %v3625
    %v4389 = vmax.f32 %v4388, %v3629
    %v4390 = vmax.f32 %v4389, %v3633
    %v4391 = vmax.f32 %v4390, %v3637
    %v4392 = vrot.slane %v4391, 4
    %v4393 = vmax.f32 %v4391, %v4392
    %v4394 = vrot.slane %v4393, 2
    %v4395 = vmax.f32 %v4393, %v4394
    %v4396 = vrot.slane %v4395, 1
    %v4397 = vmax.f32 %v4395, %v4396
    %v4398 = vmax.f32 %v3610, %v3614
    %v4399 = vmax.f32 %v4398, %v3618
    %v4400 = vmax.f32 %v4399, %v3622
    %v4401 = vmax.f32 %v4400, %v3626
    %v4402 = vmax.f32 %v4401, %v3630
    %v4403 = vmax.f32 %v4402, %v3634
    %v4404 = vmax.f32 %v4403, %v3638
    %v4405 = vrot.slane %v4404, 4
    %v4406 = vmax.f32 %v4404, %v4405
    %v4407 = vrot.slane %v4406, 2
    %v4408 = vmax.f32 %v4406, %v4407
    %v4409 = vrot.slane %v4408, 1
    %v4410 = vmax.f32 %v4408, %v4409
    %v4411 = vmax.f32 %v3611, %v3615
    %v4412 = vmax.f32 %v4411, %v3619
    %v4413 = vmax.f32 %v4412, %v3623
    %v4414 = vmax.f32 %v4413, %v3627
    %v4415 = vmax.f32 %v4414, %v3631
    %v4416 = vmax.f32 %v4415, %v3635
    %v4417 = vmax.f32 %v4416, %v3639
    %v4418 = vrot.slane %v4417, 4
    %v4419 = vmax.f32 %v4417, %v4418
    %v4420 = vrot.slane %v4419, 2
    %v4421 = vmax.f32 %v4419, %v4420
    %v4422 = vrot.slane %v4421, 1
    %v4423 = vmax.f32 %v4421, %v4422
    %v4424 = vmax.f32 %v3640, %v3644
    %v4425 = vmax.f32 %v4424, %v3648
    %v4426 = vmax.f32 %v4425, %v3652
    %v4427 = vmax.f32 %v4426, %v3656
    %v4428 = vmax.f32 %v4427, %v3660
    %v4429 = vmax.f32 %v4428, %v3664
    %v4430 = vmax.f32 %v4429, %v3668
    %v4431 = vrot.slane %v4430, 4
    %v4432 = vmax.f32 %v4430, %v4431
    %v4433 = vrot.slane %v4432, 2
    %v4434 = vmax.f32 %v4432, %v4433
    %v4435 = vrot.slane %v4434, 1
    %v4436 = vmax.f32 %v4434, %v4435
    %v4437 = vmax.f32 %v3641, %v3645
    %v4438 = vmax.f32 %v4437, %v3649
    %v4439 = vmax.f32 %v4438, %v3653
    %v4440 = vmax.f32 %v4439, %v3657
    %v4441 = vmax.f32 %v4440, %v3661
    %v4442 = vmax.f32 %v4441, %v3665
    %v4443 = vmax.f32 %v4442, %v3669
    %v4444 = vrot.slane %v4443, 4
    %v4445 = vmax.f32 %v4443, %v4444
    %v4446 = vrot.slane %v4445, 2
    %v4447 = vmax.f32 %v4445, %v4446
    %v4448 = vrot.slane %v4447, 1
    %v4449 = vmax.f32 %v4447, %v4448
    %v4450 = vmax.f32 %v3642, %v3646
    %v4451 = vmax.f32 %v4450, %v3650
    %v4452 = vmax.f32 %v4451, %v3654
    %v4453 = vmax.f32 %v4452, %v3658
    %v4454 = vmax.f32 %v4453, %v3662
    %v4455 = vmax.f32 %v4454, %v3666
    %v4456 = vmax.f32 %v4455, %v3670
    %v4457 = vrot.slane %v4456, 4
    %v4458 = vmax.f32 %v4456, %v4457
    %v4459 = vrot.slane %v4458, 2
    %v4460 = vmax.f32 %v4458, %v4459
    %v4461 = vrot.slane %v4460, 1
    %v4462 = vmax.f32 %v4460, %v4461
    %v4463 = vmax.f32 %v3643, %v3647
    %v4464 = vmax.f32 %v4463, %v3651
    %v4465 = vmax.f32 %v4464, %v3655
    %v4466 = vmax.f32 %v4465, %v3659
    %v4467 = vmax.f32 %v4466, %v3663
    %v4468 = vmax.f32 %v4467, %v3667
    %v4469 = vmax.f32 %v4468, %v3671
    %v4470 = vrot.slane %v4469, 4
    %v4471 = vmax.f32 %v4469, %v4470
    %v4472 = vrot.slane %v4471, 2
    %v4473 = vmax.f32 %v4471, %v4472
    %v4474 = vrot.slane %v4473, 1
    %v4475 = vmax.f32 %v4473, %v4474
    %v4476 = vmax.f32 %v3672, %v3676
    %v4477 = vmax.f32 %v4476, %v3680
    %v4478 = vmax.f32 %v4477, %v3684
    %v4479 = vmax.f32 %v4478, %v3688
    %v4480 = vmax.f32 %v4479, %v3692
    %v4481 = vmax.f32 %v4480, %v3696
    %v4482 = vmax.f32 %v4481, %v3700
    %v4483 = vrot.slane %v4482, 4
    %v4484 = vmax.f32 %v4482, %v4483
    %v4485 = vrot.slane %v4484, 2
    %v4486 = vmax.f32 %v4484, %v4485
    %v4487 = vrot.slane %v4486, 1
    %v4488 = vmax.f32 %v4486, %v4487
    %v4489 = vmax.f32 %v3673, %v3677
    %v4490 = vmax.f32 %v4489, %v3681
    %v4491 = vmax.f32 %v4490, %v3685
    %v4492 = vmax.f32 %v4491, %v3689
    %v4493 = vmax.f32 %v4492, %v3693
    %v4494 = vmax.f32 %v4493, %v3697
    %v4495 = vmax.f32 %v4494, %v3701
    %v4496 = vrot.slane %v4495, 4
    %v4497 = vmax.f32 %v4495, %v4496
    %v4498 = vrot.slane %v4497, 2
    %v4499 = vmax.f32 %v4497, %v4498
    %v4500 = vrot.slane %v4499, 1
    %v4501 = vmax.f32 %v4499, %v4500
    %v4502 = vmax.f32 %v3674, %v3678
    %v4503 = vmax.f32 %v4502, %v3682
    %v4504 = vmax.f32 %v4503, %v3686
    %v4505 = vmax.f32 %v4504, %v3690
    %v4506 = vmax.f32 %v4505, %v3694
    %v4507 = vmax.f32 %v4506, %v3698
    %v4508 = vmax.f32 %v4507, %v3702
    %v4509 = vrot.slane %v4508, 4
    %v4510 = vmax.f32 %v4508, %v4509
    %v4511 = vrot.slane %v4510, 2
    %v4512 = vmax.f32 %v4510, %v4511
    %v4513 = vrot.slane %v4512, 1
    %v4514 = vmax.f32 %v4512, %v4513
    %v4515 = vmax.f32 %v3675, %v3679
    %v4516 = vmax.f32 %v4515, %v3683
    %v4517 = vmax.f32 %v4516, %v3687
    %v4518 = vmax.f32 %v4517, %v3691
    %v4519 = vmax.f32 %v4518, %v3695
    %v4520 = vmax.f32 %v4519, %v3699
    %v4521 = vmax.f32 %v4520, %v3703
    %v4522 = vrot.slane %v4521, 4
    %v4523 = vmax.f32 %v4521, %v4522
    %v4524 = vrot.slane %v4523, 2
    %v4525 = vmax.f32 %v4523, %v4524
    %v4526 = vrot.slane %v4525, 1
    %v4527 = vmax.f32 %v4525, %v4526
    %v4528 = vmax.f32 %v3704, %v3708
    %v4529 = vmax.f32 %v4528, %v3712
    %v4530 = vmax.f32 %v4529, %v3716
    %v4531 = vmax.f32 %v4530, %v3720
    %v4532 = vmax.f32 %v4531, %v3724
    %v4533 = vmax.f32 %v4532, %v3728
    %v4534 = vmax.f32 %v4533, %v3732
    %v4535 = vrot.slane %v4534, 4
    %v4536 = vmax.f32 %v4534, %v4535
    %v4537 = vrot.slane %v4536, 2
    %v4538 = vmax.f32 %v4536, %v4537
    %v4539 = vrot.slane %v4538, 1
    %v4540 = vmax.f32 %v4538, %v4539
    %v4541 = vmax.f32 %v3705, %v3709
    %v4542 = vmax.f32 %v4541, %v3713
    %v4543 = vmax.f32 %v4542, %v3717
    %v4544 = vmax.f32 %v4543, %v3721
    %v4545 = vmax.f32 %v4544, %v3725
    %v4546 = vmax.f32 %v4545, %v3729
    %v4547 = vmax.f32 %v4546, %v3733
    %v4548 = vrot.slane %v4547, 4
    %v4549 = vmax.f32 %v4547, %v4548
    %v4550 = vrot.slane %v4549, 2
    %v4551 = vmax.f32 %v4549, %v4550
    %v4552 = vrot.slane %v4551, 1
    %v4553 = vmax.f32 %v4551, %v4552
    %v4554 = vmax.f32 %v3706, %v3710
    %v4555 = vmax.f32 %v4554, %v3714
    %v4556 = vmax.f32 %v4555, %v3718
    %v4557 = vmax.f32 %v4556, %v3722
    %v4558 = vmax.f32 %v4557, %v3726
    %v4559 = vmax.f32 %v4558, %v3730
    %v4560 = vmax.f32 %v4559, %v3734
    %v4561 = vrot.slane %v4560, 4
    %v4562 = vmax.f32 %v4560, %v4561
    %v4563 = vrot.slane %v4562, 2
    %v4564 = vmax.f32 %v4562, %v4563
    %v4565 = vrot.slane %v4564, 1
    %v4566 = vmax.f32 %v4564, %v4565
    %v4567 = vmax.f32 %v3707, %v3711
    %v4568 = vmax.f32 %v4567, %v3715
    %v4569 = vmax.f32 %v4568, %v3719
    %v4570 = vmax.f32 %v4569, %v3723
    %v4571 = vmax.f32 %v4570, %v3727
    %v4572 = vmax.f32 %v4571, %v3731
    %v4573 = vmax.f32 %v4572, %v3735
    %v4574 = vrot.slane %v4573, 4
    %v4575 = vmax.f32 %v4573, %v4574
    %v4576 = vrot.slane %v4575, 2
    %v4577 = vmax.f32 %v4575, %v4576
    %v4578 = vrot.slane %v4577, 1
    %v4579 = vmax.f32 %v4577, %v4578
    %v4580 = vmax.f32 %v3736, %v3740
    %v4581 = vmax.f32 %v4580, %v3744
    %v4582 = vmax.f32 %v4581, %v3748
    %v4583 = vmax.f32 %v4582, %v3752
    %v4584 = vmax.f32 %v4583, %v3756
    %v4585 = vmax.f32 %v4584, %v3760
    %v4586 = vmax.f32 %v4585, %v3764
    %v4587 = vrot.slane %v4586, 4
    %v4588 = vmax.f32 %v4586, %v4587
    %v4589 = vrot.slane %v4588, 2
    %v4590 = vmax.f32 %v4588, %v4589
    %v4591 = vrot.slane %v4590, 1
    %v4592 = vmax.f32 %v4590, %v4591
    %v4593 = vmax.f32 %v3737, %v3741
    %v4594 = vmax.f32 %v4593, %v3745
    %v4595 = vmax.f32 %v4594, %v3749
    %v4596 = vmax.f32 %v4595, %v3753
    %v4597 = vmax.f32 %v4596, %v3757
    %v4598 = vmax.f32 %v4597, %v3761
    %v4599 = vmax.f32 %v4598, %v3765
    %v4600 = vrot.slane %v4599, 4
    %v4601 = vmax.f32 %v4599, %v4600
    %v4602 = vrot.slane %v4601, 2
    %v4603 = vmax.f32 %v4601, %v4602
    %v4604 = vrot.slane %v4603, 1
    %v4605 = vmax.f32 %v4603, %v4604
    %v4606 = vmax.f32 %v3738, %v3742
    %v4607 = vmax.f32 %v4606, %v3746
    %v4608 = vmax.f32 %v4607, %v3750
    %v4609 = vmax.f32 %v4608, %v3754
    %v4610 = vmax.f32 %v4609, %v3758
    %v4611 = vmax.f32 %v4610, %v3762
    %v4612 = vmax.f32 %v4611, %v3766
    %v4613 = vrot.slane %v4612, 4
    %v4614 = vmax.f32 %v4612, %v4613
    %v4615 = vrot.slane %v4614, 2
    %v4616 = vmax.f32 %v4614, %v4615
    %v4617 = vrot.slane %v4616, 1
    %v4618 = vmax.f32 %v4616, %v4617
    %v4619 = vmax.f32 %v3739, %v3743
    %v4620 = vmax.f32 %v4619, %v3747
    %v4621 = vmax.f32 %v4620, %v3751
    %v4622 = vmax.f32 %v4621, %v3755
    %v4623 = vmax.f32 %v4622, %v3759
    %v4624 = vmax.f32 %v4623, %v3763
    %v4625 = vmax.f32 %v4624, %v3767
    %v4626 = vrot.slane %v4625, 4
    %v4627 = vmax.f32 %v4625, %v4626
    %v4628 = vrot.slane %v4627, 2
    %v4629 = vmax.f32 %v4627, %v4628
    %v4630 = vrot.slane %v4629, 1
    %v4631 = vmax.f32 %v4629, %v4630
    %vm4664 = vcmask 1041409
    %v4665 = vsel %vm4664, %v4188, %v4184
    %vm4666 = vcmask 1042434
    %v4667 = vsel %vm4666, %v4192, %v4665
    %vm4668 = vcmask 1043459
    %v4669 = vsel %vm4668, %v4196, %v4667
    %vm4670 = vcmask 1044484
    %v4671 = vsel %vm4670, %v4200, %v4669
    %vm4672 = vcmask 1045509
    %v4673 = vsel %vm4672, %v4204, %v4671
    %vm4674 = vcmask 1046534
    %v4675 = vsel %vm4674, %v4208, %v4673
    %vm4676 = vcmask 1047559
    %v4677 = vsel %vm4676, %v4212, %v4675
    %v4678 = vsel %vm4664, %v4189, %v4185
    %v4679 = vsel %vm4666, %v4193, %v4678
    %v4680 = vsel %vm4668, %v4197, %v4679
    %v4681 = vsel %vm4670, %v4201, %v4680
    %v4682 = vsel %vm4672, %v4205, %v4681
    %v4683 = vsel %vm4674, %v4209, %v4682
    %v4684 = vsel %vm4676, %v4213, %v4683
    %v4685 = vsel %vm4664, %v4190, %v4186
    %v4686 = vsel %vm4666, %v4194, %v4685
    %v4687 = vsel %vm4668, %v4198, %v4686
    %v4688 = vsel %vm4670, %v4202, %v4687
    %v4689 = vsel %vm4672, %v4206, %v4688
    %v4690 = vsel %vm4674, %v4210, %v4689
    %v4691 = vsel %vm4676, %v4214, %v4690
    %v4692 = vsel %vm4664, %v4191, %v4187
    %v4693 = vsel %vm4666, %v4195, %v4692
    %v4694 = vsel %vm4668, %v4199, %v4693
    %v4695 = vsel %vm4670, %v4203, %v4694
    %v4696 = vsel %vm4672, %v4207, %v4695
    %v4697 = vsel %vm4674, %v4211, %v4696
    %v4698 = vsel %vm4676, %v4215, %v4697
    %v4735 = vsel %vm4664, %v4280, %v4228
    %v4736 = vsel %vm4666, %v4332, %v4735
    %v4737 = vsel %vm4668, %v4384, %v4736
    %v4738 = vsel %vm4670, %v4436, %v4737
    %v4739 = vsel %vm4672, %v4488, %v4738
    %v4740 = vsel %vm4674, %v4540, %v4739
    %v4741 = vsel %vm4676, %v4592, %v4740
    %v4742 = vsel %vm4664, %v4293, %v4241
    %v4743 = vsel %vm4666, %v4345, %v4742
    %v4744 = vsel %vm4668, %v4397, %v4743
    %v4745 = vsel %vm4670, %v4449, %v4744
    %v4746 = vsel %vm4672, %v4501, %v4745
    %v4747 = vsel %vm4674, %v4553, %v4746
    %v4748 = vsel %vm4676, %v4605, %v4747
    %v4749 = vsel %vm4664, %v4306, %v4254
    %v4750 = vsel %vm4666, %v4358, %v4749
    %v4751 = vsel %vm4668, %v4410, %v4750
    %v4752 = vsel %vm4670, %v4462, %v4751
    %v4753 = vsel %vm4672, %v4514, %v4752
    %v4754 = vsel %vm4674, %v4566, %v4753
    %v4755 = vsel %vm4676, %v4618, %v4754
    %v4756 = vsel %vm4664, %v4319, %v4267
    %v4757 = vsel %vm4666, %v4371, %v4756
    %v4758 = vsel %vm4668, %v4423, %v4757
    %v4759 = vsel %vm4670, %v4475, %v4758
    %v4760 = vsel %vm4672, %v4527, %v4759
    %v4761 = vsel %vm4674, %v4579, %v4760
    %v4762 = vsel %vm4676, %v4631, %v4761
    %v4767 = vpack.c.bf16 %v4741, %v4677
    %v4768 = vpack.c.bf16 %v4748, %v4684
    %v4769 = vpack.c.bf16 %v4755, %v4691
    %v4770 = vpack.c.bf16 %v4762, %v4698
    %v4771 = vld [vmem:[%s3] sm:$0xff]
    %v4772 = vld [vmem:[%s3 + $0x8] sm:$0xff]
    %v4773 = vld [vmem:[%s3 + $0x10] sm:$0xff]
    %v4774 = vld [vmem:[%s3 + $0x18] sm:$0xff]
    %v4775 = vld [vmem:[%s3 + $0x20] sm:$0xff]
    %v4776 = vld [vmem:[%s3 + $0x28] sm:$0xff]
    %v4777 = vld [vmem:[%s3 + $0x30] sm:$0xff]
    %v4778 = vld [vmem:[%s3 + $0x38] sm:$0xff]
    %v4779 = vld [vmem:[%s3 + $0x40] sm:$0xff]
    %v4780 = vld [vmem:[%s3 + $0x48] sm:$0xff]
    %v4781 = vld [vmem:[%s3 + $0x50] sm:$0xff]
    %v4782 = vld [vmem:[%s3 + $0x58] sm:$0xff]
    %v4783 = vld [vmem:[%s3 + $0x60] sm:$0xff]
    %v4784 = vld [vmem:[%s3 + $0x68] sm:$0xff]
    %v4785 = vld [vmem:[%s3 + $0x70] sm:$0xff]
    %v4786 = vld [vmem:[%s3 + $0x78] sm:$0xff]
    %v4787 = vld [vmem:[%s3 + $0x80] sm:$0xff]
    %v4788 = vld [vmem:[%s3 + $0x88] sm:$0xff]
    %v4789 = vld [vmem:[%s3 + $0x90] sm:$0xff]
    %v4790 = vld [vmem:[%s3 + $0x98] sm:$0xff]
    %v4791 = vld [vmem:[%s3 + $0xa0] sm:$0xff]
    %v4792 = vld [vmem:[%s3 + $0xa8] sm:$0xff]
    %v4793 = vld [vmem:[%s3 + $0xb0] sm:$0xff]
    %v4794 = vld [vmem:[%s3 + $0xb8] sm:$0xff]
    %v4795 = vld [vmem:[%s3 + $0xc0] sm:$0xff]
    %v4796 = vld [vmem:[%s3 + $0xc8] sm:$0xff]
    %v4797 = vld [vmem:[%s3 + $0xd0] sm:$0xff]
    %v4798 = vld [vmem:[%s3 + $0xd8] sm:$0xff]
    %v4799 = vld [vmem:[%s3 + $0xe0] sm:$0xff]
    %v4800 = vld [vmem:[%s3 + $0xe8] sm:$0xff]
    %v4801 = vld [vmem:[%s3 + $0xf0] sm:$0xff]
    %v4802 = vld [vmem:[%s3 + $0xf8] sm:$0xff]
    %v4803 = vld [vmem:[%s3 + $0x100] sm:$0xff]
    %v4804 = vld [vmem:[%s3 + $0x108] sm:$0xff]
    %v4805 = vld [vmem:[%s3 + $0x110] sm:$0xff]
    %v4806 = vld [vmem:[%s3 + $0x118] sm:$0xff]
    %v4807 = vld [vmem:[%s3 + $0x120] sm:$0xff]
    %v4808 = vld [vmem:[%s3 + $0x128] sm:$0xff]
    %v4809 = vld [vmem:[%s3 + $0x130] sm:$0xff]
    %v4810 = vld [vmem:[%s3 + $0x138] sm:$0xff]
    %v4811 = vld [vmem:[%s3 + $0x140] sm:$0xff]
    %v4812 = vld [vmem:[%s3 + $0x148] sm:$0xff]
    %v4813 = vld [vmem:[%s3 + $0x150] sm:$0xff]
    %v4814 = vld [vmem:[%s3 + $0x158] sm:$0xff]
    %v4815 = vld [vmem:[%s3 + $0x160] sm:$0xff]
    %v4816 = vld [vmem:[%s3 + $0x168] sm:$0xff]
    %v4817 = vld [vmem:[%s3 + $0x170] sm:$0xff]
    %v4818 = vld [vmem:[%s3 + $0x178] sm:$0xff]
    %v4819 = vld [vmem:[%s3 + $0x180] sm:$0xff]
    %v4820 = vld [vmem:[%s3 + $0x188] sm:$0xff]
    %v4821 = vld [vmem:[%s3 + $0x190] sm:$0xff]
    %v4822 = vld [vmem:[%s3 + $0x198] sm:$0xff]
    %v4823 = vld [vmem:[%s3 + $0x1a0] sm:$0xff]
    %v4824 = vld [vmem:[%s3 + $0x1a8] sm:$0xff]
    %v4825 = vld [vmem:[%s3 + $0x1b0] sm:$0xff]
    %v4826 = vld [vmem:[%s3 + $0x1b8] sm:$0xff]
    %v4827 = vld [vmem:[%s3 + $0x1c0] sm:$0xff]
    %v4828 = vld [vmem:[%s3 + $0x1c8] sm:$0xff]
    %v4829 = vld [vmem:[%s3 + $0x1d0] sm:$0xff]
    %v4830 = vld [vmem:[%s3 + $0x1d8] sm:$0xff]
    %v4831 = vld [vmem:[%s3 + $0x1e0] sm:$0xff]
    %v4832 = vld [vmem:[%s3 + $0x1e8] sm:$0xff]
    %v4833 = vld [vmem:[%s3 + $0x1f0] sm:$0xff]
    %v4834 = vld [vmem:[%s3 + $0x1f8] sm:$0xff]
    %v4899 = vunpack.c.l.b16 %v4771
    %v4900 = vunpack.c.h.b16 %v4771
    %v4901 = vunpack.c.l.b16 %v4772
    %v4902 = vunpack.c.h.b16 %v4772
    %v4903 = vunpack.c.l.b16 %v4773
    %v4904 = vunpack.c.h.b16 %v4773
    %v4905 = vunpack.c.l.b16 %v4774
    %v4906 = vunpack.c.h.b16 %v4774
    %v4907 = vunpack.c.l.b16 %v4775
    %v4908 = vunpack.c.h.b16 %v4775
    %v4909 = vunpack.c.l.b16 %v4776
    %v4910 = vunpack.c.h.b16 %v4776
    %v4911 = vunpack.c.l.b16 %v4777
    %v4912 = vunpack.c.h.b16 %v4777
    %v4913 = vunpack.c.l.b16 %v4778
    %v4914 = vunpack.c.h.b16 %v4778
    %v4915 = vunpack.c.l.b16 %v4779
    %v4916 = vunpack.c.h.b16 %v4779
    %v4917 = vunpack.c.l.b16 %v4780
    %v4918 = vunpack.c.h.b16 %v4780
    %v4919 = vunpack.c.l.b16 %v4781
    %v4920 = vunpack.c.h.b16 %v4781
    %v4921 = vunpack.c.l.b16 %v4782
    %v4922 = vunpack.c.h.b16 %v4782
    %v4923 = vunpack.c.l.b16 %v4783
    %v4924 = vunpack.c.h.b16 %v4783
    %v4925 = vunpack.c.l.b16 %v4784
    %v4926 = vunpack.c.h.b16 %v4784
    %v4927 = vunpack.c.l.b16 %v4785
    %v4928 = vunpack.c.h.b16 %v4785
    %v4929 = vunpack.c.l.b16 %v4786
    %v4930 = vunpack.c.h.b16 %v4786
    %v4931 = vunpack.c.l.b16 %v4787
    %v4932 = vunpack.c.h.b16 %v4787
    %v4933 = vunpack.c.l.b16 %v4788
    %v4934 = vunpack.c.h.b16 %v4788
    %v4935 = vunpack.c.l.b16 %v4789
    %v4936 = vunpack.c.h.b16 %v4789
    %v4937 = vunpack.c.l.b16 %v4790
    %v4938 = vunpack.c.h.b16 %v4790
    %v4939 = vunpack.c.l.b16 %v4791
    %v4940 = vunpack.c.h.b16 %v4791
    %v4941 = vunpack.c.l.b16 %v4792
    %v4942 = vunpack.c.h.b16 %v4792
    %v4943 = vunpack.c.l.b16 %v4793
    %v4944 = vunpack.c.h.b16 %v4793
    %v4945 = vunpack.c.l.b16 %v4794
    %v4946 = vunpack.c.h.b16 %v4794
    %v4947 = vunpack.c.l.b16 %v4795
    %v4948 = vunpack.c.h.b16 %v4795
    %v4949 = vunpack.c.l.b16 %v4796
    %v4950 = vunpack.c.h.b16 %v4796
    %v4951 = vunpack.c.l.b16 %v4797
    %v4952 = vunpack.c.h.b16 %v4797
    %v4953 = vunpack.c.l.b16 %v4798
    %v4954 = vunpack.c.h.b16 %v4798
    %v4955 = vunpack.c.l.b16 %v4799
    %v4956 = vunpack.c.h.b16 %v4799
    %v4957 = vunpack.c.l.b16 %v4800
    %v4958 = vunpack.c.h.b16 %v4800
    %v4959 = vunpack.c.l.b16 %v4801
    %v4960 = vunpack.c.h.b16 %v4801
    %v4961 = vunpack.c.l.b16 %v4802
    %v4962 = vunpack.c.h.b16 %v4802
    %v4963 = vunpack.c.l.b16 %v4803
    %v4964 = vunpack.c.h.b16 %v4803
    %v4965 = vunpack.c.l.b16 %v4804
    %v4966 = vunpack.c.h.b16 %v4804
    %v4967 = vunpack.c.l.b16 %v4805
    %v4968 = vunpack.c.h.b16 %v4805
    %v4969 = vunpack.c.l.b16 %v4806
    %v4970 = vunpack.c.h.b16 %v4806
    %v4971 = vunpack.c.l.b16 %v4807
    %v4972 = vunpack.c.h.b16 %v4807
    %v4973 = vunpack.c.l.b16 %v4808
    %v4974 = vunpack.c.h.b16 %v4808
    %v4975 = vunpack.c.l.b16 %v4809
    %v4976 = vunpack.c.h.b16 %v4809
    %v4977 = vunpack.c.l.b16 %v4810
    %v4978 = vunpack.c.h.b16 %v4810
    %v4979 = vunpack.c.l.b16 %v4811
    %v4980 = vunpack.c.h.b16 %v4811
    %v4981 = vunpack.c.l.b16 %v4812
    %v4982 = vunpack.c.h.b16 %v4812
    %v4983 = vunpack.c.l.b16 %v4813
    %v4984 = vunpack.c.h.b16 %v4813
    %v4985 = vunpack.c.l.b16 %v4814
    %v4986 = vunpack.c.h.b16 %v4814
    %v4987 = vunpack.c.l.b16 %v4815
    %v4988 = vunpack.c.h.b16 %v4815
    %v4989 = vunpack.c.l.b16 %v4816
    %v4990 = vunpack.c.h.b16 %v4816
    %v4991 = vunpack.c.l.b16 %v4817
    %v4992 = vunpack.c.h.b16 %v4817
    %v4993 = vunpack.c.l.b16 %v4818
    %v4994 = vunpack.c.h.b16 %v4818
    %v4995 = vunpack.c.l.b16 %v4819
    %v4996 = vunpack.c.h.b16 %v4819
    %v4997 = vunpack.c.l.b16 %v4820
    %v4998 = vunpack.c.h.b16 %v4820
    %v4999 = vunpack.c.l.b16 %v4821
    %v5000 = vunpack.c.h.b16 %v4821
    %v5001 = vunpack.c.l.b16 %v4822
    %v5002 = vunpack.c.h.b16 %v4822
    %v5003 = vunpack.c.l.b16 %v4823
    %v5004 = vunpack.c.h.b16 %v4823
    %v5005 = vunpack.c.l.b16 %v4824
    %v5006 = vunpack.c.h.b16 %v4824
    %v5007 = vunpack.c.l.b16 %v4825
    %v5008 = vunpack.c.h.b16 %v4825
    %v5009 = vunpack.c.l.b16 %v4826
    %v5010 = vunpack.c.h.b16 %v4826
    %v5011 = vunpack.c.l.b16 %v4827
    %v5012 = vunpack.c.h.b16 %v4827
    %v5013 = vunpack.c.l.b16 %v4828
    %v5014 = vunpack.c.h.b16 %v4828
    %v5015 = vunpack.c.l.b16 %v4829
    %v5016 = vunpack.c.h.b16 %v4829
    %v5017 = vunpack.c.l.b16 %v4830
    %v5018 = vunpack.c.h.b16 %v4830
    %v5019 = vunpack.c.l.b16 %v4831
    %v5020 = vunpack.c.h.b16 %v4831
    %v5021 = vunpack.c.l.b16 %v4832
    %v5022 = vunpack.c.h.b16 %v4832
    %v5023 = vunpack.c.l.b16 %v4833
    %v5024 = vunpack.c.h.b16 %v4833
    %v5025 = vunpack.c.l.b16 %v4834
    %v5026 = vunpack.c.h.b16 %v4834
    %v5027 = vpack.c.b16 %v4901, %v4899
    %v5028 = vpack.c.b16 %v4902, %v4900
    %v5029 = vpack.c.b16 %v4905, %v4903
    %v5030 = vpack.c.b16 %v4906, %v4904
    %v5031 = vpack.c.b16 %v4909, %v4907
    %v5032 = vpack.c.b16 %v4910, %v4908
    %v5033 = vpack.c.b16 %v4913, %v4911
    %v5034 = vpack.c.b16 %v4914, %v4912
    %v5035 = vpack.c.b16 %v4917, %v4915
    %v5036 = vpack.c.b16 %v4918, %v4916
    %v5037 = vpack.c.b16 %v4921, %v4919
    %v5038 = vpack.c.b16 %v4922, %v4920
    %v5039 = vpack.c.b16 %v4925, %v4923
    %v5040 = vpack.c.b16 %v4926, %v4924
    %v5041 = vpack.c.b16 %v4929, %v4927
    %v5042 = vpack.c.b16 %v4930, %v4928
    %v5043 = vpack.c.b16 %v4933, %v4931
    %v5044 = vpack.c.b16 %v4934, %v4932
    %v5045 = vpack.c.b16 %v4937, %v4935
    %v5046 = vpack.c.b16 %v4938, %v4936
    %v5047 = vpack.c.b16 %v4941, %v4939
    %v5048 = vpack.c.b16 %v4942, %v4940
    %v5049 = vpack.c.b16 %v4945, %v4943
    %v5050 = vpack.c.b16 %v4946, %v4944
    %v5051 = vpack.c.b16 %v4949, %v4947
    %v5052 = vpack.c.b16 %v4950, %v4948
    %v5053 = vpack.c.b16 %v4953, %v4951
    %v5054 = vpack.c.b16 %v4954, %v4952
    %v5055 = vpack.c.b16 %v4957, %v4955
    %v5056 = vpack.c.b16 %v4958, %v4956
    %v5057 = vpack.c.b16 %v4961, %v4959
    %v5058 = vpack.c.b16 %v4962, %v4960
    %v5059 = vpack.c.b16 %v4965, %v4963
    %v5060 = vpack.c.b16 %v4966, %v4964
    %v5061 = vpack.c.b16 %v4969, %v4967
    %v5062 = vpack.c.b16 %v4970, %v4968
    %v5063 = vpack.c.b16 %v4973, %v4971
    %v5064 = vpack.c.b16 %v4974, %v4972
    %v5065 = vpack.c.b16 %v4977, %v4975
    %v5066 = vpack.c.b16 %v4978, %v4976
    %v5067 = vpack.c.b16 %v4981, %v4979
    %v5068 = vpack.c.b16 %v4982, %v4980
    %v5069 = vpack.c.b16 %v4985, %v4983
    %v5070 = vpack.c.b16 %v4986, %v4984
    %v5071 = vpack.c.b16 %v4989, %v4987
    %v5072 = vpack.c.b16 %v4990, %v4988
    %v5073 = vpack.c.b16 %v4993, %v4991
    %v5074 = vpack.c.b16 %v4994, %v4992
    %v5075 = vpack.c.b16 %v4997, %v4995
    %v5076 = vpack.c.b16 %v4998, %v4996
    %v5077 = vpack.c.b16 %v5001, %v4999
    %v5078 = vpack.c.b16 %v5002, %v5000
    %v5079 = vpack.c.b16 %v5005, %v5003
    %v5080 = vpack.c.b16 %v5006, %v5004
    %v5081 = vpack.c.b16 %v5009, %v5007
    %v5082 = vpack.c.b16 %v5010, %v5008
    %v5083 = vpack.c.b16 %v5013, %v5011
    %v5084 = vpack.c.b16 %v5014, %v5012
    %v5085 = vpack.c.b16 %v5017, %v5015
    %v5086 = vpack.c.b16 %v5018, %v5016
    %v5087 = vpack.c.b16 %v5021, %v5019
    %v5088 = vpack.c.b16 %v5022, %v5020
    %v5089 = vpack.c.b16 %v5025, %v5023
    %v5090 = vpack.c.b16 %v5026, %v5024
    %5155 = vmatprep.subr.bf16.mxu0 %v5028
    %5156 = vmatpush1.bf16.msra.mxu0 %v5027
    %5157 = vmatprep.subr.bf16.mxu0 %v5030
    %5158 = vmatpush1.bf16.msra.mxu0 %v5029
    %5159 = vmatprep.subr.bf16.mxu0 %v5032
    %5160 = vmatpush1.bf16.msra.mxu0 %v5031
    %5161 = vmatprep.subr.bf16.mxu0 %v5034
    %5162 = vmatpush1.bf16.msra.mxu0 %v5033
    %5163 = vmatprep.subr.bf16.mxu0 %v5036
    %5164 = vmatpush1.bf16.msra.mxu0 %v5035
    %5165 = vmatprep.subr.bf16.mxu0 %v5038
    %5166 = vmatpush1.bf16.msra.mxu0 %v5037
    %5167 = vmatprep.subr.bf16.mxu0 %v5040
    %5168 = vmatpush1.bf16.msra.mxu0 %v5039
    %5169 = vmatprep.subr.bf16.mxu0 %v5042
    %5170 = vmatpush1.bf16.msra.mxu0 %v5041
    %5171 = vmatprep.subr.bf16.mxu0 %v5044
    %5172 = vmatpush1.bf16.msra.mxu0 %v5043
    %5173 = vmatprep.subr.bf16.mxu0 %v5046
    %5174 = vmatpush1.bf16.msra.mxu0 %v5045
    %5175 = vmatprep.subr.bf16.mxu0 %v5048
    %5176 = vmatpush1.bf16.msra.mxu0 %v5047
    %5177 = vmatprep.subr.bf16.mxu0 %v5050
    %5178 = vmatpush1.bf16.msra.mxu0 %v5049
    %5179 = vmatprep.subr.bf16.mxu0 %v5052
    %5180 = vmatpush1.bf16.msra.mxu0 %v5051
    %5181 = vmatprep.subr.bf16.mxu0 %v5054
    %5182 = vmatpush1.bf16.msra.mxu0 %v5053
    %5183 = vmatprep.subr.bf16.mxu0 %v5056
    %5184 = vmatpush1.bf16.msra.mxu0 %v5055
    %5185 = vmatprep.subr.bf16.mxu0 %v5058
    %5186 = vmatpush1.bf16.msra.mxu0 %v5057
    %5187 = vmatprep.mubr.bf16.mxu0 %v4768
    %5188 = vmatmul.mubr.bf16.gmra.mrb[0].mxu0 %v4767
    %v5189 = vpop.f32.mrb[0].mxu0
    %v5190 = vadd.f32 0.0, %v5189
    %v5191 = vpop.f32.mrb[0].mxu0
    %v5192 = vpop.f32.mrb[0].mxu0
    %v5193 = vpop.f32.mrb[0].mxu0
    %v5194 = vadd.f32 0.0, %v5193
    %5195 = vdwg.mxu0
    %5196 = vmatprep.subr.bf16.mxu0 %v5060
    %5197 = vmatpush1.bf16.msra.mxu0 %v5059
    %5198 = vmatprep.subr.bf16.mxu0 %v5062
    %5199 = vmatpush1.bf16.msra.mxu0 %v5061
    %5200 = vmatprep.subr.bf16.mxu0 %v5064
    %5201 = vmatpush1.bf16.msra.mxu0 %v5063
    %5202 = vmatprep.subr.bf16.mxu0 %v5066
    %5203 = vmatpush1.bf16.msra.mxu0 %v5065
    %5204 = vmatprep.subr.bf16.mxu0 %v5068
    %5205 = vmatpush1.bf16.msra.mxu0 %v5067
    %5206 = vmatprep.subr.bf16.mxu0 %v5070
    %5207 = vmatpush1.bf16.msra.mxu0 %v5069
    %5208 = vmatprep.subr.bf16.mxu0 %v5072
    %5209 = vmatpush1.bf16.msra.mxu0 %v5071
    %5210 = vmatprep.subr.bf16.mxu0 %v5074
    %5211 = vmatpush1.bf16.msra.mxu0 %v5073
    %5212 = vmatprep.subr.bf16.mxu0 %v5076
    %5213 = vmatpush1.bf16.msra.mxu0 %v5075
    %5214 = vmatprep.subr.bf16.mxu0 %v5078
    %5215 = vmatpush1.bf16.msra.mxu0 %v5077
    %5216 = vmatprep.subr.bf16.mxu0 %v5080
    %5217 = vmatpush1.bf16.msra.mxu0 %v5079
    %5218 = vmatprep.subr.bf16.mxu0 %v5082
    %5219 = vmatpush1.bf16.msra.mxu0 %v5081
    %5220 = vmatprep.subr.bf16.mxu0 %v5084
    %5221 = vmatpush1.bf16.msra.mxu0 %v5083
    %5222 = vmatprep.subr.bf16.mxu0 %v5086
    %5223 = vmatpush1.bf16.msra.mxu0 %v5085
    %5224 = vmatprep.subr.bf16.mxu0 %v5088
    %5225 = vmatpush1.bf16.msra.mxu0 %v5087
    %5226 = vmatprep.subr.bf16.mxu0 %v5090
    %5227 = vmatpush1.bf16.msra.mxu0 %v5089
    %5228 = vmatprep.mubr.bf16.mxu0 %v4770
    %5229 = vmatmul.mubr.bf16.gmra.mrb[0].mxu0 %v4769
    %v5230 = vpop.f32.mrb[0].mxu0
    %v5231 = vadd.f32 %v5190, %v5230
    %v5232 = vpop.f32.mrb[0].mxu0
    %v5233 = vpop.f32.mrb[0].mxu0
    %v5234 = vpop.f32.mrb[0].mxu0
    %v5235 = vadd.f32 %v5194, %v5234
    %5236 = vdwg.mxu0
    %v5237 = vld [vmem:[%s4] sm:$0x1]
    %v5239 = vlaneseq
    %v5240 = vshrl.u32 %v5239, 7
    %v5241 = vsub.s32 0, %v5240
    %v5242 = vrot.slane %v5237, %v5241
    %v5244 = vmul.f32 %v5231, %v5242
    %v5245 = vld [vmem:[%s5] sm:$0x1]
    %v5247 = vlaneseq
    %v5248 = vshrl.u32 %v5247, 7
    %v5249 = vsub.s32 0, %v5248
    %v5250 = vrot.slane %v5245, %v5249
    %v5252 = vadd.f32 %v5244, %v5250
    %v5253 = vld [vmem:[%s6] sm:$0x1]
    %v5255 = vlaneseq
    %v5256 = vshrl.u32 %v5255, 7
    %v5257 = vsub.s32 0, %v5256
    %v5258 = vrot.slane %v5253, %v5257
    %v5260 = vmul.f32 %v5235, %v5258
    %v5261 = vld [vmem:[%s7] sm:$0x1]
    %v5263 = vlaneseq
    %v5264 = vshrl.u32 %v5263, 7
    %v5265 = vsub.s32 0, %v5264
    %v5266 = vrot.slane %v5261, %v5265
    %v5268 = vadd.f32 %v5260, %v5266
    %5269 = vst [vmem:[#allocation2] sm:$0xff] %v5252
    %5270 = vst [vmem:[#allocation2 + $0x8] sm:$0xff] %v5268
    // Predicated region
    $region34: #{tpu_custom_call.1} parent=1 // pred_check
      _
    $region35: #{tpu_custom_call.1} parent=1 // pred_check_branch
      %5272 = sbr.rel (0) target = $region37
    $region36: #{tpu_custom_call.1} parent=1 // pred_region
      %s5274 = ssub.s32 256, 256
      %5275 = vsyncadd [#allocation3], %s5274
      %s5277 = sshll.u32 [#allocation2], 4
      %s5278 = int_to_ptr.vmem [resolvable:$true] %s5277
      %5280 = dma.vmem_to_hbm [thread:$0]  %s5278, 256, %s8, [#allocation3]
    $region37: #{tpu_custom_call.1} parent=1 // pred_fallthru
      _
    // Predicated region
    $region38: #{tpu_custom_call.1} parent=1 // pred_check
      _
    $region39: #{tpu_custom_call.1} parent=1 // pred_check_branch
      %5282 = sbr.rel (0) target = $region41
    $region40: #{tpu_custom_call.1} parent=1 // pred_region
      %5283 = dma.done [#allocation3], 256
    $region41: #{tpu_custom_call.1} parent=1 // pred_fallthru
      _
    %5284 = vsyncpa [#allocation3], 1

</llo_original>
